<compile_context>
chip_gen: v5e
topology: v5e:2x2
jax: 0.10.0
libtpu: 0.0.40
codegen_flags: <defaults>
</compile_context>

<pallas_src>
import math

import jax
import jax.numpy as jnp
from jax.experimental import pallas as pl
from jax.experimental.pallas import tpu as pltpu

# ----------------------------- model dims -----------------------------------
B = 2                                # batch
IMG = 16                             # image H = W
CIN = 3                              # image channels
PATCH = 4                            # patch size
PPS = IMG // PATCH                   # patches per side
P = PPS * PPS                        # 16 image patches
PATCH_DIM = CIN * PATCH * PATCH      # 48
DV = 32                              # vision hidden
HV = 2                               # vision heads
DHV = DV // HV                       # 16
DV_MLP = 64                          # vision MLP inner
DT = 64                              # text (Vicuna) hidden
HT = 4                               # text heads
DHT = DT // HT                       # 16
DT_MLP = 128                         # SwiGLU inner
VOCAB = 128
S_TXT = 8                            # prompt tokens
S_TOT = P + S_TXT                    # 24 (image tokens prepended, <image> expansion)

# ----------------------------- packed parameter layout ------------------------
# bf16 weight slab: every matmul weight occupies [row0:row0+rows, 0:cols] of a
# (W_ROWS, 128) bf16 array.  All row offsets are multiples of 16 (bf16 sublane
# packing), so every in-kernel static slice is well aligned.
def _make_w_layout():
    order = [
        ("v_patch_w", PATCH_DIM, DV),
        ("v_wq", DV, DV), ("v_wk", DV, DV), ("v_wv", DV, DV), ("v_wo", DV, DV),
        ("v_mlp_w1", DV, DV_MLP), ("v_mlp_w2", DV_MLP, DV),
        ("proj_w1", DV, DT), ("proj_w2", DT, DT),
        ("tok_emb", VOCAB, DT),
        ("t_wq", DT, DT), ("t_wk", DT, DT), ("t_wv", DT, DT), ("t_wo", DT, DT),
        ("t_gate", DT, DT_MLP), ("t_up", DT, DT_MLP), ("t_down", DT_MLP, DT),
        ("lm_head", DT, VOCAB),
    ]
    layout, r = {}, 0
    for name, nr, nc in order:
        assert nr % 16 == 0 and nc <= 128
        layout[name] = (r, nr, nc)
        r += nr
    return layout, r


_WL, W_ROWS = _make_w_layout()       # W_ROWS == 1072

# f32 slab: one row per bias / norm-gain vector, then the (P, DV) position
# embedding; shape (PF_ROWS, 128) f32.
_VEC = {n: i for i, n in enumerate([
    "v_patch_b", "v_ln1_g", "v_ln1_b", "v_bq", "v_bk", "v_bv", "v_bo",
    "v_ln2_g", "v_ln2_b", "v_mlp_b1", "v_mlp_b2", "proj_b1", "proj_b2",
    "t_rms1_g", "t_rms2_g", "t_rmsf_g"])}
_POS_ROW = 16
PF_ROWS = _POS_ROW + P               # 32


# ----------------------------- in-kernel helpers ------------------------------
def _mxu(a, b):
    """MXU matmul, f32 accumulation; `b` is already bf16 (weight slab)."""
    return jnp.dot(a.astype(jnp.bfloat16), b, preferred_element_type=jnp.float32)


def _layernorm(x, g, b, eps=1e-5):
    mu = jnp.mean(x, axis=-1, keepdims=True)
    var = jnp.mean((x - mu) ** 2, axis=-1, keepdims=True)
    return (x - mu) * jax.lax.rsqrt(var + eps) * g + b


def _rmsnorm(x, g, eps=1e-6):
    ms = jnp.mean(x * x, axis=-1, keepdims=True)
    return x * jax.lax.rsqrt(ms + eps) * g


def _softmax_rows(s):
    m = jnp.max(s, axis=-1, keepdims=True)
    e = jnp.exp(s - m)
    # divide -> EUP reciprocal (separate VLIW slot)
    return e * pl.reciprocal(jnp.sum(e, axis=-1, keepdims=True), approx=True)


def _quick_gelu(x):                  # CLIP activation: x * sigmoid(1.702 x)
    return x * jax.nn.sigmoid(1.702 * x)


# ----------------------------- fused kernel -----------------------------------
def _llava_step_kernel(patches_ref, ids_ref, pf_ref, pw_ref,
                       logits_ref, tok_ref, hdec_ref):
    bf16 = jnp.bfloat16

    def w(name, rows=None, cols=None):
        """Static (free) slice of the bf16 weight slab."""
        r0, nr, nc = _WL[name]
        c0 = 0
        if rows is not None:
            r0, nr = r0 + rows[0], rows[1]
        if cols is not None:
            c0, nc = cols
        return pw_ref[r0:r0 + nr, c0:c0 + nc]

    def vrow(name, n, c0=0):
        """(1, n) f32 bias / gain row from the f32 slab."""
        r = _VEC[name]
        return pf_ref[r:r + 1, c0:c0 + n]

    # ---------------- vision tower: patch embed + pre-LN transformer block ----
    h = _mxu(patches_ref[...], w("v_patch_w")) + vrow("v_patch_b", DV)   # (B*P, DV)
    h = h + jnp.tile(pf_ref[_POS_ROW:_POS_ROW + P, 0:DV], (B, 1))        # + pos per image

    x2 = _layernorm(h, vrow("v_ln1_g", DV), vrow("v_ln1_b", DV))
    attn = jnp.zeros((B * P, DV), jnp.float32)
    for hh in range(HV):                                     # short static loop, batched over B
        c = (hh * DHV, DHV)
        q = _mxu(x2, w("v_wq", cols=c)) + vrow("v_bq", DHV, hh * DHV)
        k = _mxu(x2, w("v_wk", cols=c)) + vrow("v_bk", DHV, hh * DHV)
        v = _mxu(x2, w("v_wv", cols=c)) + vrow("v_bv", DHV, hh * DHV)
        q3 = q.reshape(B, P, DHV).astype(bf16)
        k3 = k.reshape(B, P, DHV).astype(bf16)
        v3 = v.reshape(B, P, DHV).astype(bf16)
        s = jnp.einsum("bqd,bkd->bqk", q3, k3,
                       preferred_element_type=jnp.float32) * (1.0 / math.sqrt(DHV))
        p = _softmax_rows(s)
        o = jnp.einsum("bqk,bkd->bqd", p.astype(bf16), v3,
                       preferred_element_type=jnp.float32)
        # head merge folded into the output projection: sum_h o_h @ Wo[rows of h]
        attn = attn + _mxu(o.reshape(B * P, DHV), w("v_wo", rows=(hh * DHV, DHV)))
    h = h + attn + vrow("v_bo", DV)

    x2 = _layernorm(h, vrow("v_ln2_g", DV), vrow("v_ln2_b", DV))
    m = _quick_gelu(_mxu(x2, w("v_mlp_w1")) + vrow("v_mlp_b1", DV_MLP))
    h = h + _mxu(m, w("v_mlp_w2")) + vrow("v_mlp_b2", DV)

    # ---------------- multimodal projector: Linear -> GELU -> Linear ----------
    # TODO(synk): HF projector uses exact (erf) GELU; tanh approximation here.
    t = jax.nn.gelu(_mxu(h, w("proj_w1")) + vrow("proj_b1", DT), approximate=True)
    img = _mxu(t, w("proj_w2")) + vrow("proj_b2", DT)                    # (B*P, DT) f32

    # ---------------- token embedding: in-kernel one-hot gather on the MXU ----
    ids = ids_ref[...]                                                   # (B*S_TXT, 1) int32
    onehot = (ids == jax.lax.broadcasted_iota(jnp.int32, (B * S_TXT, VOCAB), 1)
              ).astype(bf16)
    txt = _mxu(onehot, w("tok_emb"))                                     # (B*S_TXT, DT) f32

    # ---------------- assemble decoder input in VMEM (no concatenate) ---------
    # LLaVA <image> expansion: image tokens prepended to the prompt tokens.
    hdec_ref[:, 0:P, :] = img.reshape(B, P, DT)
    hdec_ref[:, P:S_TOT, :] = txt.reshape(B, S_TXT, DT)
    h = hdec_ref[...].reshape(B * S_TOT, DT)                             # (B*S_TOT, DT)

    # ---------------- Vicuna/LLaMA decoder block (RMSNorm, causal MHA, SwiGLU) -
    # TODO(synk): rotary position embeddings of the real LLaMA attention omitted.
    x2 = _rmsnorm(h, vrow("t_rms1_g", DT))
    row = jax.lax.broadcasted_iota(jnp.int32, (B, S_TOT, S_TOT), 1)
    col = jax.lax.broadcasted_iota(jnp.int32, (B, S_TOT, S_TOT), 2)
    causal = col <= row
    attn = jnp.zeros((B * S_TOT, DT), jnp.float32)
    for hh in range(HT):
        c = (hh * DHT, DHT)
        q3 = _mxu(x2, w("t_wq", cols=c)).reshape(B, S_TOT, DHT).astype(bf16)
        k3 = _mxu(x2, w("t_wk", cols=c)).reshape(B, S_TOT, DHT).astype(bf16)
        v3 = _mxu(x2, w("t_wv", cols=c)).reshape(B, S_TOT, DHT).astype(bf16)
        s = jnp.einsum("bqd,bkd->bqk", q3, k3,
                       preferred_element_type=jnp.float32) * (1.0 / math.sqrt(DHT))
        s = jnp.where(causal, s, -1e30)
        p = _softmax_rows(s)
        o = jnp.einsum("bqk,bkd->bqd", p.astype(bf16), v3,
                       preferred_element_type=jnp.float32)
        attn = attn + _mxu(o.reshape(B * S_TOT, DHT), w("t_wo", rows=(hh * DHT, DHT)))
    h = h + attn

    x2 = _rmsnorm(h, vrow("t_rms2_g", DT))
    g = _mxu(x2, w("t_gate"))                                            # (rows, DT_MLP) lane-dense
    u = _mxu(x2, w("t_up"))
    h = h + _mxu(g * jax.nn.sigmoid(g) * u, w("t_down"))

    # ---------------- final RMSNorm + LM head, LAST position only (greedy) ----
    h_last = h.reshape(B, S_TOT, DT)[:, S_TOT - 1:S_TOT, :].reshape(B, DT)
    hf = _rmsnorm(h_last, vrow("t_rmsf_g", DT))
    logits = _mxu(hf, w("lm_head"))                                      # (B, VOCAB) f32
    logits_ref[...] = logits

    # greedy argmax in-kernel (first-max index, matches jnp.argmax)
    mx = jnp.max(logits, axis=-1, keepdims=True)
    lane = jax.lax.broadcasted_iota(jnp.int32, (B, VOCAB), 1)
    tok_ref[...] = jnp.min(jnp.where(logits == mx, lane, VOCAB),
                           axis=-1, keepdims=True)


# ----------------------------- pallas_call wrapper -----------------------------
def llava_fused_step(pf, pw, patches, ids_col):
    """One fused greedy decode step.

    Single invocation (no grid): all inputs are whole-array VMEM residents
    (total footprint < 0.5 MB on every TPU generation).
    """
    return pl.pallas_call(
        _llava_step_kernel,
        out_shape=(jax.ShapeDtypeStruct((B, VOCAB), jnp.float32),   # last-pos logits
                   jax.ShapeDtypeStruct((B, 1), jnp.int32)),        # greedy token
        scratch_shapes=[pltpu.VMEM((B, S_TOT, DT), jnp.float32)],   # decoder input
    )(patches, ids_col, pf, pw)


# ----------------------------- parameters -------------------------------------
def init_params(key):
    def nrm(k, shape, scale=0.02):
        return scale * jax.random.normal(k, shape, dtype=jnp.float32)

    keys = jax.random.split(key, len(_WL) + 1)

    # bf16 weight slab
    pw = jnp.zeros((W_ROWS, 128), jnp.bfloat16)
    for k, (name, (r0, nr, nc)) in zip(keys[:-1], _WL.items()):
        pw = pw.at[r0:r0 + nr, :nc].set(nrm(k, (nr, nc)).astype(jnp.bfloat16))

    # f32 slab: biases zero, norm gains one, position embedding random
    pf = jnp.zeros((PF_ROWS, 128), jnp.float32)
    for name, width in (("v_ln1_g", DV), ("v_ln2_g", DV),
                        ("t_rms1_g", DT), ("t_rms2_g", DT), ("t_rmsf_g", DT)):
        pf = pf.at[_VEC[name], :width].set(1.0)
    pf = pf.at[_POS_ROW:_POS_ROW + P, :DV].set(nrm(keys[-1], (P, DV)))

    return {"pf": pf, "pw": pw}


# ----------------------------- model forward ----------------------------------
def extract_patches(image):
    """NCHW -> [B*P, C*ph*pw]; one XLA transpose per step (Conv2d patch-embed input)."""
    b = image.shape[0]
    x = image.reshape(b, CIN, PPS, PATCH, PPS, PATCH)
    x = x.transpose(0, 2, 4, 1, 3, 5)
    return x.reshape(b * P, PATCH_DIM)


@jax.jit
def llava_generate_step(params, image, input_ids):
    """One greedy decoding step of the LLaVA-1.5 generate() path."""
    patches = extract_patches(image)
    ids_col = input_ids.reshape(B * S_TXT, 1).astype(jnp.int32)
    logits_last, next_tok = llava_fused_step(params["pf"], params["pw"],
                                             patches, ids_col)
    return logits_last, next_tok.reshape(B)


# ----------------------------- main -------------------------------------------
if __name__ == "__main__":
    key = jax.random.PRNGKey(0)
    k_img, k_param, k_ids = jax.random.split(key, 3)

    image = jax.random.normal(k_img, (B, CIN, IMG, IMG), dtype=jnp.float32)
    input_ids = jax.random.randint(k_ids, (B, S_TXT), 0, VOCAB, dtype=jnp.int32)
    params = init_params(k_param)

    logits_last, next_tok = llava_generate_step(params, image, input_ids)
    jax.block_until_ready((logits_last, next_tok))

    assert logits_last.shape == (B, VOCAB)
    assert next_tok.shape == (B,)
    assert bool(jnp.all(jnp.isfinite(logits_last)))
    print("KERNEL_OK")
</pallas_src>

<mosaic_0001>
module attributes {stable_mosaic.version = 11 : i64} {
  func.func @_llava_step_kernel(%arg0: memref<32x48xf32, #tpu.memory_space<vmem>>, %arg1: memref<16x1xi32, #tpu.memory_space<vmem>>, %arg2: memref<32x128xf32, #tpu.memory_space<vmem>>, %arg3: memref<1072x128xbf16, #tpu.memory_space<vmem>>, %arg4: memref<2x128xf32, #tpu.memory_space<vmem>>, %arg5: memref<2x1xi32, #tpu.memory_space<vmem>>, %arg6: memref<2x24x64xf32, #tpu.memory_space<vmem>>) attributes {dimension_semantics = [], scalar_prefetch = 0 : i64, scratch_operands = 1 : i64, tpu.core_type = #tpu.core_type<tc>} {
    %c0 = arith.constant 0 : index
    %c0_0 = arith.constant 0 : index
    %0 = vector.load %arg0[%c0, %c0_0] : memref<32x48xf32, #tpu.memory_space<vmem>>, vector<32x48xf32>
    %c0_1 = arith.constant 0 : index
    %c0_2 = arith.constant 0 : index
    %1 = vector.load %arg3[%c0_1, %c0_2] : memref<1072x128xbf16, #tpu.memory_space<vmem>>, vector<48x32xbf16>
    %2 = arith.truncf %0 : vector<32x48xf32> to vector<32x48xbf16>
    %cst = arith.constant dense<0.000000e+00> : vector<32x32xf32>
    %3 = tpu.matmul %2, %1, %cst {dimension_numbers = #tpu.dot_dimension_numbers<[1], [0], [0], [1], [0, 0, 1, 1], [], []>} : vector<32x48xbf16>, vector<48x32xbf16>, vector<32x32xf32> -> vector<32x32xf32>
    %c0_3 = arith.constant 0 : index
    %c0_4 = arith.constant 0 : index
    %4 = vector.load %arg2[%c0_3, %c0_4] : memref<32x128xf32, #tpu.memory_space<vmem>>, vector<1x32xf32>
    %5 = vector.broadcast %4 : vector<1x32xf32> to vector<32x32xf32>
    %6 = arith.addf %3, %5 : vector<32x32xf32>
    %c16 = arith.constant 16 : index
    %c0_5 = arith.constant 0 : index
    %7 = vector.load %arg2[%c16, %c0_5] : memref<32x128xf32, #tpu.memory_space<vmem>>, vector<16x32xf32>
    %8 = tpu.concatenate %7, %7 in 0 : vector<16x32xf32>, vector<16x32xf32> -> vector<32x32xf32>
    %9 = arith.addf %6, %8 : vector<32x32xf32>
    %c1 = arith.constant 1 : index
    %c0_6 = arith.constant 0 : index
    %10 = vector.load %arg2[%c1, %c0_6] : memref<32x128xf32, #tpu.memory_space<vmem>>, vector<1x32xf32>
    %c2 = arith.constant 2 : index
    %c0_7 = arith.constant 0 : index
    %11 = vector.load %arg2[%c2, %c0_7] : memref<32x128xf32, #tpu.memory_space<vmem>>, vector<1x32xf32>
    %cst_8 = arith.constant dense<0.000000e+00> : vector<32xf32>
    %12 = vector.multi_reduction <add>, %9, %cst_8 [1] : vector<32x32xf32> to vector<32xf32>
    %13 = vector.shape_cast %12 : vector<32xf32> to vector<32x1xf32>
    %cst_9 = arith.constant 3.200000e+01 : f32
    %14 = vector.broadcast %cst_9 : f32 to vector<32x1xf32>
    %15 = arith.divf %13, %14 : vector<32x1xf32>
    %16 = vector.broadcast %15 : vector<32x1xf32> to vector<32x32xf32>
    %17 = arith.subf %9, %16 : vector<32x32xf32>
    %18 = arith.mulf %17, %17 : vector<32x32xf32>
    %cst_10 = arith.constant dense<0.000000e+00> : vector<32xf32>
    %19 = vector.multi_reduction <add>, %18, %cst_10 [1] : vector<32x32xf32> to vector<32xf32>
    %20 = vector.shape_cast %19 : vector<32xf32> to vector<32x1xf32>
    %cst_11 = arith.constant 3.200000e+01 : f32
    %21 = vector.broadcast %cst_11 : f32 to vector<32x1xf32>
    %22 = arith.divf %20, %21 : vector<32x1xf32>
    %23 = vector.broadcast %15 : vector<32x1xf32> to vector<32x32xf32>
    %24 = arith.subf %9, %23 : vector<32x32xf32>
    %cst_12 = arith.constant 9.99999974E-6 : f32
    %25 = vector.broadcast %cst_12 : f32 to vector<32x1xf32>
    %26 = arith.addf %22, %25 : vector<32x1xf32>
    %27 = math.rsqrt %26 : vector<32x1xf32>
    %28 = vector.broadcast %27 : vector<32x1xf32> to vector<32x32xf32>
    %29 = arith.mulf %24, %28 : vector<32x32xf32>
    %30 = vector.broadcast %10 : vector<1x32xf32> to vector<32x32xf32>
    %31 = arith.mulf %29, %30 : vector<32x32xf32>
    %32 = vector.broadcast %11 : vector<1x32xf32> to vector<32x32xf32>
    %33 = arith.addf %31, %32 : vector<32x32xf32>
    %cst_13 = arith.constant 0.000000e+00 : f32
    %34 = vector.broadcast %cst_13 : f32 to vector<32x32xf32>
    %c48 = arith.constant 48 : index
    %c0_14 = arith.constant 0 : index
    %35 = vector.load %arg3[%c48, %c0_14] : memref<1072x128xbf16, #tpu.memory_space<vmem>>, vector<32x16xbf16>
    %36 = arith.truncf %33 : vector<32x32xf32> to vector<32x32xbf16>
    %cst_15 = arith.constant dense<0.000000e+00> : vector<32x16xf32>
    %37 = tpu.matmul %36, %35, %cst_15 {dimension_numbers = #tpu.dot_dimension_numbers<[1], [0], [0], [1], [0, 0, 1, 1], [], []>} : vector<32x32xbf16>, vector<32x16xbf16>, vector<32x16xf32> -> vector<32x16xf32>
    %c3 = arith.constant 3 : index
    %c0_16 = arith.constant 0 : index
    %38 = vector.load %arg2[%c3, %c0_16] : memref<32x128xf32, #tpu.memory_space<vmem>>, vector<1x16xf32>
    %39 = vector.broadcast %38 : vector<1x16xf32> to vector<32x16xf32>
    %40 = arith.addf %37, %39 : vector<32x16xf32>
    %c80 = arith.constant 80 : index
    %c0_17 = arith.constant 0 : index
    %41 = vector.load %arg3[%c80, %c0_17] : memref<1072x128xbf16, #tpu.memory_space<vmem>>, vector<32x16xbf16>
    %42 = arith.truncf %33 : vector<32x32xf32> to vector<32x32xbf16>
    %cst_18 = arith.constant dense<0.000000e+00> : vector<32x16xf32>
    %43 = tpu.matmul %42, %41, %cst_18 {dimension_numbers = #tpu.dot_dimension_numbers<[1], [0], [0], [1], [0, 0, 1, 1], [], []>} : vector<32x32xbf16>, vector<32x16xbf16>, vector<32x16xf32> -> vector<32x16xf32>
    %c4 = arith.constant 4 : index
    %c0_19 = arith.constant 0 : index
    %44 = vector.load %arg2[%c4, %c0_19] : memref<32x128xf32, #tpu.memory_space<vmem>>, vector<1x16xf32>
    %45 = vector.broadcast %44 : vector<1x16xf32> to vector<32x16xf32>
    %46 = arith.addf %43, %45 : vector<32x16xf32>
    %c112 = arith.constant 112 : index
    %c0_20 = arith.constant 0 : index
    %47 = vector.load %arg3[%c112, %c0_20] : memref<1072x128xbf16, #tpu.memory_space<vmem>>, vector<32x16xbf16>
    %48 = arith.truncf %33 : vector<32x32xf32> to vector<32x32xbf16>
    %cst_21 = arith.constant dense<0.000000e+00> : vector<32x16xf32>
    %49 = tpu.matmul %48, %47, %cst_21 {dimension_numbers = #tpu.dot_dimension_numbers<[1], [0], [0], [1], [0, 0, 1, 1], [], []>} : vector<32x32xbf16>, vector<32x16xbf16>, vector<32x16xf32> -> vector<32x16xf32>
    %c5 = arith.constant 5 : index
    %c0_22 = arith.constant 0 : index
    %50 = vector.load %arg2[%c5, %c0_22] : memref<32x128xf32, #tpu.memory_space<vmem>>, vector<1x16xf32>
    %51 = vector.broadcast %50 : vector<1x16xf32> to vector<32x16xf32>
    %52 = arith.addf %49, %51 : vector<32x16xf32>
    %53 = vector.shape_cast %40 : vector<32x16xf32> to vector<2x16x16xf32>
    %54 = arith.truncf %53 : vector<2x16x16xf32> to vector<2x16x16xbf16>
    %55 = vector.shape_cast %46 : vector<32x16xf32> to vector<2x16x16xf32>
    %56 = arith.truncf %55 : vector<2x16x16xf32> to vector<2x16x16xbf16>
    %57 = vector.shape_cast %52 : vector<32x16xf32> to vector<2x16x16xf32>
    %58 = arith.truncf %57 : vector<2x16x16xf32> to vector<2x16x16xbf16>
    "tpu.trace_start"() <{level = 10 : i32, message = "bqd,bkd->bqk"}> : () -> ()
    %cst_23 = arith.constant dense<0.000000e+00> : vector<2x16x16xf32>
    %59 = tpu.matmul %54, %56, %cst_23 {dimension_numbers = #tpu.dot_dimension_numbers<[2], [2], [1], [1], [0, 0, 0, 1, 1, 1], [0], [0]>} : vector<2x16x16xbf16>, vector<2x16x16xbf16>, vector<2x16x16xf32> -> vector<2x16x16xf32>
    "tpu.trace_stop"() : () -> ()
    %cst_24 = arith.constant 2.500000e-01 : f32
    %60 = vector.broadcast %cst_24 : f32 to vector<2x16x16xf32>
    %61 = arith.mulf %59, %60 : vector<2x16x16xf32>
    %cst_25 = arith.constant dense<0xFF800000> : vector<2x16xf32>
    %62 = vector.multi_reduction <maximumf>, %61, %cst_25 [2] : vector<2x16x16xf32> to vector<2x16xf32>
    %63 = vector.shape_cast %62 : vector<2x16xf32> to vector<2x16x1xf32>
    %64 = vector.broadcast %63 : vector<2x16x1xf32> to vector<2x16x16xf32>
    %65 = arith.subf %61, %64 : vector<2x16x16xf32>
    %66 = math.exp %65 : vector<2x16x16xf32>
    %cst_26 = arith.constant dense<0.000000e+00> : vector<2x16xf32>
    %67 = vector.multi_reduction <add>, %66, %cst_26 [2] : vector<2x16x16xf32> to vector<2x16xf32>
    %68 = vector.shape_cast %67 : vector<2x16xf32> to vector<2x16x1xf32>
    %69 = tpu.reciprocal %68 {approx = true} : vector<2x16x1xf32> -> vector<2x16x1xf32>
    %70 = vector.broadcast %69 : vector<2x16x1xf32> to vector<2x16x16xf32>
    %71 = arith.mulf %66, %70 : vector<2x16x16xf32>
    %72 = arith.truncf %71 : vector<2x16x16xf32> to vector<2x16x16xbf16>
    "tpu.trace_start"() <{level = 10 : i32, message = "bqk,bkd->bqd"}> : () -> ()
    %cst_27 = arith.constant dense<0.000000e+00> : vector<2x16x16xf32>
    %73 = tpu.matmul %72, %58, %cst_27 {dimension_numbers = #tpu.dot_dimension_numbers<[2], [1], [1], [2], [0, 0, 0, 1, 1, 2], [0], [0]>} : vector<2x16x16xbf16>, vector<2x16x16xbf16>, vector<2x16x16xf32> -> vector<2x16x16xf32>
    "tpu.trace_stop"() : () -> ()
    %74 = vector.shape_cast %73 : vector<2x16x16xf32> to vector<32x16xf32>
    %c144 = arith.constant 144 : index
    %c0_28 = arith.constant 0 : index
    %75 = vector.load %arg3[%c144, %c0_28] : memref<1072x128xbf16, #tpu.memory_space<vmem>>, vector<16x32xbf16>
    %76 = arith.truncf %74 : vector<32x16xf32> to vector<32x16xbf16>
    %cst_29 = arith.constant dense<0.000000e+00> : vector<32x32xf32>
    %77 = tpu.matmul %76, %75, %cst_29 {dimension_numbers = #tpu.dot_dimension_numbers<[1], [0], [0], [1], [0, 0, 1, 1], [], []>} : vector<32x16xbf16>, vector<16x32xbf16>, vector<32x32xf32> -> vector<32x32xf32>
    %78 = arith.addf %34, %77 : vector<32x32xf32>
    %c48_30 = arith.constant 48 : index
    %c16_31 = arith.constant 16 : index
    %79 = vector.load %arg3[%c48_30, %c16_31] : memref<1072x128xbf16, #tpu.memory_space<vmem>>, vector<32x16xbf16>
    %80 = arith.truncf %33 : vector<32x32xf32> to vector<32x32xbf16>
    %cst_32 = arith.constant dense<0.000000e+00> : vector<32x16xf32>
    %81 = tpu.matmul %80, %79, %cst_32 {dimension_numbers = #tpu.dot_dimension_numbers<[1], [0], [0], [1], [0, 0, 1, 1], [], []>} : vector<32x32xbf16>, vector<32x16xbf16>, vector<32x16xf32> -> vector<32x16xf32>
    %c3_33 = arith.constant 3 : index
    %c16_34 = arith.constant 16 : index
    %82 = vector.load %arg2[%c3_33, %c16_34] : memref<32x128xf32, #tpu.memory_space<vmem>>, vector<1x16xf32>
    %83 = vector.broadcast %82 : vector<1x16xf32> to vector<32x16xf32>
    %84 = arith.addf %81, %83 : vector<32x16xf32>
    %c80_35 = arith.constant 80 : index
    %c16_36 = arith.constant 16 : index
    %85 = vector.load %arg3[%c80_35, %c16_36] : memref<1072x128xbf16, #tpu.memory_space<vmem>>, vector<32x16xbf16>
    %86 = arith.truncf %33 : vector<32x32xf32> to vector<32x32xbf16>
    %cst_37 = arith.constant dense<0.000000e+00> : vector<32x16xf32>
    %87 = tpu.matmul %86, %85, %cst_37 {dimension_numbers = #tpu.dot_dimension_numbers<[1], [0], [0], [1], [0, 0, 1, 1], [], []>} : vector<32x32xbf16>, vector<32x16xbf16>, vector<32x16xf32> -> vector<32x16xf32>
    %c4_38 = arith.constant 4 : index
    %c16_39 = arith.constant 16 : index
    %88 = vector.load %arg2[%c4_38, %c16_39] : memref<32x128xf32, #tpu.memory_space<vmem>>, vector<1x16xf32>
    %89 = vector.broadcast %88 : vector<1x16xf32> to vector<32x16xf32>
    %90 = arith.addf %87, %89 : vector<32x16xf32>
    %c112_40 = arith.constant 112 : index
    %c16_41 = arith.constant 16 : index
    %91 = vector.load %arg3[%c112_40, %c16_41] : memref<1072x128xbf16, #tpu.memory_space<vmem>>, vector<32x16xbf16>
    %92 = arith.truncf %33 : vector<32x32xf32> to vector<32x32xbf16>
    %cst_42 = arith.constant dense<0.000000e+00> : vector<32x16xf32>
    %93 = tpu.matmul %92, %91, %cst_42 {dimension_numbers = #tpu.dot_dimension_numbers<[1], [0], [0], [1], [0, 0, 1, 1], [], []>} : vector<32x32xbf16>, vector<32x16xbf16>, vector<32x16xf32> -> vector<32x16xf32>
    %c5_43 = arith.constant 5 : index
    %c16_44 = arith.constant 16 : index
    %94 = vector.load %arg2[%c5_43, %c16_44] : memref<32x128xf32, #tpu.memory_space<vmem>>, vector<1x16xf32>
    %95 = vector.broadcast %94 : vector<1x16xf32> to vector<32x16xf32>
    %96 = arith.addf %93, %95 : vector<32x16xf32>
    %97 = vector.shape_cast %84 : vector<32x16xf32> to vector<2x16x16xf32>
    %98 = arith.truncf %97 : vector<2x16x16xf32> to vector<2x16x16xbf16>
    %99 = vector.shape_cast %90 : vector<32x16xf32> to vector<2x16x16xf32>
    %100 = arith.truncf %99 : vector<2x16x16xf32> to vector<2x16x16xbf16>
    %101 = vector.shape_cast %96 : vector<32x16xf32> to vector<2x16x16xf32>
    %102 = arith.truncf %101 : vector<2x16x16xf32> to vector<2x16x16xbf16>
    "tpu.trace_start"() <{level = 10 : i32, message = "bqd,bkd->bqk"}> : () -> ()
    %cst_45 = arith.constant dense<0.000000e+00> : vector<2x16x16xf32>
    %103 = tpu.matmul %98, %100, %cst_45 {dimension_numbers = #tpu.dot_dimension_numbers<[2], [2], [1], [1], [0, 0, 0, 1, 1, 1], [0], [0]>} : vector<2x16x16xbf16>, vector<2x16x16xbf16>, vector<2x16x16xf32> -> vector<2x16x16xf32>
    "tpu.trace_stop"() : () -> ()
    %cst_46 = arith.constant 2.500000e-01 : f32
    %104 = vector.broadcast %cst_46 : f32 to vector<2x16x16xf32>
    %105 = arith.mulf %103, %104 : vector<2x16x16xf32>
    %cst_47 = arith.constant dense<0xFF800000> : vector<2x16xf32>
    %106 = vector.multi_reduction <maximumf>, %105, %cst_47 [2] : vector<2x16x16xf32> to vector<2x16xf32>
    %107 = vector.shape_cast %106 : vector<2x16xf32> to vector<2x16x1xf32>
    %108 = vector.broadcast %107 : vector<2x16x1xf32> to vector<2x16x16xf32>
    %109 = arith.subf %105, %108 : vector<2x16x16xf32>
    %110 = math.exp %109 : vector<2x16x16xf32>
    %cst_48 = arith.constant dense<0.000000e+00> : vector<2x16xf32>
    %111 = vector.multi_reduction <add>, %110, %cst_48 [2] : vector<2x16x16xf32> to vector<2x16xf32>
    %112 = vector.shape_cast %111 : vector<2x16xf32> to vector<2x16x1xf32>
    %113 = tpu.reciprocal %112 {approx = true} : vector<2x16x1xf32> -> vector<2x16x1xf32>
    %114 = vector.broadcast %113 : vector<2x16x1xf32> to vector<2x16x16xf32>
    %115 = arith.mulf %110, %114 : vector<2x16x16xf32>
    %116 = arith.truncf %115 : vector<2x16x16xf32> to vector<2x16x16xbf16>
    "tpu.trace_start"() <{level = 10 : i32, message = "bqk,bkd->bqd"}> : () -> ()
    %cst_49 = arith.constant dense<0.000000e+00> : vector<2x16x16xf32>
    %117 = tpu.matmul %116, %102, %cst_49 {dimension_numbers = #tpu.dot_dimension_numbers<[2], [1], [1], [2], [0, 0, 0, 1, 1, 2], [0], [0]>} : vector<2x16x16xbf16>, vector<2x16x16xbf16>, vector<2x16x16xf32> -> vector<2x16x16xf32>
    "tpu.trace_stop"() : () -> ()
    %118 = vector.shape_cast %117 : vector<2x16x16xf32> to vector<32x16xf32>
    %c160 = arith.constant 160 : index
    %c0_50 = arith.constant 0 : index
    %119 = vector.load %arg3[%c160, %c0_50] : memref<1072x128xbf16, #tpu.memory_space<vmem>>, vector<16x32xbf16>
    %120 = arith.truncf %118 : vector<32x16xf32> to vector<32x16xbf16>
    %cst_51 = arith.constant dense<0.000000e+00> : vector<32x32xf32>
    %121 = tpu.matmul %120, %119, %cst_51 {dimension_numbers = #tpu.dot_dimension_numbers<[1], [0], [0], [1], [0, 0, 1, 1], [], []>} : vector<32x16xbf16>, vector<16x32xbf16>, vector<32x32xf32> -> vector<32x32xf32>
    %122 = arith.addf %78, %121 : vector<32x32xf32>
    %123 = arith.addf %9, %122 : vector<32x32xf32>
    %c6 = arith.constant 6 : index
    %c0_52 = arith.constant 0 : index
    %124 = vector.load %arg2[%c6, %c0_52] : memref<32x128xf32, #tpu.memory_space<vmem>>, vector<1x32xf32>
    %125 = vector.broadcast %124 : vector<1x32xf32> to vector<32x32xf32>
    %126 = arith.addf %123, %125 : vector<32x32xf32>
    %c7 = arith.constant 7 : index
    %c0_53 = arith.constant 0 : index
    %127 = vector.load %arg2[%c7, %c0_53] : memref<32x128xf32, #tpu.memory_space<vmem>>, vector<1x32xf32>
    %c8 = arith.constant 8 : index
    %c0_54 = arith.constant 0 : index
    %128 = vector.load %arg2[%c8, %c0_54] : memref<32x128xf32, #tpu.memory_space<vmem>>, vector<1x32xf32>
    %cst_55 = arith.constant dense<0.000000e+00> : vector<32xf32>
    %129 = vector.multi_reduction <add>, %126, %cst_55 [1] : vector<32x32xf32> to vector<32xf32>
    %130 = vector.shape_cast %129 : vector<32xf32> to vector<32x1xf32>
    %cst_56 = arith.constant 3.200000e+01 : f32
    %131 = vector.broadcast %cst_56 : f32 to vector<32x1xf32>
    %132 = arith.divf %130, %131 : vector<32x1xf32>
    %133 = vector.broadcast %132 : vector<32x1xf32> to vector<32x32xf32>
    %134 = arith.subf %126, %133 : vector<32x32xf32>
    %135 = arith.mulf %134, %134 : vector<32x32xf32>
    %cst_57 = arith.constant dense<0.000000e+00> : vector<32xf32>
    %136 = vector.multi_reduction <add>, %135, %cst_57 [1] : vector<32x32xf32> to vector<32xf32>
    %137 = vector.shape_cast %136 : vector<32xf32> to vector<32x1xf32>
    %cst_58 = arith.constant 3.200000e+01 : f32
    %138 = vector.broadcast %cst_58 : f32 to vector<32x1xf32>
    %139 = arith.divf %137, %138 : vector<32x1xf32>
    %140 = vector.broadcast %132 : vector<32x1xf32> to vector<32x32xf32>
    %141 = arith.subf %126, %140 : vector<32x32xf32>
    %cst_59 = arith.constant 9.99999974E-6 : f32
    %142 = vector.broadcast %cst_59 : f32 to vector<32x1xf32>
    %143 = arith.addf %139, %142 : vector<32x1xf32>
    %144 = math.rsqrt %143 : vector<32x1xf32>
    %145 = vector.broadcast %144 : vector<32x1xf32> to vector<32x32xf32>
    %146 = arith.mulf %141, %145 : vector<32x32xf32>
    %147 = vector.broadcast %127 : vector<1x32xf32> to vector<32x32xf32>
    %148 = arith.mulf %146, %147 : vector<32x32xf32>
    %149 = vector.broadcast %128 : vector<1x32xf32> to vector<32x32xf32>
    %150 = arith.addf %148, %149 : vector<32x32xf32>
    %c176 = arith.constant 176 : index
    %c0_60 = arith.constant 0 : index
    %151 = vector.load %arg3[%c176, %c0_60] : memref<1072x128xbf16, #tpu.memory_space<vmem>>, vector<32x64xbf16>
    %152 = arith.truncf %150 : vector<32x32xf32> to vector<32x32xbf16>
    %cst_61 = arith.constant dense<0.000000e+00> : vector<32x64xf32>
    %153 = tpu.matmul %152, %151, %cst_61 {dimension_numbers = #tpu.dot_dimension_numbers<[1], [0], [0], [1], [0, 0, 1, 1], [], []>} : vector<32x32xbf16>, vector<32x64xbf16>, vector<32x64xf32> -> vector<32x64xf32>
    %c9 = arith.constant 9 : index
    %c0_62 = arith.constant 0 : index
    %154 = vector.load %arg2[%c9, %c0_62] : memref<32x128xf32, #tpu.memory_space<vmem>>, vector<1x64xf32>
    %155 = vector.broadcast %154 : vector<1x64xf32> to vector<32x64xf32>
    %156 = arith.addf %153, %155 : vector<32x64xf32>
    %cst_63 = arith.constant 1.702000e+00 : f32
    %157 = vector.broadcast %cst_63 : f32 to vector<32x64xf32>
    %158 = arith.mulf %157, %156 : vector<32x64xf32>
    %159 = arith.negf %158 : vector<32x64xf32>
    %160 = math.exp %159 : vector<32x64xf32>
    %cst_64 = arith.constant 1.000000e+00 : f32
    %161 = vector.broadcast %cst_64 : f32 to vector<32x64xf32>
    %162 = arith.addf %161, %160 : vector<32x64xf32>
    %163 = arith.divf %161, %162 : vector<32x64xf32>
    %164 = arith.mulf %156, %163 : vector<32x64xf32>
    %c208 = arith.constant 208 : index
    %c0_65 = arith.constant 0 : index
    %165 = vector.load %arg3[%c208, %c0_65] : memref<1072x128xbf16, #tpu.memory_space<vmem>>, vector<64x32xbf16>
    %166 = arith.truncf %164 : vector<32x64xf32> to vector<32x64xbf16>
    %cst_66 = arith.constant dense<0.000000e+00> : vector<32x32xf32>
    %167 = tpu.matmul %166, %165, %cst_66 {dimension_numbers = #tpu.dot_dimension_numbers<[1], [0], [0], [1], [0, 0, 1, 1], [], []>} : vector<32x64xbf16>, vector<64x32xbf16>, vector<32x32xf32> -> vector<32x32xf32>
    %168 = arith.addf %126, %167 : vector<32x32xf32>
    %c10 = arith.constant 10 : index
    %c0_67 = arith.constant 0 : index
    %169 = vector.load %arg2[%c10, %c0_67] : memref<32x128xf32, #tpu.memory_space<vmem>>, vector<1x32xf32>
    %170 = vector.broadcast %169 : vector<1x32xf32> to vector<32x32xf32>
    %171 = arith.addf %168, %170 : vector<32x32xf32>
    %c272 = arith.constant 272 : index
    %c0_68 = arith.constant 0 : index
    %172 = vector.load %arg3[%c272, %c0_68] : memref<1072x128xbf16, #tpu.memory_space<vmem>>, vector<32x64xbf16>
    %173 = arith.truncf %171 : vector<32x32xf32> to vector<32x32xbf16>
    %cst_69 = arith.constant dense<0.000000e+00> : vector<32x64xf32>
    %174 = tpu.matmul %173, %172, %cst_69 {dimension_numbers = #tpu.dot_dimension_numbers<[1], [0], [0], [1], [0, 0, 1, 1], [], []>} : vector<32x32xbf16>, vector<32x64xbf16>, vector<32x64xf32> -> vector<32x64xf32>
    %c11 = arith.constant 11 : index
    %c0_70 = arith.constant 0 : index
    %175 = vector.load %arg2[%c11, %c0_70] : memref<32x128xf32, #tpu.memory_space<vmem>>, vector<1x64xf32>
    %176 = vector.broadcast %175 : vector<1x64xf32> to vector<32x64xf32>
    %177 = arith.addf %174, %176 : vector<32x64xf32>
    %178 = arith.mulf %177, %177 : vector<32x64xf32>
    %179 = arith.mulf %177, %178 : vector<32x64xf32>
    %cst_71 = arith.constant 4.471500e-02 : f32
    %180 = vector.broadcast %cst_71 : f32 to vector<32x64xf32>
    %181 = arith.mulf %180, %179 : vector<32x64xf32>
    %182 = arith.addf %177, %181 : vector<32x64xf32>
    %cst_72 = arith.constant 0.797884583 : f32
    %183 = vector.broadcast %cst_72 : f32 to vector<32x64xf32>
    %184 = arith.mulf %183, %182 : vector<32x64xf32>
    %185 = math.tanh %184 : vector<32x64xf32>
    %cst_73 = arith.constant 1.000000e+00 : f32
    %186 = vector.broadcast %cst_73 : f32 to vector<32x64xf32>
    %187 = arith.addf %186, %185 : vector<32x64xf32>
    %cst_74 = arith.constant 5.000000e-01 : f32
    %188 = vector.broadcast %cst_74 : f32 to vector<32x64xf32>
    %189 = arith.mulf %188, %187 : vector<32x64xf32>
    %190 = arith.mulf %177, %189 : vector<32x64xf32>
    %c304 = arith.constant 304 : index
    %c0_75 = arith.constant 0 : index
    %191 = vector.load %arg3[%c304, %c0_75] : memref<1072x128xbf16, #tpu.memory_space<vmem>>, vector<64x64xbf16>
    %192 = arith.truncf %190 : vector<32x64xf32> to vector<32x64xbf16>
    %cst_76 = arith.constant dense<0.000000e+00> : vector<32x64xf32>
    %193 = tpu.matmul %192, %191, %cst_76 {dimension_numbers = #tpu.dot_dimension_numbers<[1], [0], [0], [1], [0, 0, 1, 1], [], []>} : vector<32x64xbf16>, vector<64x64xbf16>, vector<32x64xf32> -> vector<32x64xf32>
    %c12 = arith.constant 12 : index
    %c0_77 = arith.constant 0 : index
    %194 = vector.load %arg2[%c12, %c0_77] : memref<32x128xf32, #tpu.memory_space<vmem>>, vector<1x64xf32>
    %195 = vector.broadcast %194 : vector<1x64xf32> to vector<32x64xf32>
    %196 = arith.addf %193, %195 : vector<32x64xf32>
    %c0_78 = arith.constant 0 : index
    %c0_79 = arith.constant 0 : index
    %197 = vector.load %arg1[%c0_78, %c0_79] : memref<16x1xi32, #tpu.memory_space<vmem>>, vector<16x1xi32>
    %198 = tpu.iota {dimensions = array<i32: 1>} : vector<16x128xi32>
    %199 = vector.broadcast %197 : vector<16x1xi32> to vector<16x128xi32>
    %200 = arith.cmpi eq, %199, %198 : vector<16x128xi32>
    %201 = arith.extui %200 : vector<16x128xi1> to vector<16x128xi32>
    %202 = arith.sitofp %201 : vector<16x128xi32> to vector<16x128xf32>
    %203 = arith.truncf %202 : vector<16x128xf32> to vector<16x128xbf16>
    %c368 = arith.constant 368 : index
    %c0_80 = arith.constant 0 : index
    %204 = vector.load %arg3[%c368, %c0_80] : memref<1072x128xbf16, #tpu.memory_space<vmem>>, vector<128x64xbf16>
    %cst_81 = arith.constant dense<0.000000e+00> : vector<16x64xf32>
    %205 = tpu.matmul %203, %204, %cst_81 {dimension_numbers = #tpu.dot_dimension_numbers<[1], [0], [0], [1], [0, 0, 1, 1], [], []>} : vector<16x128xbf16>, vector<128x64xbf16>, vector<16x64xf32> -> vector<16x64xf32>
    %206 = vector.shape_cast %196 : vector<32x64xf32> to vector<2x16x64xf32>
    %c0_82 = arith.constant 0 : index
    %c0_83 = arith.constant 0 : index
    %c0_84 = arith.constant 0 : index
    %207 = vector.load %arg6[%c0_82, %c0_83, %c0_84] : memref<2x24x64xf32, #tpu.memory_space<vmem>>, vector<2x16x64xf32>
    tpu.vector_store %arg6[%c0_82, %c0_83, %c0_84], %206 {strides = array<i32>} : memref<2x24x64xf32, #tpu.memory_space<vmem>>, vector<2x16x64xf32>,
    %208 = vector.shape_cast %205 : vector<16x64xf32> to vector<2x8x64xf32>
    %c0_85 = arith.constant 0 : index
    %c16_86 = arith.constant 16 : index
    %c0_87 = arith.constant 0 : index
    %209 = vector.load %arg6[%c0_85, %c16_86, %c0_87] : memref<2x24x64xf32, #tpu.memory_space<vmem>>, vector<2x8x64xf32>
    tpu.vector_store %arg6[%c0_85, %c16_86, %c0_87], %208 {strides = array<i32>} : memref<2x24x64xf32, #tpu.memory_space<vmem>>, vector<2x8x64xf32>,
    %c0_88 = arith.constant 0 : index
    %c0_89 = arith.constant 0 : index
    %c0_90 = arith.constant 0 : index
    %210 = vector.load %arg6[%c0_88, %c0_89, %c0_90] : memref<2x24x64xf32, #tpu.memory_space<vmem>>, vector<2x24x64xf32>
    %211 = vector.shape_cast %210 : vector<2x24x64xf32> to vector<48x64xf32>
    %c13 = arith.constant 13 : index
    %c0_91 = arith.constant 0 : index
    %212 = vector.load %arg2[%c13, %c0_91] : memref<32x128xf32, #tpu.memory_space<vmem>>, vector<1x64xf32>
    %213 = arith.mulf %211, %211 : vector<48x64xf32>
    %cst_92 = arith.constant dense<0.000000e+00> : vector<48xf32>
    %214 = vector.multi_reduction <add>, %213, %cst_92 [1] : vector<48x64xf32> to vector<48xf32>
    %215 = vector.shape_cast %214 : vector<48xf32> to vector<48x1xf32>
    %cst_93 = arith.constant 6.400000e+01 : f32
    %216 = vector.broadcast %cst_93 : f32 to vector<48x1xf32>
    %217 = arith.divf %215, %216 : vector<48x1xf32>
    %cst_94 = arith.constant 9.99999997E-7 : f32
    %218 = vector.broadcast %cst_94 : f32 to vector<48x1xf32>
    %219 = arith.addf %217, %218 : vector<48x1xf32>
    %220 = math.rsqrt %219 : vector<48x1xf32>
    %221 = vector.broadcast %220 : vector<48x1xf32> to vector<48x64xf32>
    %222 = arith.mulf %211, %221 : vector<48x64xf32>
    %223 = vector.broadcast %212 : vector<1x64xf32> to vector<48x64xf32>
    %224 = arith.mulf %222, %223 : vector<48x64xf32>
    %225 = tpu.iota {dimensions = array<i32: 1>} : vector<2x24x24xi32>
    %226 = tpu.iota {dimensions = array<i32: 2>} : vector<2x24x24xi32>
    %227 = arith.cmpi sle, %226, %225 : vector<2x24x24xi32>
    %cst_95 = arith.constant 0.000000e+00 : f32
    %228 = vector.broadcast %cst_95 : f32 to vector<48x64xf32>
    %c496 = arith.constant 496 : index
    %c0_96 = arith.constant 0 : index
    %229 = vector.load %arg3[%c496, %c0_96] : memref<1072x128xbf16, #tpu.memory_space<vmem>>, vector<64x16xbf16>
    %230 = arith.truncf %224 : vector<48x64xf32> to vector<48x64xbf16>
    %cst_97 = arith.constant dense<0.000000e+00> : vector<48x16xf32>
    %231 = tpu.matmul %230, %229, %cst_97 {dimension_numbers = #tpu.dot_dimension_numbers<[1], [0], [0], [1], [0, 0, 1, 1], [], []>} : vector<48x64xbf16>, vector<64x16xbf16>, vector<48x16xf32> -> vector<48x16xf32>
    %232 = vector.shape_cast %231 : vector<48x16xf32> to vector<2x24x16xf32>
    %233 = arith.truncf %232 : vector<2x24x16xf32> to vector<2x24x16xbf16>
    %c560 = arith.constant 560 : index
    %c0_98 = arith.constant 0 : index
    %234 = vector.load %arg3[%c560, %c0_98] : memref<1072x128xbf16, #tpu.memory_space<vmem>>, vector<64x16xbf16>
    %235 = arith.truncf %224 : vector<48x64xf32> to vector<48x64xbf16>
    %cst_99 = arith.constant dense<0.000000e+00> : vector<48x16xf32>
    %236 = tpu.matmul %235, %234, %cst_99 {dimension_numbers = #tpu.dot_dimension_numbers<[1], [0], [0], [1], [0, 0, 1, 1], [], []>} : vector<48x64xbf16>, vector<64x16xbf16>, vector<48x16xf32> -> vector<48x16xf32>
    %237 = vector.shape_cast %236 : vector<48x16xf32> to vector<2x24x16xf32>
    %238 = arith.truncf %237 : vector<2x24x16xf32> to vector<2x24x16xbf16>
    %c624 = arith.constant 624 : index
    %c0_100 = arith.constant 0 : index
    %239 = vector.load %arg3[%c624, %c0_100] : memref<1072x128xbf16, #tpu.memory_space<vmem>>, vector<64x16xbf16>
    %240 = arith.truncf %224 : vector<48x64xf32> to vector<48x64xbf16>
    %cst_101 = arith.constant dense<0.000000e+00> : vector<48x16xf32>
    %241 = tpu.matmul %240, %239, %cst_101 {dimension_numbers = #tpu.dot_dimension_numbers<[1], [0], [0], [1], [0, 0, 1, 1], [], []>} : vector<48x64xbf16>, vector<64x16xbf16>, vector<48x16xf32> -> vector<48x16xf32>
    %242 = vector.shape_cast %241 : vector<48x16xf32> to vector<2x24x16xf32>
    %243 = arith.truncf %242 : vector<2x24x16xf32> to vector<2x24x16xbf16>
    "tpu.trace_start"() <{level = 10 : i32, message = "bqd,bkd->bqk"}> : () -> ()
    %cst_102 = arith.constant dense<0.000000e+00> : vector<2x24x24xf32>
    %244 = tpu.matmul %233, %238, %cst_102 {dimension_numbers = #tpu.dot_dimension_numbers<[2], [2], [1], [1], [0, 0, 0, 1, 1, 1], [0], [0]>} : vector<2x24x16xbf16>, vector<2x24x16xbf16>, vector<2x24x24xf32> -> vector<2x24x24xf32>
    "tpu.trace_stop"() : () -> ()
    %cst_103 = arith.constant 2.500000e-01 : f32
    %245 = vector.broadcast %cst_103 : f32 to vector<2x24x24xf32>
    %246 = arith.mulf %244, %245 : vector<2x24x24xf32>
    %cst_104 = arith.constant -1.000000e+30 : f32
    %247 = vector.broadcast %cst_104 : f32 to vector<2x24x24xf32>
    %248 = arith.select %227, %246, %247 : vector<2x24x24xi1>, vector<2x24x24xf32>
    %cst_105 = arith.constant dense<0xFF800000> : vector<2x24xf32>
    %249 = vector.multi_reduction <maximumf>, %248, %cst_105 [2] : vector<2x24x24xf32> to vector<2x24xf32>
    %250 = vector.shape_cast %249 : vector<2x24xf32> to vector<2x24x1xf32>
    %251 = vector.broadcast %250 : vector<2x24x1xf32> to vector<2x24x24xf32>
    %252 = arith.subf %248, %251 : vector<2x24x24xf32>
    %253 = math.exp %252 : vector<2x24x24xf32>
    %cst_106 = arith.constant dense<0.000000e+00> : vector<2x24xf32>
    %254 = vector.multi_reduction <add>, %253, %cst_106 [2] : vector<2x24x24xf32> to vector<2x24xf32>
    %255 = vector.shape_cast %254 : vector<2x24xf32> to vector<2x24x1xf32>
    %256 = tpu.reciprocal %255 {approx = true} : vector<2x24x1xf32> -> vector<2x24x1xf32>
    %257 = vector.broadcast %256 : vector<2x24x1xf32> to vector<2x24x24xf32>
    %258 = arith.mulf %253, %257 : vector<2x24x24xf32>
    %259 = arith.truncf %258 : vector<2x24x24xf32> to vector<2x24x24xbf16>
    "tpu.trace_start"() <{level = 10 : i32, message = "bqk,bkd->bqd"}> : () -> ()
    %cst_107 = arith.constant dense<0.000000e+00> : vector<2x24x16xf32>
    %260 = tpu.matmul %259, %243, %cst_107 {dimension_numbers = #tpu.dot_dimension_numbers<[2], [1], [1], [2], [0, 0, 0, 1, 1, 2], [0], [0]>} : vector<2x24x24xbf16>, vector<2x24x16xbf16>, vector<2x24x16xf32> -> vector<2x24x16xf32>
    "tpu.trace_stop"() : () -> ()
    %261 = vector.shape_cast %260 : vector<2x24x16xf32> to vector<48x16xf32>
    %c688 = arith.constant 688 : index
    %c0_108 = arith.constant 0 : index
    %262 = vector.load %arg3[%c688, %c0_108] : memref<1072x128xbf16, #tpu.memory_space<vmem>>, vector<16x64xbf16>
    %263 = arith.truncf %261 : vector<48x16xf32> to vector<48x16xbf16>
    %cst_109 = arith.constant dense<0.000000e+00> : vector<48x64xf32>
    %264 = tpu.matmul %263, %262, %cst_109 {dimension_numbers = #tpu.dot_dimension_numbers<[1], [0], [0], [1], [0, 0, 1, 1], [], []>} : vector<48x16xbf16>, vector<16x64xbf16>, vector<48x64xf32> -> vector<48x64xf32>
    %265 = arith.addf %228, %264 : vector<48x64xf32>
    %c496_110 = arith.constant 496 : index
    %c16_111 = arith.constant 16 : index
    %266 = vector.load %arg3[%c496_110, %c16_111] : memref<1072x128xbf16, #tpu.memory_space<vmem>>, vector<64x16xbf16>
    %267 = arith.truncf %224 : vector<48x64xf32> to vector<48x64xbf16>
    %cst_112 = arith.constant dense<0.000000e+00> : vector<48x16xf32>
    %268 = tpu.matmul %267, %266, %cst_112 {dimension_numbers = #tpu.dot_dimension_numbers<[1], [0], [0], [1], [0, 0, 1, 1], [], []>} : vector<48x64xbf16>, vector<64x16xbf16>, vector<48x16xf32> -> vector<48x16xf32>
    %269 = vector.shape_cast %268 : vector<48x16xf32> to vector<2x24x16xf32>
    %270 = arith.truncf %269 : vector<2x24x16xf32> to vector<2x24x16xbf16>
    %c560_113 = arith.constant 560 : index
    %c16_114 = arith.constant 16 : index
    %271 = vector.load %arg3[%c560_113, %c16_114] : memref<1072x128xbf16, #tpu.memory_space<vmem>>, vector<64x16xbf16>
    %272 = arith.truncf %224 : vector<48x64xf32> to vector<48x64xbf16>
    %cst_115 = arith.constant dense<0.000000e+00> : vector<48x16xf32>
    %273 = tpu.matmul %272, %271, %cst_115 {dimension_numbers = #tpu.dot_dimension_numbers<[1], [0], [0], [1], [0, 0, 1, 1], [], []>} : vector<48x64xbf16>, vector<64x16xbf16>, vector<48x16xf32> -> vector<48x16xf32>
    %274 = vector.shape_cast %273 : vector<48x16xf32> to vector<2x24x16xf32>
    %275 = arith.truncf %274 : vector<2x24x16xf32> to vector<2x24x16xbf16>
    %c624_116 = arith.constant 624 : index
    %c16_117 = arith.constant 16 : index
    %276 = vector.load %arg3[%c624_116, %c16_117] : memref<1072x128xbf16, #tpu.memory_space<vmem>>, vector<64x16xbf16>
    %277 = arith.truncf %224 : vector<48x64xf32> to vector<48x64xbf16>
    %cst_118 = arith.constant dense<0.000000e+00> : vector<48x16xf32>
    %278 = tpu.matmul %277, %276, %cst_118 {dimension_numbers = #tpu.dot_dimension_numbers<[1], [0], [0], [1], [0, 0, 1, 1], [], []>} : vector<48x64xbf16>, vector<64x16xbf16>, vector<48x16xf32> -> vector<48x16xf32>
    %279 = vector.shape_cast %278 : vector<48x16xf32> to vector<2x24x16xf32>
    %280 = arith.truncf %279 : vector<2x24x16xf32> to vector<2x24x16xbf16>
    "tpu.trace_start"() <{level = 10 : i32, message = "bqd,bkd->bqk"}> : () -> ()
    %cst_119 = arith.constant dense<0.000000e+00> : vector<2x24x24xf32>
    %281 = tpu.matmul %270, %275, %cst_119 {dimension_numbers = #tpu.dot_dimension_numbers<[2], [2], [1], [1], [0, 0, 0, 1, 1, 1], [0], [0]>} : vector<2x24x16xbf16>, vector<2x24x16xbf16>, vector<2x24x24xf32> -> vector<2x24x24xf32>
    "tpu.trace_stop"() : () -> ()
    %cst_120 = arith.constant 2.500000e-01 : f32
    %282 = vector.broadcast %cst_120 : f32 to vector<2x24x24xf32>
    %283 = arith.mulf %281, %282 : vector<2x24x24xf32>
    %cst_121 = arith.constant -1.000000e+30 : f32
    %284 = vector.broadcast %cst_121 : f32 to vector<2x24x24xf32>
    %285 = arith.select %227, %283, %284 : vector<2x24x24xi1>, vector<2x24x24xf32>
    %cst_122 = arith.constant dense<0xFF800000> : vector<2x24xf32>
    %286 = vector.multi_reduction <maximumf>, %285, %cst_122 [2] : vector<2x24x24xf32> to vector<2x24xf32>
    %287 = vector.shape_cast %286 : vector<2x24xf32> to vector<2x24x1xf32>
    %288 = vector.broadcast %287 : vector<2x24x1xf32> to vector<2x24x24xf32>
    %289 = arith.subf %285, %288 : vector<2x24x24xf32>
    %290 = math.exp %289 : vector<2x24x24xf32>
    %cst_123 = arith.constant dense<0.000000e+00> : vector<2x24xf32>
    %291 = vector.multi_reduction <add>, %290, %cst_123 [2] : vector<2x24x24xf32> to vector<2x24xf32>
    %292 = vector.shape_cast %291 : vector<2x24xf32> to vector<2x24x1xf32>
    %293 = tpu.reciprocal %292 {approx = true} : vector<2x24x1xf32> -> vector<2x24x1xf32>
    %294 = vector.broadcast %293 : vector<2x24x1xf32> to vector<2x24x24xf32>
    %295 = arith.mulf %290, %294 : vector<2x24x24xf32>
    %296 = arith.truncf %295 : vector<2x24x24xf32> to vector<2x24x24xbf16>
    "tpu.trace_start"() <{level = 10 : i32, message = "bqk,bkd->bqd"}> : () -> ()
    %cst_124 = arith.constant dense<0.000000e+00> : vector<2x24x16xf32>
    %297 = tpu.matmul %296, %280, %cst_124 {dimension_numbers = #tpu.dot_dimension_numbers<[2], [1], [1], [2], [0, 0, 0, 1, 1, 2], [0], [0]>} : vector<2x24x24xbf16>, vector<2x24x16xbf16>, vector<2x24x16xf32> -> vector<2x24x16xf32>
    "tpu.trace_stop"() : () -> ()
    %298 = vector.shape_cast %297 : vector<2x24x16xf32> to vector<48x16xf32>
    %c704 = arith.constant 704 : index
    %c0_125 = arith.constant 0 : index
    %299 = vector.load %arg3[%c704, %c0_125] : memref<1072x128xbf16, #tpu.memory_space<vmem>>, vector<16x64xbf16>
    %300 = arith.truncf %298 : vector<48x16xf32> to vector<48x16xbf16>
    %cst_126 = arith.constant dense<0.000000e+00> : vector<48x64xf32>
    %301 = tpu.matmul %300, %299, %cst_126 {dimension_numbers = #tpu.dot_dimension_numbers<[1], [0], [0], [1], [0, 0, 1, 1], [], []>} : vector<48x16xbf16>, vector<16x64xbf16>, vector<48x64xf32> -> vector<48x64xf32>
    %302 = arith.addf %265, %301 : vector<48x64xf32>
    %c496_127 = arith.constant 496 : index
    %c32 = arith.constant 32 : index
    %303 = vector.load %arg3[%c496_127, %c32] : memref<1072x128xbf16, #tpu.memory_space<vmem>>, vector<64x16xbf16>
    %304 = arith.truncf %224 : vector<48x64xf32> to vector<48x64xbf16>
    %cst_128 = arith.constant dense<0.000000e+00> : vector<48x16xf32>
    %305 = tpu.matmul %304, %303, %cst_128 {dimension_numbers = #tpu.dot_dimension_numbers<[1], [0], [0], [1], [0, 0, 1, 1], [], []>} : vector<48x64xbf16>, vector<64x16xbf16>, vector<48x16xf32> -> vector<48x16xf32>
    %306 = vector.shape_cast %305 : vector<48x16xf32> to vector<2x24x16xf32>
    %307 = arith.truncf %306 : vector<2x24x16xf32> to vector<2x24x16xbf16>
    %c560_129 = arith.constant 560 : index
    %c32_130 = arith.constant 32 : index
    %308 = vector.load %arg3[%c560_129, %c32_130] : memref<1072x128xbf16, #tpu.memory_space<vmem>>, vector<64x16xbf16>
    %309 = arith.truncf %224 : vector<48x64xf32> to vector<48x64xbf16>
    %cst_131 = arith.constant dense<0.000000e+00> : vector<48x16xf32>
    %310 = tpu.matmul %309, %308, %cst_131 {dimension_numbers = #tpu.dot_dimension_numbers<[1], [0], [0], [1], [0, 0, 1, 1], [], []>} : vector<48x64xbf16>, vector<64x16xbf16>, vector<48x16xf32> -> vector<48x16xf32>
    %311 = vector.shape_cast %310 : vector<48x16xf32> to vector<2x24x16xf32>
    %312 = arith.truncf %311 : vector<2x24x16xf32> to vector<2x24x16xbf16>
    %c624_132 = arith.constant 624 : index
    %c32_133 = arith.constant 32 : index
    %313 = vector.load %arg3[%c624_132, %c32_133] : memref<1072x128xbf16, #tpu.memory_space<vmem>>, vector<64x16xbf16>
    %314 = arith.truncf %224 : vector<48x64xf32> to vector<48x64xbf16>
    %cst_134 = arith.constant dense<0.000000e+00> : vector<48x16xf32>
    %315 = tpu.matmul %314, %313, %cst_134 {dimension_numbers = #tpu.dot_dimension_numbers<[1], [0], [0], [1], [0, 0, 1, 1], [], []>} : vector<48x64xbf16>, vector<64x16xbf16>, vector<48x16xf32> -> vector<48x16xf32>
    %316 = vector.shape_cast %315 : vector<48x16xf32> to vector<2x24x16xf32>
    %317 = arith.truncf %316 : vector<2x24x16xf32> to vector<2x24x16xbf16>
    "tpu.trace_start"() <{level = 10 : i32, message = "bqd,bkd->bqk"}> : () -> ()
    %cst_135 = arith.constant dense<0.000000e+00> : vector<2x24x24xf32>
    %318 = tpu.matmul %307, %312, %cst_135 {dimension_numbers = #tpu.dot_dimension_numbers<[2], [2], [1], [1], [0, 0, 0, 1, 1, 1], [0], [0]>} : vector<2x24x16xbf16>, vector<2x24x16xbf16>, vector<2x24x24xf32> -> vector<2x24x24xf32>
    "tpu.trace_stop"() : () -> ()
    %cst_136 = arith.constant 2.500000e-01 : f32
    %319 = vector.broadcast %cst_136 : f32 to vector<2x24x24xf32>
    %320 = arith.mulf %318, %319 : vector<2x24x24xf32>
    %cst_137 = arith.constant -1.000000e+30 : f32
    %321 = vector.broadcast %cst_137 : f32 to vector<2x24x24xf32>
    %322 = arith.select %227, %320, %321 : vector<2x24x24xi1>, vector<2x24x24xf32>
    %cst_138 = arith.constant dense<0xFF800000> : vector<2x24xf32>
    %323 = vector.multi_reduction <maximumf>, %322, %cst_138 [2] : vector<2x24x24xf32> to vector<2x24xf32>
    %324 = vector.shape_cast %323 : vector<2x24xf32> to vector<2x24x1xf32>
    %325 = vector.broadcast %324 : vector<2x24x1xf32> to vector<2x24x24xf32>
    %326 = arith.subf %322, %325 : vector<2x24x24xf32>
    %327 = math.exp %326 : vector<2x24x24xf32>
    %cst_139 = arith.constant dense<0.000000e+00> : vector<2x24xf32>
    %328 = vector.multi_reduction <add>, %327, %cst_139 [2] : vector<2x24x24xf32> to vector<2x24xf32>
    %329 = vector.shape_cast %328 : vector<2x24xf32> to vector<2x24x1xf32>
    %330 = tpu.reciprocal %329 {approx = true} : vector<2x24x1xf32> -> vector<2x24x1xf32>
    %331 = vector.broadcast %330 : vector<2x24x1xf32> to vector<2x24x24xf32>
    %332 = arith.mulf %327, %331 : vector<2x24x24xf32>
    %333 = arith.truncf %332 : vector<2x24x24xf32> to vector<2x24x24xbf16>
    "tpu.trace_start"() <{level = 10 : i32, message = "bqk,bkd->bqd"}> : () -> ()
    %cst_140 = arith.constant dense<0.000000e+00> : vector<2x24x16xf32>
    %334 = tpu.matmul %333, %317, %cst_140 {dimension_numbers = #tpu.dot_dimension_numbers<[2], [1], [1], [2], [0, 0, 0, 1, 1, 2], [0], [0]>} : vector<2x24x24xbf16>, vector<2x24x16xbf16>, vector<2x24x16xf32> -> vector<2x24x16xf32>
    "tpu.trace_stop"() : () -> ()
    %335 = vector.shape_cast %334 : vector<2x24x16xf32> to vector<48x16xf32>
    %c720 = arith.constant 720 : index
    %c0_141 = arith.constant 0 : index
    %336 = vector.load %arg3[%c720, %c0_141] : memref<1072x128xbf16, #tpu.memory_space<vmem>>, vector<16x64xbf16>
    %337 = arith.truncf %335 : vector<48x16xf32> to vector<48x16xbf16>
    %cst_142 = arith.constant dense<0.000000e+00> : vector<48x64xf32>
    %338 = tpu.matmul %337, %336, %cst_142 {dimension_numbers = #tpu.dot_dimension_numbers<[1], [0], [0], [1], [0, 0, 1, 1], [], []>} : vector<48x16xbf16>, vector<16x64xbf16>, vector<48x64xf32> -> vector<48x64xf32>
    %339 = arith.addf %302, %338 : vector<48x64xf32>
    %c496_143 = arith.constant 496 : index
    %c48_144 = arith.constant 48 : index
    %340 = vector.load %arg3[%c496_143, %c48_144] : memref<1072x128xbf16, #tpu.memory_space<vmem>>, vector<64x16xbf16>
    %341 = arith.truncf %224 : vector<48x64xf32> to vector<48x64xbf16>
    %cst_145 = arith.constant dense<0.000000e+00> : vector<48x16xf32>
    %342 = tpu.matmul %341, %340, %cst_145 {dimension_numbers = #tpu.dot_dimension_numbers<[1], [0], [0], [1], [0, 0, 1, 1], [], []>} : vector<48x64xbf16>, vector<64x16xbf16>, vector<48x16xf32> -> vector<48x16xf32>
    %343 = vector.shape_cast %342 : vector<48x16xf32> to vector<2x24x16xf32>
    %344 = arith.truncf %343 : vector<2x24x16xf32> to vector<2x24x16xbf16>
    %c560_146 = arith.constant 560 : index
    %c48_147 = arith.constant 48 : index
    %345 = vector.load %arg3[%c560_146, %c48_147] : memref<1072x128xbf16, #tpu.memory_space<vmem>>, vector<64x16xbf16>
    %346 = arith.truncf %224 : vector<48x64xf32> to vector<48x64xbf16>
    %cst_148 = arith.constant dense<0.000000e+00> : vector<48x16xf32>
    %347 = tpu.matmul %346, %345, %cst_148 {dimension_numbers = #tpu.dot_dimension_numbers<[1], [0], [0], [1], [0, 0, 1, 1], [], []>} : vector<48x64xbf16>, vector<64x16xbf16>, vector<48x16xf32> -> vector<48x16xf32>
    %348 = vector.shape_cast %347 : vector<48x16xf32> to vector<2x24x16xf32>
    %349 = arith.truncf %348 : vector<2x24x16xf32> to vector<2x24x16xbf16>
    %c624_149 = arith.constant 624 : index
    %c48_150 = arith.constant 48 : index
    %350 = vector.load %arg3[%c624_149, %c48_150] : memref<1072x128xbf16, #tpu.memory_space<vmem>>, vector<64x16xbf16>
    %351 = arith.truncf %224 : vector<48x64xf32> to vector<48x64xbf16>
    %cst_151 = arith.constant dense<0.000000e+00> : vector<48x16xf32>
    %352 = tpu.matmul %351, %350, %cst_151 {dimension_numbers = #tpu.dot_dimension_numbers<[1], [0], [0], [1], [0, 0, 1, 1], [], []>} : vector<48x64xbf16>, vector<64x16xbf16>, vector<48x16xf32> -> vector<48x16xf32>
    %353 = vector.shape_cast %352 : vector<48x16xf32> to vector<2x24x16xf32>
    %354 = arith.truncf %353 : vector<2x24x16xf32> to vector<2x24x16xbf16>
    "tpu.trace_start"() <{level = 10 : i32, message = "bqd,bkd->bqk"}> : () -> ()
    %cst_152 = arith.constant dense<0.000000e+00> : vector<2x24x24xf32>
    %355 = tpu.matmul %344, %349, %cst_152 {dimension_numbers = #tpu.dot_dimension_numbers<[2], [2], [1], [1], [0, 0, 0, 1, 1, 1], [0], [0]>} : vector<2x24x16xbf16>, vector<2x24x16xbf16>, vector<2x24x24xf32> -> vector<2x24x24xf32>
    "tpu.trace_stop"() : () -> ()
    %cst_153 = arith.constant 2.500000e-01 : f32
    %356 = vector.broadcast %cst_153 : f32 to vector<2x24x24xf32>
    %357 = arith.mulf %355, %356 : vector<2x24x24xf32>
    %cst_154 = arith.constant -1.000000e+30 : f32
    %358 = vector.broadcast %cst_154 : f32 to vector<2x24x24xf32>
    %359 = arith.select %227, %357, %358 : vector<2x24x24xi1>, vector<2x24x24xf32>
    %cst_155 = arith.constant dense<0xFF800000> : vector<2x24xf32>
    %360 = vector.multi_reduction <maximumf>, %359, %cst_155 [2] : vector<2x24x24xf32> to vector<2x24xf32>
    %361 = vector.shape_cast %360 : vector<2x24xf32> to vector<2x24x1xf32>
    %362 = vector.broadcast %361 : vector<2x24x1xf32> to vector<2x24x24xf32>
    %363 = arith.subf %359, %362 : vector<2x24x24xf32>
    %364 = math.exp %363 : vector<2x24x24xf32>
    %cst_156 = arith.constant dense<0.000000e+00> : vector<2x24xf32>
    %365 = vector.multi_reduction <add>, %364, %cst_156 [2] : vector<2x24x24xf32> to vector<2x24xf32>
    %366 = vector.shape_cast %365 : vector<2x24xf32> to vector<2x24x1xf32>
    %367 = tpu.reciprocal %366 {approx = true} : vector<2x24x1xf32> -> vector<2x24x1xf32>
    %368 = vector.broadcast %367 : vector<2x24x1xf32> to vector<2x24x24xf32>
    %369 = arith.mulf %364, %368 : vector<2x24x24xf32>
    %370 = arith.truncf %369 : vector<2x24x24xf32> to vector<2x24x24xbf16>
    "tpu.trace_start"() <{level = 10 : i32, message = "bqk,bkd->bqd"}> : () -> ()
    %cst_157 = arith.constant dense<0.000000e+00> : vector<2x24x16xf32>
    %371 = tpu.matmul %370, %354, %cst_157 {dimension_numbers = #tpu.dot_dimension_numbers<[2], [1], [1], [2], [0, 0, 0, 1, 1, 2], [0], [0]>} : vector<2x24x24xbf16>, vector<2x24x16xbf16>, vector<2x24x16xf32> -> vector<2x24x16xf32>
    "tpu.trace_stop"() : () -> ()
    %372 = vector.shape_cast %371 : vector<2x24x16xf32> to vector<48x16xf32>
    %c736 = arith.constant 736 : index
    %c0_158 = arith.constant 0 : index
    %373 = vector.load %arg3[%c736, %c0_158] : memref<1072x128xbf16, #tpu.memory_space<vmem>>, vector<16x64xbf16>
    %374 = arith.truncf %372 : vector<48x16xf32> to vector<48x16xbf16>
    %cst_159 = arith.constant dense<0.000000e+00> : vector<48x64xf32>
    %375 = tpu.matmul %374, %373, %cst_159 {dimension_numbers = #tpu.dot_dimension_numbers<[1], [0], [0], [1], [0, 0, 1, 1], [], []>} : vector<48x16xbf16>, vector<16x64xbf16>, vector<48x64xf32> -> vector<48x64xf32>
    %376 = arith.addf %339, %375 : vector<48x64xf32>
    %377 = arith.addf %211, %376 : vector<48x64xf32>
    %c14 = arith.constant 14 : index
    %c0_160 = arith.constant 0 : index
    %378 = vector.load %arg2[%c14, %c0_160] : memref<32x128xf32, #tpu.memory_space<vmem>>, vector<1x64xf32>
    %379 = arith.mulf %377, %377 : vector<48x64xf32>
    %cst_161 = arith.constant dense<0.000000e+00> : vector<48xf32>
    %380 = vector.multi_reduction <add>, %379, %cst_161 [1] : vector<48x64xf32> to vector<48xf32>
    %381 = vector.shape_cast %380 : vector<48xf32> to vector<48x1xf32>
    %cst_162 = arith.constant 6.400000e+01 : f32
    %382 = vector.broadcast %cst_162 : f32 to vector<48x1xf32>
    %383 = arith.divf %381, %382 : vector<48x1xf32>
    %cst_163 = arith.constant 9.99999997E-7 : f32
    %384 = vector.broadcast %cst_163 : f32 to vector<48x1xf32>
    %385 = arith.addf %383, %384 : vector<48x1xf32>
    %386 = math.rsqrt %385 : vector<48x1xf32>
    %387 = vector.broadcast %386 : vector<48x1xf32> to vector<48x64xf32>
    %388 = arith.mulf %377, %387 : vector<48x64xf32>
    %389 = vector.broadcast %378 : vector<1x64xf32> to vector<48x64xf32>
    %390 = arith.mulf %388, %389 : vector<48x64xf32>
    %c752 = arith.constant 752 : index
    %c0_164 = arith.constant 0 : index
    %391 = vector.load %arg3[%c752, %c0_164] : memref<1072x128xbf16, #tpu.memory_space<vmem>>, vector<64x128xbf16>
    %392 = arith.truncf %390 : vector<48x64xf32> to vector<48x64xbf16>
    %cst_165 = arith.constant dense<0.000000e+00> : vector<48x128xf32>
    %393 = tpu.matmul %392, %391, %cst_165 {dimension_numbers = #tpu.dot_dimension_numbers<[1], [0], [0], [1], [0, 0, 1, 1], [], []>} : vector<48x64xbf16>, vector<64x128xbf16>, vector<48x128xf32> -> vector<48x128xf32>
    %c816 = arith.constant 816 : index
    %c0_166 = arith.constant 0 : index
    %394 = vector.load %arg3[%c816, %c0_166] : memref<1072x128xbf16, #tpu.memory_space<vmem>>, vector<64x128xbf16>
    %395 = arith.truncf %390 : vector<48x64xf32> to vector<48x64xbf16>
    %cst_167 = arith.constant dense<0.000000e+00> : vector<48x128xf32>
    %396 = tpu.matmul %395, %394, %cst_167 {dimension_numbers = #tpu.dot_dimension_numbers<[1], [0], [0], [1], [0, 0, 1, 1], [], []>} : vector<48x64xbf16>, vector<64x128xbf16>, vector<48x128xf32> -> vector<48x128xf32>
    %397 = arith.negf %393 : vector<48x128xf32>
    %398 = math.exp %397 : vector<48x128xf32>
    %cst_168 = arith.constant 1.000000e+00 : f32
    %399 = vector.broadcast %cst_168 : f32 to vector<48x128xf32>
    %400 = arith.addf %399, %398 : vector<48x128xf32>
    %401 = arith.divf %399, %400 : vector<48x128xf32>
    %402 = arith.mulf %393, %401 : vector<48x128xf32>
    %403 = arith.mulf %402, %396 : vector<48x128xf32>
    %c880 = arith.constant 880 : index
    %c0_169 = arith.constant 0 : index
    %404 = vector.load %arg3[%c880, %c0_169] : memref<1072x128xbf16, #tpu.memory_space<vmem>>, vector<128x64xbf16>
    %405 = arith.truncf %403 : vector<48x128xf32> to vector<48x128xbf16>
    %cst_170 = arith.constant dense<0.000000e+00> : vector<48x64xf32>
    %406 = tpu.matmul %405, %404, %cst_170 {dimension_numbers = #tpu.dot_dimension_numbers<[1], [0], [0], [1], [0, 0, 1, 1], [], []>} : vector<48x128xbf16>, vector<128x64xbf16>, vector<48x64xf32> -> vector<48x64xf32>
    %407 = arith.addf %377, %406 : vector<48x64xf32>
    %408 = vector.shape_cast %407 : vector<48x64xf32> to vector<2x24x64xf32>
    %409 = vector.extract_strided_slice %408 {offsets = [0, 23, 0], sizes = [2, 1, 64], strides = [1, 1, 1]} : vector<2x24x64xf32> to vector<2x1x64xf32>
    %410 = vector.shape_cast %409 : vector<2x1x64xf32> to vector<2x64xf32>
    %c15 = arith.constant 15 : index
    %c0_171 = arith.constant 0 : index
    %411 = vector.load %arg2[%c15, %c0_171] : memref<32x128xf32, #tpu.memory_space<vmem>>, vector<1x64xf32>
    %412 = arith.mulf %410, %410 : vector<2x64xf32>
    %cst_172 = arith.constant dense<0.000000e+00> : vector<2xf32>
    %413 = vector.multi_reduction <add>, %412, %cst_172 [1] : vector<2x64xf32> to vector<2xf32>
    %414 = vector.shape_cast %413 : vector<2xf32> to vector<2x1xf32>
    %cst_173 = arith.constant 6.400000e+01 : f32
    %415 = vector.broadcast %cst_173 : f32 to vector<2x1xf32>
    %416 = arith.divf %414, %415 : vector<2x1xf32>
    %cst_174 = arith.constant 9.99999997E-7 : f32
    %417 = vector.broadcast %cst_174 : f32 to vector<2x1xf32>
    %418 = arith.addf %416, %417 : vector<2x1xf32>
    %419 = math.rsqrt %418 : vector<2x1xf32>
    %420 = vector.broadcast %419 : vector<2x1xf32> to vector<2x64xf32>
    %421 = arith.mulf %410, %420 : vector<2x64xf32>
    %422 = vector.broadcast %411 : vector<1x64xf32> to vector<2x64xf32>
    %423 = arith.mulf %421, %422 : vector<2x64xf32>
    %c1008 = arith.constant 1008 : index
    %c0_175 = arith.constant 0 : index
    %424 = vector.load %arg3[%c1008, %c0_175] : memref<1072x128xbf16, #tpu.memory_space<vmem>>, vector<64x128xbf16>
    %425 = arith.truncf %423 : vector<2x64xf32> to vector<2x64xbf16>
    %cst_176 = arith.constant dense<0.000000e+00> : vector<2x128xf32>
    %426 = tpu.matmul %425, %424, %cst_176 {dimension_numbers = #tpu.dot_dimension_numbers<[1], [0], [0], [1], [0, 0, 1, 1], [], []>} : vector<2x64xbf16>, vector<64x128xbf16>, vector<2x128xf32> -> vector<2x128xf32>
    %c0_177 = arith.constant 0 : index
    %c0_178 = arith.constant 0 : index
    %427 = vector.load %arg4[%c0_177, %c0_178] : memref<2x128xf32, #tpu.memory_space<vmem>>, vector<2x128xf32>
    tpu.vector_store %arg4[%c0_177, %c0_178], %426 {strides = array<i32>} : memref<2x128xf32, #tpu.memory_space<vmem>>, vector<2x128xf32>,
    %cst_179 = arith.constant dense<0xFF800000> : vector<2xf32>
    %428 = vector.multi_reduction <maximumf>, %426, %cst_179 [1] : vector<2x128xf32> to vector<2xf32>
    %429 = vector.shape_cast %428 : vector<2xf32> to vector<2x1xf32>
    %430 = tpu.iota {dimensions = array<i32: 1>} : vector<2x128xi32>
    %431 = vector.broadcast %429 : vector<2x1xf32> to vector<2x128xf32>
    %432 = arith.cmpf oeq, %426, %431 : vector<2x128xf32>
    %c128_i32 = arith.constant 128 : i32
    %433 = vector.broadcast %c128_i32 : i32 to vector<2x128xi32>
    %434 = arith.select %432, %430, %433 : vector<2x128xi1>, vector<2x128xi32>
    %cst_180 = arith.constant dense<2147483647> : vector<2xi32>
    %435 = vector.multi_reduction <minsi>, %434, %cst_180 [1] : vector<2x128xi32> to vector<2xi32>
    %436 = vector.shape_cast %435 : vector<2xi32> to vector<2x1xi32>
    %c0_181 = arith.constant 0 : index
    %c0_182 = arith.constant 0 : index
    %437 = vector.load %arg5[%c0_181, %c0_182] : memref<2x1xi32, #tpu.memory_space<vmem>>, vector<2x1xi32>
    tpu.vector_store %arg5[%c0_181, %c0_182], %436 {strides = array<i32>} : memref<2x1xi32, #tpu.memory_space<vmem>>, vector<2x1xi32>,
    return
  }
}

</mosaic_0001>

<llo_original>
// kernel: llava_generate_step.1
$region0: #{llava_generate_step.1}
  #allocation0 [shape = 'u32[]', space=smem, size = 0x4, offset = 0x4, fixed_abs, tag = 'smem constant byte address 0x4 - core index']
  #allocation1 [shape = 'u32[72,128]{1,0:T(1,128)}', space=vmem, size = 0x9000, scoped, tag = 'internal scratch']
  #allocation2 [shape = 'f32[2,24,64]{2,1,0:T(8,128)}', space=vmem, size = 0x6000, scoped, tag = 'scratch operand']
  %s0 = inlined_call_operand.vmem [shape: f32[32,48], index: 0, kind: input, shape index: {}]
  %s1 = inlined_call_operand.vmem [shape: s32[16,1], index: 1, kind: input, shape index: {}]
  %s2 = inlined_call_operand.vmem [shape: f32[32,128], index: 2, kind: input, shape index: {}]
  %s3 = inlined_call_operand.vmem [shape: bf16[1072,128], index: 3, kind: input, shape index: {}]
  %s4 = inlined_call_operand.hbm [shape: f32[2,128], index: 4, kind: output, shape index: {0}]
  %s5 = inlined_call_operand.vmem [shape: s32[2,1], index: 5, kind: output, shape index: {1}]
  %6 = xla_tuple %s4, %s5
  %s7 = sld [smem:[#allocation0]]
  $region34: #{llava_generate_step.1} parent=0
    _
  %s9 = ssub.s32 1, %s7
  %s10 = scalar_select 0, %s9, %s7
  $region1: #{llava_generate_step.1} parent=0
    #allocation3 [shape = 'u8[1024]{0}', space=vmem, size = 0x400, scoped, tag = 'output window, operand 0, single buffered']
    #allocation4 [shape = 's32[1]{0}', space=sflag, size = 0x4, scoped, tag = 'scoped memory for llava_generate_step.1']
    %11 = vsyncpa [#allocation4], 0
    // Predicated region
    $region2: #{llava_generate_step.1} parent=1 // pred_check
      _
    $region3: #{llava_generate_step.1} parent=1 // pred_check_branch
      %13 = sbr.rel (0) target = $region5
    $region4: #{llava_generate_step.1} parent=1 // pred_region
      _
    $region5: #{llava_generate_step.1} parent=1 // pred_fallthru
      _
    // Predicated region
    $region6: #{llava_generate_step.1} parent=1 // pred_check
      _
    $region7: #{llava_generate_step.1} parent=1 // pred_check_branch
      %15 = sbr.rel (0) target = $region9
    $region8: #{llava_generate_step.1} parent=1 // pred_region
      _
    $region9: #{llava_generate_step.1} parent=1 // pred_fallthru
      _
    // Predicated region
    $region10: #{llava_generate_step.1} parent=1 // pred_check
      _
    $region11: #{llava_generate_step.1} parent=1 // pred_check_branch
      %17 = sbr.rel (0) target = $region13
    $region12: #{llava_generate_step.1} parent=1 // pred_region
      _
    $region13: #{llava_generate_step.1} parent=1 // pred_fallthru
      _
    // Predicated region
    $region14: #{llava_generate_step.1} parent=1 // pred_check
      _
    $region15: #{llava_generate_step.1} parent=1 // pred_check_branch
      %19 = sbr.rel (0) target = $region17
    $region16: #{llava_generate_step.1} parent=1 // pred_region
      _
    $region17: #{llava_generate_step.1} parent=1 // pred_fallthru
      _
    %v21 = vld [vmem:[%s0] sm:$0xff]
    %v22 = vld [vmem:[%s0 + $0x8] sm:$0xff]
    %v23 = vld [vmem:[%s0 + $0x10] sm:$0xff]
    %v24 = vld [vmem:[%s0 + $0x18] sm:$0xff]
    %v25 = vld [vmem:[%s3] sm:$0xf]
    %v26 = vld [vmem:[%s3 + $0x4] sm:$0xf]
    %v27 = vld [vmem:[%s3 + $0x8] sm:$0xf]
    %v28 = vld [vmem:[%s3 + $0xc] sm:$0xf]
    %v29 = vld [vmem:[%s3 + $0x10] sm:$0xf]
    %v30 = vld [vmem:[%s3 + $0x14] sm:$0xf]
    %v31 = vpack.c.bf16 %v22, %v21
    %v32 = vpack.c.bf16 %v24, %v23
    %v33 = vld [vmem:[%s2] sm:$0x1]
    %v34 = vperm.slane %v33, 0
    %v41 = vunpack.c.l.b16 %v25
    %v42 = vunpack.c.l.b16 %v26
    %v43 = vunpack.c.l.b16 %v27
    %v44 = vunpack.c.l.b16 %v28
    %v45 = vunpack.c.l.b16 %v29
    %v46 = vunpack.c.l.b16 %v30
    %v47 = vpack.c.b16 %v42, %v41
    %v48 = vpack.c.b16 %v44, %v43
    %v49 = vpack.c.b16 %v46, %v45
    %vm53 = vcmask 392192
    %v55 = vsel %vm53, %v31, 0
    %v58 = vsel %vm53, %v32, 0
    %60 = vmatpush.bf16.msra.mxu0 0
    %61 = vmatpush.bf16.msra.mxu0 0
    %62 = vmatpush.bf16.msra.mxu0 0
    %63 = vmatpush.bf16.msra.mxu0 0
    %64 = vmatpush.bf16.msra.mxu0 0
    %65 = vmatpush.bf16.msra.mxu0 %v49
    %66 = vmatpush.bf16.msra.mxu0 %v48
    %67 = vmatpush.bf16.msra.mxu0 %v47
    %68 = vmatmul.bf16.gmra.mxu0 %v55
    %v69 = vpop.f32.mrf.mxu0
    %v70 = vadd.f32 %v34, %v69
    %v71 = vpop.f32.mrf.mxu0
    %v72 = vadd.f32 %v34, %v71
    %73 = vmatmul.bf16.gmra.mxu0 %v58
    %v74 = vpop.f32.mrf.mxu0
    %v75 = vadd.f32 %v34, %v74
    %v76 = vpop.f32.mrf.mxu0
    %v77 = vadd.f32 %v34, %v76
    %78 = vdwg.mxu0
    %v79 = vld [vmem:[%s2 + $0x10] sm:$0xff]
    %v80 = vld [vmem:[%s2 + $0x18] sm:$0xff]
    %v81 = vadd.f32 %v70, %v79
    %v82 = vadd.f32 %v72, %v80
    %v83 = vadd.f32 %v75, %v79
    %v84 = vadd.f32 %v77, %v80
    %v85 = vld [vmem:[%s2 + $0x1] sm:$0x1]
    %v86 = vld [vmem:[%s2 + $0x2] sm:$0x1]
    %vm87 = vcmask 261120
    %v88 = vsel %vm87, %v81, 0.0
    %89 = vadd.xlane.f32.xlu0 %v88
    %v90 = vpop.xlane.xlu0 %89
    %v91 = vsel %vm87, %v82, 0.0
    %92 = vadd.xlane.f32.xlu0 %v91
    %v93 = vpop.xlane.xlu0 %92
    %v94 = vsel %vm87, %v83, 0.0
    %95 = vadd.xlane.f32.xlu0 %v94
    %v96 = vpop.xlane.xlu0 %95
    %v97 = vsel %vm87, %v84, 0.0
    %98 = vadd.xlane.f32.xlu0 %v97
    %v99 = vpop.xlane.xlu0 %98
    %v100 = vrcp.pop 32.0
    %v101 = vmul.f32 32.0, %v100
    %v102 = vsub.f32 1.0, %v101
    %v103 = vmul.f32 %v100, %v102
    %v104 = vadd.f32 %v100, %v103
    %vm105 = vweird.f32 %v100
    %v106 = vsel %vm105, %v100, %v104
    %v107 = vmul.f32 %v90, %v106
    %v108 = vmul.f32 %v93, %v106
    %v109 = vmul.f32 %v96, %v106
    %v110 = vmul.f32 %v99, %v106
    %v111 = vsub.f32 %v81, %v107
    %v112 = vsub.f32 %v82, %v108
    %v113 = vsub.f32 %v83, %v109
    %v114 = vsub.f32 %v84, %v110
    %v115 = vmul.f32 %v111, %v111
    %v116 = vmul.f32 %v112, %v112
    %v117 = vmul.f32 %v113, %v113
    %v118 = vmul.f32 %v114, %v114
    %v119 = vsel %vm87, %v115, 0.0
    %120 = vadd.xlane.f32.xlu0 %v119
    %v121 = vpop.xlane.xlu0 %120
    %v122 = vsel %vm87, %v116, 0.0
    %123 = vadd.xlane.f32.xlu0 %v122
    %v124 = vpop.xlane.xlu0 %123
    %v125 = vsel %vm87, %v117, 0.0
    %126 = vadd.xlane.f32.xlu0 %v125
    %v127 = vpop.xlane.xlu0 %126
    %v128 = vsel %vm87, %v118, 0.0
    %129 = vadd.xlane.f32.xlu0 %v128
    %v130 = vpop.xlane.xlu0 %129
    %v131 = vmul.f32 %v121, %v106
    %v132 = vmul.f32 %v124, %v106
    %v133 = vmul.f32 %v127, %v106
    %v134 = vmul.f32 %v130, %v106
    %v135 = vadd.f32 %v131, 1e-05
    %v136 = vadd.f32 %v132, 1e-05
    %v137 = vadd.f32 %v133, 1e-05
    %v138 = vadd.f32 %v134, 1e-05
    %v139 = vrsqrt.pop %v135
    %v140 = vmul.f32 %v139, %v135
    %v141 = vmul.f32 %v140, %v139
    %v142 = vmul.f32 0.5, %v141
    %v143 = vsub.f32 1.5, %v142
    %v144 = vmul.f32 %v139, %v143
    %vm145 = vweird.f32 %v135
    %vm146 = vweird.f32 %v139
    %vm147 = vmor %vm145, %vm146
    %v148 = vsel %vm147, %v139, %v144
    %v149 = vrsqrt.pop %v136
    %v150 = vmul.f32 %v149, %v136
    %v151 = vmul.f32 %v150, %v149
    %v152 = vmul.f32 0.5, %v151
    %v153 = vsub.f32 1.5, %v152
    %v154 = vmul.f32 %v149, %v153
    %vm155 = vweird.f32 %v136
    %vm156 = vweird.f32 %v149
    %vm157 = vmor %vm155, %vm156
    %v158 = vsel %vm157, %v149, %v154
    %v159 = vrsqrt.pop %v137
    %v160 = vmul.f32 %v159, %v137
    %v161 = vmul.f32 %v160, %v159
    %v162 = vmul.f32 0.5, %v161
    %v163 = vsub.f32 1.5, %v162
    %v164 = vmul.f32 %v159, %v163
    %vm165 = vweird.f32 %v137
    %vm166 = vweird.f32 %v159
    %vm167 = vmor %vm165, %vm166
    %v168 = vsel %vm167, %v159, %v164
    %v169 = vrsqrt.pop %v138
    %v170 = vmul.f32 %v169, %v138
    %v171 = vmul.f32 %v170, %v169
    %v172 = vmul.f32 0.5, %v171
    %v173 = vsub.f32 1.5, %v172
    %v174 = vmul.f32 %v169, %v173
    %vm175 = vweird.f32 %v138
    %vm176 = vweird.f32 %v169
    %vm177 = vmor %vm175, %vm176
    %v178 = vsel %vm177, %v169, %v174
    %v179 = vmul.f32 %v111, %v148
    %v180 = vmul.f32 %v112, %v158
    %v181 = vmul.f32 %v113, %v168
    %v182 = vmul.f32 %v114, %v178
    %v183 = vperm.slane %v85, 0
    %v184 = vmul.f32 %v179, %v183
    %v185 = vmul.f32 %v180, %v183
    %v186 = vmul.f32 %v181, %v183
    %v187 = vmul.f32 %v182, %v183
    %v188 = vperm.slane %v86, 0
    %v189 = vadd.f32 %v184, %v188
    %v190 = vadd.f32 %v185, %v188
    %v191 = vadd.f32 %v186, %v188
    %v192 = vadd.f32 %v187, %v188
    %v193 = vld [vmem:[%s3 + $0x18] sm:$0xf]
    %v194 = vld [vmem:[%s3 + $0x1c] sm:$0xf]
    %v195 = vld [vmem:[%s3 + $0x20] sm:$0xf]
    %v196 = vld [vmem:[%s3 + $0x24] sm:$0xf]
    %v197 = vpack.c.bf16 %v190, %v189
    %v198 = vpack.c.bf16 %v192, %v191
    %v199 = vld [vmem:[%s2 + $0x3] sm:$0x1]
    %v200 = vperm.slane %v199, 0
    %v205 = vunpack.c.l.b16 %v193
    %v206 = vunpack.c.l.b16 %v194
    %v207 = vunpack.c.l.b16 %v195
    %v208 = vunpack.c.l.b16 %v196
    %v209 = vpack.c.b16 %v206, %v205
    %v210 = vpack.c.b16 %v208, %v207
    %v214 = vsel %vm87, %v197, 0
    %v217 = vsel %vm87, %v198, 0
    %219 = vmatpush.bf16.msra.mxu0 0
    %220 = vmatpush.bf16.msra.mxu0 0
    %221 = vmatpush.bf16.msra.mxu0 0
    %222 = vmatpush.bf16.msra.mxu0 0
    %223 = vmatpush.bf16.msra.mxu0 0
    %224 = vmatpush.bf16.msra.mxu0 0
    %225 = vmatpush.bf16.msra.mxu0 %v210
    %226 = vmatpush.bf16.msra.mxu0 %v209
    %227 = vmatmul.bf16.gmra.mxu0 %v214
    %v228 = vpop.f32.mrf.mxu0
    %v229 = vadd.f32 %v200, %v228
    %v230 = vpop.f32.mrf.mxu0
    %v231 = vadd.f32 %v200, %v230
    %232 = vmatmul.bf16.gmra.mxu0 %v217
    %v233 = vpop.f32.mrf.mxu0
    %v234 = vadd.f32 %v200, %v233
    %v235 = vpop.f32.mrf.mxu0
    %v236 = vadd.f32 %v200, %v235
    %237 = vdwg.mxu0
    %v238 = vld [vmem:[%s3 + $0x28] sm:$0xf]
    %v239 = vld [vmem:[%s3 + $0x2c] sm:$0xf]
    %v240 = vld [vmem:[%s3 + $0x30] sm:$0xf]
    %v241 = vld [vmem:[%s3 + $0x34] sm:$0xf]
    %v242 = vld [vmem:[%s2 + $0x4] sm:$0x1]
    %v243 = vperm.slane %v242, 0
    %v248 = vunpack.c.l.b16 %v238
    %v249 = vunpack.c.l.b16 %v239
    %v250 = vunpack.c.l.b16 %v240
    %v251 = vunpack.c.l.b16 %v241
    %v252 = vpack.c.b16 %v249, %v248
    %v253 = vpack.c.b16 %v251, %v250
    %256 = vmatpush.bf16.msra.mxu0 0
    %257 = vmatpush.bf16.msra.mxu0 0
    %258 = vmatpush.bf16.msra.mxu0 0
    %259 = vmatpush.bf16.msra.mxu0 0
    %260 = vmatpush.bf16.msra.mxu0 0
    %261 = vmatpush.bf16.msra.mxu0 0
    %262 = vmatpush.bf16.msra.mxu0 %v253
    %263 = vmatpush.bf16.msra.mxu0 %v252
    %264 = vmatmul.bf16.gmra.mxu0 %v214
    %v265 = vpop.f32.mrf.mxu0
    %v266 = vadd.f32 %v243, %v265
    %v267 = vpop.f32.mrf.mxu0
    %v268 = vadd.f32 %v243, %v267
    %269 = vmatmul.bf16.gmra.mxu0 %v217
    %v270 = vpop.f32.mrf.mxu0
    %v271 = vadd.f32 %v243, %v270
    %v272 = vpop.f32.mrf.mxu0
    %v273 = vadd.f32 %v243, %v272
    %274 = vdwg.mxu0
    %v275 = vld [vmem:[%s3 + $0x38] sm:$0xf]
    %v276 = vld [vmem:[%s3 + $0x3c] sm:$0xf]
    %v277 = vld [vmem:[%s3 + $0x40] sm:$0xf]
    %v278 = vld [vmem:[%s3 + $0x44] sm:$0xf]
    %v279 = vld [vmem:[%s2 + $0x5] sm:$0x1]
    %v280 = vperm.slane %v279, 0
    %v285 = vunpack.c.l.b16 %v275
    %v286 = vunpack.c.l.b16 %v276
    %v287 = vunpack.c.l.b16 %v277
    %v288 = vunpack.c.l.b16 %v278
    %v289 = vpack.c.b16 %v286, %v285
    %v290 = vpack.c.b16 %v288, %v287
    %293 = vmatpush.bf16.msra.mxu0 0
    %294 = vmatpush.bf16.msra.mxu0 0
    %295 = vmatpush.bf16.msra.mxu0 0
    %296 = vmatpush.bf16.msra.mxu0 0
    %297 = vmatpush.bf16.msra.mxu0 0
    %298 = vmatpush.bf16.msra.mxu0 0
    %299 = vmatpush.bf16.msra.mxu0 %v290
    %300 = vmatpush.bf16.msra.mxu0 %v289
    %301 = vmatmul.bf16.gmra.mxu0 %v214
    %v302 = vpop.f32.mrf.mxu0
    %v303 = vadd.f32 %v280, %v302
    %v304 = vpop.f32.mrf.mxu0
    %v305 = vadd.f32 %v280, %v304
    %306 = vmatmul.bf16.gmra.mxu0 %v217
    %v307 = vpop.f32.mrf.mxu0
    %v308 = vadd.f32 %v280, %v307
    %v309 = vpop.f32.mrf.mxu0
    %v310 = vadd.f32 %v280, %v309
    %311 = vdwg.mxu0
    %v312 = vpack.c.bf16 %v229, %v229
    %v313 = vpack.c.bf16 %v231, %v231
    %v314 = vpack.c.bf16 %v234, %v234
    %v315 = vpack.c.bf16 %v236, %v236
    %v316 = vpack.c.bf16 %v266, %v266
    %v317 = vpack.c.bf16 %v268, %v268
    %v318 = vpack.c.bf16 %v271, %v271
    %v319 = vpack.c.bf16 %v273, %v273
    %v320 = vpack.c.bf16 %v303, %v303
    %v321 = vpack.c.bf16 %v305, %v305
    %v322 = vpack.c.bf16 %v308, %v308
    %v323 = vpack.c.bf16 %v310, %v310
    %v326 = vunpack.c.l.b16 %v312
    %v327 = vunpack.c.l.b16 %v313
    %v328 = vpack.c.b16 %v327, %v326
    %v331 = vunpack.c.l.b16 %v316
    %v332 = vunpack.c.l.b16 %v317
    %v333 = vpack.c.b16 %v332, %v331
    %vm334 = vcmask 130048
    %v336 = vsel %vm334, %v328, 0
    %v339 = vsel %vm334, %v333, 0
    %341 = vmatpush.bf16.xpose.msra.mxu0 0
    %342 = vmatpush.bf16.xpose.msra.mxu0 0
    %343 = vmatpush.bf16.xpose.msra.mxu0 0
    %344 = vmatpush.bf16.xpose.msra.mxu0 0
    %345 = vmatpush.bf16.xpose.msra.mxu0 0
    %346 = vmatpush.bf16.xpose.msra.mxu0 0
    %347 = vmatpush.bf16.xpose.msra.mxu0 0
    %348 = vmatpush.bf16.xpose.msra.mxu0 %v339
    %349 = vmatmul.bf16.gmra.mxu0 %v336
    %v350 = vpop.f32.mrf.mxu0
    %v351 = vadd.f32 0.0, %v350
    %v352 = vpop.f32.mrf.mxu0
    %v353 = vadd.f32 0.0, %v352
    %354 = vdwg.mxu0
    %v357 = vunpack.c.l.b16 %v314
    %v358 = vunpack.c.l.b16 %v315
    %v359 = vpack.c.b16 %v358, %v357
    %v362 = vunpack.c.l.b16 %v318
    %v363 = vunpack.c.l.b16 %v319
    %v364 = vpack.c.b16 %v363, %v362
    %v366 = vsel %vm334, %v359, 0
    %v369 = vsel %vm334, %v364, 0
    %371 = vmatpush.bf16.xpose.msra.mxu0 0
    %372 = vmatpush.bf16.xpose.msra.mxu0 0
    %373 = vmatpush.bf16.xpose.msra.mxu0 0
    %374 = vmatpush.bf16.xpose.msra.mxu0 0
    %375 = vmatpush.bf16.xpose.msra.mxu0 0
    %376 = vmatpush.bf16.xpose.msra.mxu0 0
    %377 = vmatpush.bf16.xpose.msra.mxu0 0
    %378 = vmatpush.bf16.xpose.msra.mxu0 %v369
    %379 = vmatmul.bf16.gmra.mxu0 %v366
    %v380 = vpop.f32.mrf.mxu0
    %v381 = vadd.f32 0.0, %v380
    %v382 = vpop.f32.mrf.mxu0
    %v383 = vadd.f32 0.0, %v382
    %384 = vdwg.mxu0
    %v385 = vmul.f32 %v351, 0.25
    %v386 = vmul.f32 %v353, 0.25
    %v387 = vmul.f32 %v381, 0.25
    %v388 = vmul.f32 %v383, 0.25
    %v389 = vsel %vm334, %v385, -inf
    %390 = vmax.xlane.f32.xlu0 %v389
    %v391 = vpop.xlane.xlu0 %390
    %v392 = vsel %vm334, %v386, -inf
    %393 = vmax.xlane.f32.xlu0 %v392
    %v394 = vpop.xlane.xlu0 %393
    %v395 = vsel %vm334, %v387, -inf
    %396 = vmax.xlane.f32.xlu0 %v395
    %v397 = vpop.xlane.xlu0 %396
    %v398 = vsel %vm334, %v388, -inf
    %399 = vmax.xlane.f32.xlu0 %v398
    %v400 = vpop.xlane.xlu0 %399
    %v401 = vsub.f32 %v385, %v391
    %v402 = vsub.f32 %v386, %v394
    %v403 = vsub.f32 %v387, %v397
    %v404 = vsub.f32 %v388, %v400
    %v405 = vmul.f32 %v401, 1.442695
    %v406 = vpow.pop %v405
    %v407 = vmul.f32 %v402, 1.442695
    %v408 = vpow.pop %v407
    %v409 = vmul.f32 %v403, 1.442695
    %v410 = vpow.pop %v409
    %v411 = vmul.f32 %v404, 1.442695
    %v412 = vpow.pop %v411
    %v413 = vsel %vm334, %v406, 0.0
    %414 = vadd.xlane.f32.xlu0 %v413
    %v415 = vpop.xlane.xlu0 %414
    %v416 = vsel %vm334, %v408, 0.0
    %417 = vadd.xlane.f32.xlu0 %v416
    %v418 = vpop.xlane.xlu0 %417
    %v419 = vsel %vm334, %v410, 0.0
    %420 = vadd.xlane.f32.xlu0 %v419
    %v421 = vpop.xlane.xlu0 %420
    %v422 = vsel %vm334, %v412, 0.0
    %423 = vadd.xlane.f32.xlu0 %v422
    %v424 = vpop.xlane.xlu0 %423
    %v425 = vrcp.pop %v415
    %v426 = vrcp.pop %v418
    %v427 = vrcp.pop %v421
    %v428 = vrcp.pop %v424
    %v429 = vmul.f32 %v406, %v425
    %v430 = vmul.f32 %v408, %v426
    %v431 = vmul.f32 %v410, %v427
    %v432 = vmul.f32 %v412, %v428
    %v433 = vpack.c.bf16 %v429, %v429
    %v434 = vpack.c.bf16 %v430, %v430
    %v435 = vpack.c.bf16 %v431, %v431
    %v436 = vpack.c.bf16 %v432, %v432
    %v439 = vunpack.c.l.b16 %v433
    %v440 = vunpack.c.l.b16 %v434
    %v441 = vpack.c.b16 %v440, %v439
    %v444 = vunpack.c.l.b16 %v320
    %v445 = vunpack.c.l.b16 %v321
    %v446 = vpack.c.b16 %v445, %v444
    %v449 = vsel %vm334, %v441, 0
    %451 = vmatpush.bf16.msra.mxu0 0
    %452 = vmatpush.bf16.msra.mxu0 0
    %453 = vmatpush.bf16.msra.mxu0 0
    %454 = vmatpush.bf16.msra.mxu0 0
    %455 = vmatpush.bf16.msra.mxu0 0
    %456 = vmatpush.bf16.msra.mxu0 0
    %457 = vmatpush.bf16.msra.mxu0 0
    %458 = vmatpush.bf16.msra.mxu0 %v446
    %459 = vmatmul.bf16.gmra.mxu0 %v449
    %v460 = vpop.f32.mrf.mxu0
    %v461 = vadd.f32 0.0, %v460
    %v462 = vpop.f32.mrf.mxu0
    %v463 = vadd.f32 0.0, %v462
    %464 = vdwg.mxu0
    %v467 = vunpack.c.l.b16 %v435
    %v468 = vunpack.c.l.b16 %v436
    %v469 = vpack.c.b16 %v468, %v467
    %v472 = vunpack.c.l.b16 %v322
    %v473 = vunpack.c.l.b16 %v323
    %v474 = vpack.c.b16 %v473, %v472
    %v477 = vsel %vm334, %v469, 0
    %479 = vmatpush.bf16.msra.mxu0 0
    %480 = vmatpush.bf16.msra.mxu0 0
    %481 = vmatpush.bf16.msra.mxu0 0
    %482 = vmatpush.bf16.msra.mxu0 0
    %483 = vmatpush.bf16.msra.mxu0 0
    %484 = vmatpush.bf16.msra.mxu0 0
    %485 = vmatpush.bf16.msra.mxu0 0
    %486 = vmatpush.bf16.msra.mxu0 %v474
    %487 = vmatmul.bf16.gmra.mxu0 %v477
    %v488 = vpop.f32.mrf.mxu0
    %v489 = vadd.f32 0.0, %v488
    %v490 = vpop.f32.mrf.mxu0
    %v491 = vadd.f32 0.0, %v490
    %492 = vdwg.mxu0
    %v493 = vld [vmem:[%s3 + $0x48] sm:$0xf]
    %v494 = vld [vmem:[%s3 + $0x4c] sm:$0xf]
    %v495 = vpack.c.bf16 %v463, %v461
    %v496 = vpack.c.bf16 %v491, %v489
    %v497 = vld [vmem:[%s3 + $0x18] sm:$0xf]
    %v498 = vld [vmem:[%s3 + $0x1c] sm:$0xf]
    %v499 = vld [vmem:[%s3 + $0x20] sm:$0xf]
    %v500 = vld [vmem:[%s3 + $0x24] sm:$0xf]
    %v501 = vld [vmem:[%s2 + $0x3] sm:$0x1]
    %v502 = vperm.slane %v501, 0
    %v507 = vunpack.c.l.b16 %v497
    %v508 = vunpack.c.l.b16 %v498
    %v509 = vunpack.c.l.b16 %v499
    %v510 = vunpack.c.l.b16 %v500
    %v511 = vpack.c.b16 %v508, %v507
    %v512 = vpack.c.b16 %v510, %v509
    %513 = vrot.lane.b32.xlu0 %v511, 112
    %v514 = vpop.permute.xlu0 %513
    %515 = vrot.lane.b32.xlu0 %v512, 112
    %v516 = vpop.permute.xlu0 %515
    %520 = vrot.lane.b32.xlu0 %v502, 112
    %v521 = vpop.permute.xlu0 %520
    %523 = vmatpush.bf16.msra.mxu0 0
    %524 = vmatpush.bf16.msra.mxu0 0
    %525 = vmatpush.bf16.msra.mxu0 0
    %526 = vmatpush.bf16.msra.mxu0 0
    %527 = vmatpush.bf16.msra.mxu0 0
    %528 = vmatpush.bf16.msra.mxu0 0
    %529 = vmatpush.bf16.msra.mxu0 %v516
    %530 = vmatpush.bf16.msra.mxu0 %v514
    %531 = vmatmul.bf16.gmra.mxu0 %v214
    %v532 = vpop.f32.mrf.mxu0
    %v533 = vadd.f32 %v521, %v532
    %v534 = vpop.f32.mrf.mxu0
    %v535 = vadd.f32 %v521, %v534
    %536 = vmatmul.bf16.gmra.mxu0 %v217
    %v537 = vpop.f32.mrf.mxu0
    %v538 = vadd.f32 %v521, %v537
    %v539 = vpop.f32.mrf.mxu0
    %v540 = vadd.f32 %v521, %v539
    %541 = vdwg.mxu0
    %v542 = vld [vmem:[%s3 + $0x28] sm:$0xf]
    %v543 = vld [vmem:[%s3 + $0x2c] sm:$0xf]
    %v544 = vld [vmem:[%s3 + $0x30] sm:$0xf]
    %v545 = vld [vmem:[%s3 + $0x34] sm:$0xf]
    %v546 = vld [vmem:[%s2 + $0x4] sm:$0x1]
    %v547 = vperm.slane %v546, 0
    %v552 = vunpack.c.l.b16 %v542
    %v553 = vunpack.c.l.b16 %v543
    %v554 = vunpack.c.l.b16 %v544
    %v555 = vunpack.c.l.b16 %v545
    %v556 = vpack.c.b16 %v553, %v552
    %v557 = vpack.c.b16 %v555, %v554
    %558 = vrot.lane.b32.xlu0 %v556, 112
    %v559 = vpop.permute.xlu0 %558
    %560 = vrot.lane.b32.xlu0 %v557, 112
    %v561 = vpop.permute.xlu0 %560
    %565 = vrot.lane.b32.xlu0 %v547, 112
    %v566 = vpop.permute.xlu0 %565
    %568 = vmatpush.bf16.msra.mxu0 0
    %569 = vmatpush.bf16.msra.mxu0 0
    %570 = vmatpush.bf16.msra.mxu0 0
    %571 = vmatpush.bf16.msra.mxu0 0
    %572 = vmatpush.bf16.msra.mxu0 0
    %573 = vmatpush.bf16.msra.mxu0 0
    %574 = vmatpush.bf16.msra.mxu0 %v561
    %575 = vmatpush.bf16.msra.mxu0 %v559
    %576 = vmatmul.bf16.gmra.mxu0 %v214
    %v577 = vpop.f32.mrf.mxu0
    %v578 = vadd.f32 %v566, %v577
    %v579 = vpop.f32.mrf.mxu0
    %v580 = vadd.f32 %v566, %v579
    %581 = vmatmul.bf16.gmra.mxu0 %v217
    %v582 = vpop.f32.mrf.mxu0
    %v583 = vadd.f32 %v566, %v582
    %v584 = vpop.f32.mrf.mxu0
    %v585 = vadd.f32 %v566, %v584
    %586 = vdwg.mxu0
    %v587 = vld [vmem:[%s3 + $0x38] sm:$0xf]
    %v588 = vld [vmem:[%s3 + $0x3c] sm:$0xf]
    %v589 = vld [vmem:[%s3 + $0x40] sm:$0xf]
    %v590 = vld [vmem:[%s3 + $0x44] sm:$0xf]
    %v591 = vld [vmem:[%s2 + $0x5] sm:$0x1]
    %v592 = vperm.slane %v591, 0
    %v597 = vunpack.c.l.b16 %v587
    %v598 = vunpack.c.l.b16 %v588
    %v599 = vunpack.c.l.b16 %v589
    %v600 = vunpack.c.l.b16 %v590
    %v601 = vpack.c.b16 %v598, %v597
    %v602 = vpack.c.b16 %v600, %v599
    %603 = vrot.lane.b32.xlu0 %v601, 112
    %v604 = vpop.permute.xlu0 %603
    %605 = vrot.lane.b32.xlu0 %v602, 112
    %v606 = vpop.permute.xlu0 %605
    %610 = vrot.lane.b32.xlu0 %v592, 112
    %v611 = vpop.permute.xlu0 %610
    %613 = vmatpush.bf16.msra.mxu0 0
    %614 = vmatpush.bf16.msra.mxu0 0
    %615 = vmatpush.bf16.msra.mxu0 0
    %616 = vmatpush.bf16.msra.mxu0 0
    %617 = vmatpush.bf16.msra.mxu0 0
    %618 = vmatpush.bf16.msra.mxu0 0
    %619 = vmatpush.bf16.msra.mxu0 %v606
    %620 = vmatpush.bf16.msra.mxu0 %v604
    %621 = vmatmul.bf16.gmra.mxu0 %v214
    %v622 = vpop.f32.mrf.mxu0
    %v623 = vadd.f32 %v611, %v622
    %v624 = vpop.f32.mrf.mxu0
    %v625 = vadd.f32 %v611, %v624
    %626 = vmatmul.bf16.gmra.mxu0 %v217
    %v627 = vpop.f32.mrf.mxu0
    %v628 = vadd.f32 %v611, %v627
    %v629 = vpop.f32.mrf.mxu0
    %v630 = vadd.f32 %v611, %v629
    %631 = vdwg.mxu0
    %v632 = vpack.c.bf16 %v533, %v533
    %v633 = vpack.c.bf16 %v535, %v535
    %v634 = vpack.c.bf16 %v538, %v538
    %v635 = vpack.c.bf16 %v540, %v540
    %v636 = vpack.c.bf16 %v578, %v578
    %v637 = vpack.c.bf16 %v580, %v580
    %v638 = vpack.c.bf16 %v583, %v583
    %v639 = vpack.c.bf16 %v585, %v585
    %v640 = vpack.c.bf16 %v623, %v623
    %v641 = vpack.c.bf16 %v625, %v625
    %v642 = vpack.c.bf16 %v628, %v628
    %v643 = vpack.c.bf16 %v630, %v630
    %v646 = vunpack.c.l.b16 %v632
    %v647 = vunpack.c.l.b16 %v633
    %v648 = vpack.c.b16 %v647, %v646
    %v651 = vunpack.c.l.b16 %v636
    %v652 = vunpack.c.l.b16 %v637
    %v653 = vpack.c.b16 %v652, %v651
    %v655 = vsel %vm334, %v648, 0
    %v658 = vsel %vm334, %v653, 0
    %660 = vmatpush.bf16.xpose.msra.mxu0 0
    %661 = vmatpush.bf16.xpose.msra.mxu0 0
    %662 = vmatpush.bf16.xpose.msra.mxu0 0
    %663 = vmatpush.bf16.xpose.msra.mxu0 0
    %664 = vmatpush.bf16.xpose.msra.mxu0 0
    %665 = vmatpush.bf16.xpose.msra.mxu0 0
    %666 = vmatpush.bf16.xpose.msra.mxu0 0
    %667 = vmatpush.bf16.xpose.msra.mxu0 %v658
    %668 = vmatmul.bf16.gmra.mxu0 %v655
    %v669 = vpop.f32.mrf.mxu0
    %v670 = vadd.f32 0.0, %v669
    %v671 = vpop.f32.mrf.mxu0
    %v672 = vadd.f32 0.0, %v671
    %673 = vdwg.mxu0
    %v676 = vunpack.c.l.b16 %v634
    %v677 = vunpack.c.l.b16 %v635
    %v678 = vpack.c.b16 %v677, %v676
    %v681 = vunpack.c.l.b16 %v638
    %v682 = vunpack.c.l.b16 %v639
    %v683 = vpack.c.b16 %v682, %v681
    %v685 = vsel %vm334, %v678, 0
    %v688 = vsel %vm334, %v683, 0
    %690 = vmatpush.bf16.xpose.msra.mxu0 0
    %691 = vmatpush.bf16.xpose.msra.mxu0 0
    %692 = vmatpush.bf16.xpose.msra.mxu0 0
    %693 = vmatpush.bf16.xpose.msra.mxu0 0
    %694 = vmatpush.bf16.xpose.msra.mxu0 0
    %695 = vmatpush.bf16.xpose.msra.mxu0 0
    %696 = vmatpush.bf16.xpose.msra.mxu0 0
    %697 = vmatpush.bf16.xpose.msra.mxu0 %v688
    %698 = vmatmul.bf16.gmra.mxu0 %v685
    %v699 = vpop.f32.mrf.mxu0
    %v700 = vadd.f32 0.0, %v699
    %v701 = vpop.f32.mrf.mxu0
    %v702 = vadd.f32 0.0, %v701
    %703 = vdwg.mxu0
    %v704 = vmul.f32 %v670, 0.25
    %v705 = vmul.f32 %v672, 0.25
    %v706 = vmul.f32 %v700, 0.25
    %v707 = vmul.f32 %v702, 0.25
    %v708 = vsel %vm334, %v704, -inf
    %709 = vmax.xlane.f32.xlu0 %v708
    %v710 = vpop.xlane.xlu0 %709
    %v711 = vsel %vm334, %v705, -inf
    %712 = vmax.xlane.f32.xlu0 %v711
    %v713 = vpop.xlane.xlu0 %712
    %v714 = vsel %vm334, %v706, -inf
    %715 = vmax.xlane.f32.xlu0 %v714
    %v716 = vpop.xlane.xlu0 %715
    %v717 = vsel %vm334, %v707, -inf
    %718 = vmax.xlane.f32.xlu0 %v717
    %v719 = vpop.xlane.xlu0 %718
    %v720 = vsub.f32 %v704, %v710
    %v721 = vsub.f32 %v705, %v713
    %v722 = vsub.f32 %v706, %v716
    %v723 = vsub.f32 %v707, %v719
    %v724 = vmul.f32 %v720, 1.442695
    %v725 = vpow.pop %v724
    %v726 = vmul.f32 %v721, 1.442695
    %v727 = vpow.pop %v726
    %v728 = vmul.f32 %v722, 1.442695
    %v729 = vpow.pop %v728
    %v730 = vmul.f32 %v723, 1.442695
    %v731 = vpow.pop %v730
    %v732 = vsel %vm334, %v725, 0.0
    %733 = vadd.xlane.f32.xlu0 %v732
    %v734 = vpop.xlane.xlu0 %733
    %v735 = vsel %vm334, %v727, 0.0
    %736 = vadd.xlane.f32.xlu0 %v735
    %v737 = vpop.xlane.xlu0 %736
    %v738 = vsel %vm334, %v729, 0.0
    %739 = vadd.xlane.f32.xlu0 %v738
    %v740 = vpop.xlane.xlu0 %739
    %v741 = vsel %vm334, %v731, 0.0
    %742 = vadd.xlane.f32.xlu0 %v741
    %v743 = vpop.xlane.xlu0 %742
    %v744 = vrcp.pop %v734
    %v745 = vrcp.pop %v737
    %v746 = vrcp.pop %v740
    %v747 = vrcp.pop %v743
    %v748 = vmul.f32 %v725, %v744
    %v749 = vmul.f32 %v727, %v745
    %v750 = vmul.f32 %v729, %v746
    %v751 = vmul.f32 %v731, %v747
    %v752 = vpack.c.bf16 %v748, %v748
    %v753 = vpack.c.bf16 %v749, %v749
    %v754 = vpack.c.bf16 %v750, %v750
    %v755 = vpack.c.bf16 %v751, %v751
    %v758 = vunpack.c.l.b16 %v752
    %v759 = vunpack.c.l.b16 %v753
    %v760 = vpack.c.b16 %v759, %v758
    %v763 = vunpack.c.l.b16 %v640
    %v764 = vunpack.c.l.b16 %v641
    %v765 = vpack.c.b16 %v764, %v763
    %v768 = vsel %vm334, %v760, 0
    %770 = vmatpush.bf16.msra.mxu0 0
    %771 = vmatpush.bf16.msra.mxu0 0
    %772 = vmatpush.bf16.msra.mxu0 0
    %773 = vmatpush.bf16.msra.mxu0 0
    %774 = vmatpush.bf16.msra.mxu0 0
    %775 = vmatpush.bf16.msra.mxu0 0
    %776 = vmatpush.bf16.msra.mxu0 0
    %777 = vmatpush.bf16.msra.mxu0 %v765
    %778 = vmatmul.bf16.gmra.mxu0 %v768
    %v779 = vpop.f32.mrf.mxu0
    %v780 = vadd.f32 0.0, %v779
    %v781 = vpop.f32.mrf.mxu0
    %v782 = vadd.f32 0.0, %v781
    %783 = vdwg.mxu0
    %v786 = vunpack.c.l.b16 %v754
    %v787 = vunpack.c.l.b16 %v755
    %v788 = vpack.c.b16 %v787, %v786
    %v791 = vunpack.c.l.b16 %v642
    %v792 = vunpack.c.l.b16 %v643
    %v793 = vpack.c.b16 %v792, %v791
    %v796 = vsel %vm334, %v788, 0
    %798 = vmatpush.bf16.msra.mxu0 0
    %799 = vmatpush.bf16.msra.mxu0 0
    %800 = vmatpush.bf16.msra.mxu0 0
    %801 = vmatpush.bf16.msra.mxu0 0
    %802 = vmatpush.bf16.msra.mxu0 0
    %803 = vmatpush.bf16.msra.mxu0 0
    %804 = vmatpush.bf16.msra.mxu0 0
    %805 = vmatpush.bf16.msra.mxu0 %v793
    %806 = vmatmul.bf16.gmra.mxu0 %v796
    %v807 = vpop.f32.mrf.mxu0
    %v808 = vadd.f32 0.0, %v807
    %v809 = vpop.f32.mrf.mxu0
    %v810 = vadd.f32 0.0, %v809
    %811 = vdwg.mxu0
    %v812 = vld [vmem:[%s3 + $0x50] sm:$0xf]
    %v813 = vld [vmem:[%s3 + $0x54] sm:$0xf]
    %v814 = vpack.c.bf16 %v782, %v780
    %v815 = vpack.c.bf16 %v810, %v808
    %v818 = vunpack.c.l.b16 %v812
    %v819 = vunpack.c.l.b16 %v813
    %v820 = vpack.c.b16 %v819, %v818
    %v823 = vsel %vm334, %v814, 0
    %v826 = vsel %vm334, %v815, 0
    %828 = vmatpush.bf16.msra.mxu0 0
    %829 = vmatpush.bf16.msra.mxu0 0
    %830 = vmatpush.bf16.msra.mxu0 0
    %831 = vmatpush.bf16.msra.mxu0 0
    %832 = vmatpush.bf16.msra.mxu0 0
    %833 = vmatpush.bf16.msra.mxu0 0
    %834 = vmatpush.bf16.msra.mxu0 0
    %835 = vmatpush.bf16.msra.mxu0 %v820
    %836 = vmatmul.bf16.gmra.mxu0 %v823
    %v837 = vpop.f32.mrf.mxu0
    %v838 = vadd.f32 0.0, %v837
    %v839 = vpop.f32.mrf.mxu0
    %v840 = vadd.f32 0.0, %v839
    %841 = vmatmul.bf16.gmra.mxu0 %v826
    %v842 = vpop.f32.mrf.mxu0
    %v843 = vadd.f32 0.0, %v842
    %v844 = vpop.f32.mrf.mxu0
    %v845 = vadd.f32 0.0, %v844
    %846 = vdwg.mxu0
    %v849 = vunpack.c.l.b16 %v493
    %v850 = vunpack.c.l.b16 %v494
    %v851 = vpack.c.b16 %v850, %v849
    %v854 = vsel %vm334, %v495, 0
    %v857 = vsel %vm334, %v496, 0
    %859 = vmatpush.bf16.msra.mxu0 0
    %860 = vmatpush.bf16.msra.mxu0 0
    %861 = vmatpush.bf16.msra.mxu0 0
    %862 = vmatpush.bf16.msra.mxu0 0
    %863 = vmatpush.bf16.msra.mxu0 0
    %864 = vmatpush.bf16.msra.mxu0 0
    %865 = vmatpush.bf16.msra.mxu0 0
    %866 = vmatpush.bf16.msra.mxu0 %v851
    %867 = vmatmul.bf16.gmra.mxu0 %v854
    %v868 = vpop.f32.mrf.mxu0
    %v869 = vadd.f32 %v838, %v868
    %v870 = vpop.f32.mrf.mxu0
    %v871 = vadd.f32 %v840, %v870
    %872 = vmatmul.bf16.gmra.mxu0 %v857
    %v873 = vpop.f32.mrf.mxu0
    %v874 = vadd.f32 %v843, %v873
    %v875 = vpop.f32.mrf.mxu0
    %v876 = vadd.f32 %v845, %v875
    %877 = vdwg.mxu0
    %v878 = vadd.f32 %v81, %v869
    %v879 = vadd.f32 %v82, %v871
    %v880 = vadd.f32 %v83, %v874
    %v881 = vadd.f32 %v84, %v876
    %v882 = vld [vmem:[%s2 + $0x6] sm:$0x1]
    %v883 = vperm.slane %v882, 0
    %v884 = vadd.f32 %v878, %v883
    %v885 = vadd.f32 %v879, %v883
    %v886 = vadd.f32 %v880, %v883
    %v887 = vadd.f32 %v881, %v883
    %v888 = vld [vmem:[%s2 + $0x7] sm:$0x1]
    %v889 = vld [vmem:[%s2 + $0x8] sm:$0x1]
    %v890 = vsel %vm87, %v884, 0.0
    %891 = vadd.xlane.f32.xlu0 %v890
    %v892 = vpop.xlane.xlu0 %891
    %v893 = vsel %vm87, %v885, 0.0
    %894 = vadd.xlane.f32.xlu0 %v893
    %v895 = vpop.xlane.xlu0 %894
    %v896 = vsel %vm87, %v886, 0.0
    %897 = vadd.xlane.f32.xlu0 %v896
    %v898 = vpop.xlane.xlu0 %897
    %v899 = vsel %vm87, %v887, 0.0
    %900 = vadd.xlane.f32.xlu0 %v899
    %v901 = vpop.xlane.xlu0 %900
    %v902 = vmul.f32 %v892, %v106
    %v903 = vmul.f32 %v895, %v106
    %v904 = vmul.f32 %v898, %v106
    %v905 = vmul.f32 %v901, %v106
    %v906 = vsub.f32 %v884, %v902
    %v907 = vsub.f32 %v885, %v903
    %v908 = vsub.f32 %v886, %v904
    %v909 = vsub.f32 %v887, %v905
    %v910 = vmul.f32 %v906, %v906
    %v911 = vmul.f32 %v907, %v907
    %v912 = vmul.f32 %v908, %v908
    %v913 = vmul.f32 %v909, %v909
    %v914 = vsel %vm87, %v910, 0.0
    %915 = vadd.xlane.f32.xlu0 %v914
    %v916 = vpop.xlane.xlu0 %915
    %v917 = vsel %vm87, %v911, 0.0
    %918 = vadd.xlane.f32.xlu0 %v917
    %v919 = vpop.xlane.xlu0 %918
    %v920 = vsel %vm87, %v912, 0.0
    %921 = vadd.xlane.f32.xlu0 %v920
    %v922 = vpop.xlane.xlu0 %921
    %v923 = vsel %vm87, %v913, 0.0
    %924 = vadd.xlane.f32.xlu0 %v923
    %v925 = vpop.xlane.xlu0 %924
    %v926 = vmul.f32 %v916, %v106
    %v927 = vmul.f32 %v919, %v106
    %v928 = vmul.f32 %v922, %v106
    %v929 = vmul.f32 %v925, %v106
    %v930 = vadd.f32 %v926, 1e-05
    %v931 = vadd.f32 %v927, 1e-05
    %v932 = vadd.f32 %v928, 1e-05
    %v933 = vadd.f32 %v929, 1e-05
    %v934 = vrsqrt.pop %v930
    %v935 = vmul.f32 %v934, %v930
    %v936 = vmul.f32 %v935, %v934
    %v937 = vmul.f32 0.5, %v936
    %v938 = vsub.f32 1.5, %v937
    %v939 = vmul.f32 %v934, %v938
    %vm940 = vweird.f32 %v930
    %vm941 = vweird.f32 %v934
    %vm942 = vmor %vm940, %vm941
    %v943 = vsel %vm942, %v934, %v939
    %v944 = vrsqrt.pop %v931
    %v945 = vmul.f32 %v944, %v931
    %v946 = vmul.f32 %v945, %v944
    %v947 = vmul.f32 0.5, %v946
    %v948 = vsub.f32 1.5, %v947
    %v949 = vmul.f32 %v944, %v948
    %vm950 = vweird.f32 %v931
    %vm951 = vweird.f32 %v944
    %vm952 = vmor %vm950, %vm951
    %v953 = vsel %vm952, %v944, %v949
    %v954 = vrsqrt.pop %v932
    %v955 = vmul.f32 %v954, %v932
    %v956 = vmul.f32 %v955, %v954
    %v957 = vmul.f32 0.5, %v956
    %v958 = vsub.f32 1.5, %v957
    %v959 = vmul.f32 %v954, %v958
    %vm960 = vweird.f32 %v932
    %vm961 = vweird.f32 %v954
    %vm962 = vmor %vm960, %vm961
    %v963 = vsel %vm962, %v954, %v959
    %v964 = vrsqrt.pop %v933
    %v965 = vmul.f32 %v964, %v933
    %v966 = vmul.f32 %v965, %v964
    %v967 = vmul.f32 0.5, %v966
    %v968 = vsub.f32 1.5, %v967
    %v969 = vmul.f32 %v964, %v968
    %vm970 = vweird.f32 %v933
    %vm971 = vweird.f32 %v964
    %vm972 = vmor %vm970, %vm971
    %v973 = vsel %vm972, %v964, %v969
    %v974 = vmul.f32 %v906, %v943
    %v975 = vmul.f32 %v907, %v953
    %v976 = vmul.f32 %v908, %v963
    %v977 = vmul.f32 %v909, %v973
    %v978 = vperm.slane %v888, 0
    %v979 = vmul.f32 %v974, %v978
    %v980 = vmul.f32 %v975, %v978
    %v981 = vmul.f32 %v976, %v978
    %v982 = vmul.f32 %v977, %v978
    %v983 = vperm.slane %v889, 0
    %v984 = vadd.f32 %v979, %v983
    %v985 = vadd.f32 %v980, %v983
    %v986 = vadd.f32 %v981, %v983
    %v987 = vadd.f32 %v982, %v983
    %v988 = vld [vmem:[%s3 + $0x58] sm:$0xf]
    %v989 = vld [vmem:[%s3 + $0x5c] sm:$0xf]
    %v990 = vld [vmem:[%s3 + $0x60] sm:$0xf]
    %v991 = vld [vmem:[%s3 + $0x64] sm:$0xf]
    %v992 = vpack.c.bf16 %v985, %v984
    %v993 = vpack.c.bf16 %v987, %v986
    %v994 = vld [vmem:[%s2 + $0x9] sm:$0x1]
    %v995 = vperm.slane %v994, 0
    %v1000 = vunpack.c.l.b16 %v988
    %v1001 = vunpack.c.l.b16 %v989
    %v1002 = vunpack.c.l.b16 %v990
    %v1003 = vunpack.c.l.b16 %v991
    %v1004 = vpack.c.b16 %v1001, %v1000
    %v1005 = vpack.c.b16 %v1003, %v1002
    %v1009 = vsel %vm87, %v992, 0
    %v1012 = vsel %vm87, %v993, 0
    %1014 = vmatpush.bf16.msra.mxu0 0
    %1015 = vmatpush.bf16.msra.mxu0 0
    %1016 = vmatpush.bf16.msra.mxu0 0
    %1017 = vmatpush.bf16.msra.mxu0 0
    %1018 = vmatpush.bf16.msra.mxu0 0
    %1019 = vmatpush.bf16.msra.mxu0 0
    %1020 = vmatpush.bf16.msra.mxu0 %v1005
    %1021 = vmatpush.bf16.msra.mxu0 %v1004
    %1022 = vmatmul.bf16.gmra.mxu0 %v1009
    %v1023 = vpop.f32.mrf.mxu0
    %v1024 = vadd.f32 %v995, %v1023
    %v1025 = vpop.f32.mrf.mxu0
    %v1026 = vadd.f32 %v995, %v1025
    %1027 = vmatmul.bf16.gmra.mxu0 %v1012
    %v1028 = vpop.f32.mrf.mxu0
    %v1029 = vadd.f32 %v995, %v1028
    %v1030 = vpop.f32.mrf.mxu0
    %v1031 = vadd.f32 %v995, %v1030
    %1032 = vdwg.mxu0
    %v1033 = vmul.f32 %v1024, 1.702
    %v1034 = vmul.f32 %v1026, 1.702
    %v1035 = vmul.f32 %v1029, 1.702
    %v1036 = vmul.f32 %v1031, 1.702
    %v1037 = vxor.u32 %v1033, 2147483648
    %v1038 = vxor.u32 %v1034, 2147483648
    %v1039 = vxor.u32 %v1035, 2147483648
    %v1040 = vxor.u32 %v1036, 2147483648
    %v1041 = vmul.f32 %v1037, 1.442695
    %v1042 = vpow.pop %v1041
    %v1043 = vmul.f32 %v1038, 1.442695
    %v1044 = vpow.pop %v1043
    %v1045 = vmul.f32 %v1039, 1.442695
    %v1046 = vpow.pop %v1045
    %v1047 = vmul.f32 %v1040, 1.442695
    %v1048 = vpow.pop %v1047
    %v1049 = vadd.f32 %v1042, 1.0
    %v1050 = vadd.f32 %v1044, 1.0
    %v1051 = vadd.f32 %v1046, 1.0
    %v1052 = vadd.f32 %v1048, 1.0
    %v1053 = vrcp.pop %v1049
    %v1054 = vmul.f32 %v1049, %v1053
    %v1055 = vsub.f32 1.0, %v1054
    %v1056 = vmul.f32 %v1053, %v1055
    %v1057 = vadd.f32 %v1053, %v1056
    %vm1058 = vweird.f32 %v1049
    %vm1059 = vweird.f32 %v1053
    %vm1060 = vmor %vm1058, %vm1059
    %v1061 = vsel %vm1060, %v1053, %v1057
    %v1062 = vand.u32 2147483647, %v1049
    %vm1063 = vcmp.eq.f32.partialorder %v1062, 8.507059e+37
    %v1064 = vand.u32 %v1049, 2147483648
    %v1065 = vor.u32 1.1754944e-38, %v1064
    %v1066 = vsel %vm1063, %v1065, %v1061
    %v1067 = vmul.f32 1.0, %v1066
    %v1068 = vrcp.pop %v1050
    %v1069 = vmul.f32 %v1050, %v1068
    %v1070 = vsub.f32 1.0, %v1069
    %v1071 = vmul.f32 %v1068, %v1070
    %v1072 = vadd.f32 %v1068, %v1071
    %vm1073 = vweird.f32 %v1050
    %vm1074 = vweird.f32 %v1068
    %vm1075 = vmor %vm1073, %vm1074
    %v1076 = vsel %vm1075, %v1068, %v1072
    %v1077 = vand.u32 2147483647, %v1050
    %vm1078 = vcmp.eq.f32.partialorder %v1077, 8.507059e+37
    %v1079 = vand.u32 %v1050, 2147483648
    %v1080 = vor.u32 1.1754944e-38, %v1079
    %v1081 = vsel %vm1078, %v1080, %v1076
    %v1082 = vmul.f32 1.0, %v1081
    %v1083 = vrcp.pop %v1051
    %v1084 = vmul.f32 %v1051, %v1083
    %v1085 = vsub.f32 1.0, %v1084
    %v1086 = vmul.f32 %v1083, %v1085
    %v1087 = vadd.f32 %v1083, %v1086
    %vm1088 = vweird.f32 %v1051
    %vm1089 = vweird.f32 %v1083
    %vm1090 = vmor %vm1088, %vm1089
    %v1091 = vsel %vm1090, %v1083, %v1087
    %v1092 = vand.u32 2147483647, %v1051
    %vm1093 = vcmp.eq.f32.partialorder %v1092, 8.507059e+37
    %v1094 = vand.u32 %v1051, 2147483648
    %v1095 = vor.u32 1.1754944e-38, %v1094
    %v1096 = vsel %vm1093, %v1095, %v1091
    %v1097 = vmul.f32 1.0, %v1096
    %v1098 = vrcp.pop %v1052
    %v1099 = vmul.f32 %v1052, %v1098
    %v1100 = vsub.f32 1.0, %v1099
    %v1101 = vmul.f32 %v1098, %v1100
    %v1102 = vadd.f32 %v1098, %v1101
    %vm1103 = vweird.f32 %v1052
    %vm1104 = vweird.f32 %v1098
    %vm1105 = vmor %vm1103, %vm1104
    %v1106 = vsel %vm1105, %v1098, %v1102
    %v1107 = vand.u32 2147483647, %v1052
    %vm1108 = vcmp.eq.f32.partialorder %v1107, 8.507059e+37
    %v1109 = vand.u32 %v1052, 2147483648
    %v1110 = vor.u32 1.1754944e-38, %v1109
    %v1111 = vsel %vm1108, %v1110, %v1106
    %v1112 = vmul.f32 1.0, %v1111
    %v1113 = vmul.f32 %v1024, %v1067
    %v1114 = vmul.f32 %v1026, %v1082
    %v1115 = vmul.f32 %v1029, %v1097
    %v1116 = vmul.f32 %v1031, %v1112
    %v1117 = vld [vmem:[%s3 + $0x68] sm:$0xf]
    %v1118 = vld [vmem:[%s3 + $0x6c] sm:$0xf]
    %v1119 = vld [vmem:[%s3 + $0x70] sm:$0xf]
    %v1120 = vld [vmem:[%s3 + $0x74] sm:$0xf]
    %v1121 = vld [vmem:[%s3 + $0x78] sm:$0xf]
    %v1122 = vld [vmem:[%s3 + $0x7c] sm:$0xf]
    %v1123 = vld [vmem:[%s3 + $0x80] sm:$0xf]
    %v1124 = vld [vmem:[%s3 + $0x84] sm:$0xf]
    %v1125 = vpack.c.bf16 %v1114, %v1113
    %v1126 = vpack.c.bf16 %v1116, %v1115
    %v1135 = vunpack.c.l.b16 %v1117
    %v1136 = vunpack.c.l.b16 %v1118
    %v1137 = vunpack.c.l.b16 %v1119
    %v1138 = vunpack.c.l.b16 %v1120
    %v1139 = vunpack.c.l.b16 %v1121
    %v1140 = vunpack.c.l.b16 %v1122
    %v1141 = vunpack.c.l.b16 %v1123
    %v1142 = vunpack.c.l.b16 %v1124
    %v1143 = vpack.c.b16 %v1136, %v1135
    %v1144 = vpack.c.b16 %v1138, %v1137
    %v1145 = vpack.c.b16 %v1140, %v1139
    %v1146 = vpack.c.b16 %v1142, %v1141
    %vm1151 = vcmask 523264
    %v1153 = vsel %vm1151, %v1125, 0
    %v1156 = vsel %vm1151, %v1126, 0
    %1158 = vmatpush.bf16.msra.mxu0 0
    %1159 = vmatpush.bf16.msra.mxu0 0
    %1160 = vmatpush.bf16.msra.mxu0 0
    %1161 = vmatpush.bf16.msra.mxu0 0
    %1162 = vmatpush.bf16.msra.mxu0 %v1146
    %1163 = vmatpush.bf16.msra.mxu0 %v1145
    %1164 = vmatpush.bf16.msra.mxu0 %v1144
    %1165 = vmatpush.bf16.msra.mxu0 %v1143
    %1166 = vmatmul.bf16.gmra.mxu0 %v1153
    %v1167 = vpop.f32.mrf.mxu0
    %v1168 = vadd.f32 0.0, %v1167
    %v1169 = vpop.f32.mrf.mxu0
    %v1170 = vadd.f32 0.0, %v1169
    %1171 = vmatmul.bf16.gmra.mxu0 %v1156
    %v1172 = vpop.f32.mrf.mxu0
    %v1173 = vadd.f32 0.0, %v1172
    %v1174 = vpop.f32.mrf.mxu0
    %v1175 = vadd.f32 0.0, %v1174
    %1176 = vdwg.mxu0
    %v1177 = vadd.f32 %v884, %v1168
    %v1178 = vadd.f32 %v885, %v1170
    %v1179 = vadd.f32 %v886, %v1173
    %v1180 = vadd.f32 %v887, %v1175
    %v1181 = vld [vmem:[%s2 + $0xa] sm:$0x1]
    %v1182 = vperm.slane %v1181, 0
    %v1183 = vadd.f32 %v1177, %v1182
    %v1184 = vadd.f32 %v1178, %v1182
    %v1185 = vadd.f32 %v1179, %v1182
    %v1186 = vadd.f32 %v1180, %v1182
    %v1187 = vld [vmem:[%s3 + $0x88] sm:$0xf]
    %v1188 = vld [vmem:[%s3 + $0x8c] sm:$0xf]
    %v1189 = vld [vmem:[%s3 + $0x90] sm:$0xf]
    %v1190 = vld [vmem:[%s3 + $0x94] sm:$0xf]
    %v1191 = vpack.c.bf16 %v1184, %v1183
    %v1192 = vpack.c.bf16 %v1186, %v1185
    %v1193 = vld [vmem:[%s2 + $0xb] sm:$0x1]
    %v1194 = vperm.slane %v1193, 0
    %v1199 = vunpack.c.l.b16 %v1187
    %v1200 = vunpack.c.l.b16 %v1188
    %v1201 = vunpack.c.l.b16 %v1189
    %v1202 = vunpack.c.l.b16 %v1190
    %v1203 = vpack.c.b16 %v1200, %v1199
    %v1204 = vpack.c.b16 %v1202, %v1201
    %v1208 = vsel %vm87, %v1191, 0
    %v1211 = vsel %vm87, %v1192, 0
    %1213 = vmatpush.bf16.msra.mxu0 0
    %1214 = vmatpush.bf16.msra.mxu0 0
    %1215 = vmatpush.bf16.msra.mxu0 0
    %1216 = vmatpush.bf16.msra.mxu0 0
    %1217 = vmatpush.bf16.msra.mxu0 0
    %1218 = vmatpush.bf16.msra.mxu0 0
    %1219 = vmatpush.bf16.msra.mxu0 %v1204
    %1220 = vmatpush.bf16.msra.mxu0 %v1203
    %1221 = vmatmul.bf16.gmra.mxu0 %v1208
    %v1222 = vpop.f32.mrf.mxu0
    %v1223 = vadd.f32 %v1194, %v1222
    %v1224 = vpop.f32.mrf.mxu0
    %v1225 = vadd.f32 %v1194, %v1224
    %1226 = vmatmul.bf16.gmra.mxu0 %v1211
    %v1227 = vpop.f32.mrf.mxu0
    %v1228 = vadd.f32 %v1194, %v1227
    %v1229 = vpop.f32.mrf.mxu0
    %v1230 = vadd.f32 %v1194, %v1229
    %1231 = vdwg.mxu0
    %v1232 = vmul.f32 %v1223, %v1223
    %v1233 = vmul.f32 %v1225, %v1225
    %v1234 = vmul.f32 %v1228, %v1228
    %v1235 = vmul.f32 %v1230, %v1230
    %v1236 = vmul.f32 %v1223, %v1232
    %v1237 = vmul.f32 %v1225, %v1233
    %v1238 = vmul.f32 %v1228, %v1234
    %v1239 = vmul.f32 %v1230, %v1235
    %v1240 = vmul.f32 %v1236, 0.044715
    %v1241 = vmul.f32 %v1237, 0.044715
    %v1242 = vmul.f32 %v1238, 0.044715
    %v1243 = vmul.f32 %v1239, 0.044715
    %v1244 = vadd.f32 %v1223, %v1240
    %v1245 = vadd.f32 %v1225, %v1241
    %v1246 = vadd.f32 %v1228, %v1242
    %v1247 = vadd.f32 %v1230, %v1243
    %v1248 = vmul.f32 %v1244, 0.7978846
    %v1249 = vmul.f32 %v1245, 0.7978846
    %v1250 = vmul.f32 %v1246, 0.7978846
    %v1251 = vmul.f32 %v1247, 0.7978846
    %v1252 = vtanh.pop %v1248
    %v1253 = vtanh.pop %v1249
    %v1254 = vtanh.pop %v1250
    %v1255 = vtanh.pop %v1251
    %v1256 = vadd.f32 %v1252, 1.0
    %v1257 = vadd.f32 %v1253, 1.0
    %v1258 = vadd.f32 %v1254, 1.0
    %v1259 = vadd.f32 %v1255, 1.0
    %v1260 = vmul.f32 %v1256, 0.5
    %v1261 = vmul.f32 %v1257, 0.5
    %v1262 = vmul.f32 %v1258, 0.5
    %v1263 = vmul.f32 %v1259, 0.5
    %v1264 = vmul.f32 %v1223, %v1260
    %v1265 = vmul.f32 %v1225, %v1261
    %v1266 = vmul.f32 %v1228, %v1262
    %v1267 = vmul.f32 %v1230, %v1263
    %v1268 = vld [vmem:[%s3 + $0x98] sm:$0xf]
    %v1269 = vld [vmem:[%s3 + $0x9c] sm:$0xf]
    %v1270 = vld [vmem:[%s3 + $0xa0] sm:$0xf]
    %v1271 = vld [vmem:[%s3 + $0xa4] sm:$0xf]
    %v1272 = vld [vmem:[%s3 + $0xa8] sm:$0xf]
    %v1273 = vld [vmem:[%s3 + $0xac] sm:$0xf]
    %v1274 = vld [vmem:[%s3 + $0xb0] sm:$0xf]
    %v1275 = vld [vmem:[%s3 + $0xb4] sm:$0xf]
    %v1276 = vpack.c.bf16 %v1265, %v1264
    %v1277 = vpack.c.bf16 %v1267, %v1266
    %v1278 = vld [vmem:[%s2 + $0xc] sm:$0x1]
    %v1279 = vperm.slane %v1278, 0
    %v1288 = vunpack.c.l.b16 %v1268
    %v1289 = vunpack.c.l.b16 %v1269
    %v1290 = vunpack.c.l.b16 %v1270
    %v1291 = vunpack.c.l.b16 %v1271
    %v1292 = vunpack.c.l.b16 %v1272
    %v1293 = vunpack.c.l.b16 %v1273
    %v1294 = vunpack.c.l.b16 %v1274
    %v1295 = vunpack.c.l.b16 %v1275
    %v1296 = vpack.c.b16 %v1289, %v1288
    %v1297 = vpack.c.b16 %v1291, %v1290
    %v1298 = vpack.c.b16 %v1293, %v1292
    %v1299 = vpack.c.b16 %v1295, %v1294
    %v1305 = vsel %vm1151, %v1276, 0
    %v1308 = vsel %vm1151, %v1277, 0
    %1310 = vmatpush.bf16.msra.mxu0 0
    %1311 = vmatpush.bf16.msra.mxu0 0
    %1312 = vmatpush.bf16.msra.mxu0 0
    %1313 = vmatpush.bf16.msra.mxu0 0
    %1314 = vmatpush.bf16.msra.mxu0 %v1299
    %1315 = vmatpush.bf16.msra.mxu0 %v1298
    %1316 = vmatpush.bf16.msra.mxu0 %v1297
    %1317 = vmatpush.bf16.msra.mxu0 %v1296
    %1318 = vmatmul.bf16.gmra.mxu0 %v1305
    %v1319 = vpop.f32.mrf.mxu0
    %v1320 = vadd.f32 %v1279, %v1319
    %v1321 = vpop.f32.mrf.mxu0
    %v1322 = vadd.f32 %v1279, %v1321
    %1323 = vmatmul.bf16.gmra.mxu0 %v1308
    %v1324 = vpop.f32.mrf.mxu0
    %v1325 = vadd.f32 %v1279, %v1324
    %v1326 = vpop.f32.mrf.mxu0
    %v1327 = vadd.f32 %v1279, %v1326
    %1328 = vdwg.mxu0
    %v1329 = vld [vmem:[%s1] sm:$0xff]
    %v1330 = vld [vmem:[%s1 + $0x8] sm:$0xff]
    %v1331 = vlaneseq
    %v1332 = vand.u32 %v1331, 127
    %1333 = vset.pattern.permute.xlu0 0
    %1334 = vperm.xlu0 %1333, %v1329
    %v1335 = vpop.permute.xlu0 %1334
    %1336 = vset.pattern.permute.xlu0 0
    %1337 = vperm.xlu0 %1336, %v1330
    %v1338 = vpop.permute.xlu0 %1337
    %vm1339 = vcmp.eq.s32.totalorder %v1335, %v1332
    %vm1340 = vcmp.eq.s32.totalorder %v1338, %v1332
    %v1341 = vsel %vm1339, 1, 0
    %v1342 = vsel %vm1340, 1, 0
    %v1343 = vcvt.s32.f32 %v1341
    %v1344 = vcvt.s32.f32 %v1342
    %v1345 = vpack.c.bf16 %v1344, %v1343
    %v1346 = vld [vmem:[%s3 + $0xb8] sm:$0xf]
    %v1347 = vld [vmem:[%s3 + $0xbc] sm:$0xf]
    %v1348 = vld [vmem:[%s3 + $0xc0] sm:$0xf]
    %v1349 = vld [vmem:[%s3 + $0xc4] sm:$0xf]
    %v1350 = vld [vmem:[%s3 + $0xc8] sm:$0xf]
    %v1351 = vld [vmem:[%s3 + $0xcc] sm:$0xf]
    %v1352 = vld [vmem:[%s3 + $0xd0] sm:$0xf]
    %v1353 = vld [vmem:[%s3 + $0xd4] sm:$0xf]
    %v1354 = vld [vmem:[%s3 + $0xd8] sm:$0xf]
    %v1355 = vld [vmem:[%s3 + $0xdc] sm:$0xf]
    %v1356 = vld [vmem:[%s3 + $0xe0] sm:$0xf]
    %v1357 = vld [vmem:[%s3 + $0xe4] sm:$0xf]
    %v1358 = vld [vmem:[%s3 + $0xe8] sm:$0xf]
    %v1359 = vld [vmem:[%s3 + $0xec] sm:$0xf]
    %v1360 = vld [vmem:[%s3 + $0xf0] sm:$0xf]
    %v1361 = vld [vmem:[%s3 + $0xf4] sm:$0xf]
    %v1378 = vunpack.c.l.b16 %v1346
    %v1379 = vunpack.c.l.b16 %v1347
    %v1380 = vunpack.c.l.b16 %v1348
    %v1381 = vunpack.c.l.b16 %v1349
    %v1382 = vunpack.c.l.b16 %v1350
    %v1383 = vunpack.c.l.b16 %v1351
    %v1384 = vunpack.c.l.b16 %v1352
    %v1385 = vunpack.c.l.b16 %v1353
    %v1386 = vunpack.c.l.b16 %v1354
    %v1387 = vunpack.c.l.b16 %v1355
    %v1388 = vunpack.c.l.b16 %v1356
    %v1389 = vunpack.c.l.b16 %v1357
    %v1390 = vunpack.c.l.b16 %v1358
    %v1391 = vunpack.c.l.b16 %v1359
    %v1392 = vunpack.c.l.b16 %v1360
    %v1393 = vunpack.c.l.b16 %v1361
    %v1394 = vpack.c.b16 %v1379, %v1378
    %v1395 = vpack.c.b16 %v1381, %v1380
    %v1396 = vpack.c.b16 %v1383, %v1382
    %v1397 = vpack.c.b16 %v1385, %v1384
    %v1398 = vpack.c.b16 %v1387, %v1386
    %v1399 = vpack.c.b16 %v1389, %v1388
    %v1400 = vpack.c.b16 %v1391, %v1390
    %v1401 = vpack.c.b16 %v1393, %v1392
    %1410 = vmatpush.bf16.msra.mxu0 %v1401
    %1411 = vmatpush.bf16.msra.mxu0 %v1400
    %1412 = vmatpush.bf16.msra.mxu0 %v1399
    %1413 = vmatpush.bf16.msra.mxu0 %v1398
    %1414 = vmatpush.bf16.msra.mxu0 %v1397
    %1415 = vmatpush.bf16.msra.mxu0 %v1396
    %1416 = vmatpush.bf16.msra.mxu0 %v1395
    %1417 = vmatpush.bf16.msra.mxu0 %v1394
    %1418 = vmatmul.bf16.gmra.mxu0 %v1345
    %v1419 = vpop.f32.mrf.mxu0
    %v1420 = vadd.f32 0.0, %v1419
    %v1421 = vpop.f32.mrf.mxu0
    %v1422 = vadd.f32 0.0, %v1421
    %1423 = vdwg.mxu0
    %1424 = vst.msk [vmem:[#allocation2] sm:$0xff] %vm1151, %v1320
    %1425 = vst.msk [vmem:[#allocation2 + $0x8] sm:$0xff] %vm1151, %v1322
    %1426 = vst.msk [vmem:[#allocation2 + $0x18] sm:$0xff] %vm1151, %v1325
    %1427 = vst.msk [vmem:[#allocation2 + $0x20] sm:$0xff] %vm1151, %v1327
    %1428 = vst.msk [vmem:[#allocation2 + $0x10] sm:$0xff] %vm1151, %v1420
    %1429 = vst.msk [vmem:[#allocation2 + $0x28] sm:$0xff] %vm1151, %v1422
    %v1430 = vld [vmem:[#allocation2] sm:$0xff]
    %v1431 = vld [vmem:[#allocation2 + $0x8] sm:$0xff]
    %v1432 = vld [vmem:[#allocation2 + $0x10] sm:$0xff]
    %v1433 = vld [vmem:[#allocation2 + $0x18] sm:$0xff]
    %v1434 = vld [vmem:[#allocation2 + $0x20] sm:$0xff]
    %v1435 = vld [vmem:[#allocation2 + $0x28] sm:$0xff]
    %v1436 = vld [vmem:[%s2 + $0xd] sm:$0x1]
    %v1437 = vmul.f32 %v1430, %v1430
    %v1438 = vmul.f32 %v1431, %v1431
    %v1439 = vmul.f32 %v1432, %v1432
    %v1440 = vmul.f32 %v1433, %v1433
    %v1441 = vmul.f32 %v1434, %v1434
    %v1442 = vmul.f32 %v1435, %v1435
    %v1443 = vsel %vm1151, %v1437, 0.0
    %1444 = vadd.xlane.f32.xlu0 %v1443
    %v1445 = vpop.xlane.xlu0 %1444
    %v1446 = vsel %vm1151, %v1438, 0.0
    %1447 = vadd.xlane.f32.xlu0 %v1446
    %v1448 = vpop.xlane.xlu0 %1447
    %v1449 = vsel %vm1151, %v1439, 0.0
    %1450 = vadd.xlane.f32.xlu0 %v1449
    %v1451 = vpop.xlane.xlu0 %1450
    %v1452 = vsel %vm1151, %v1440, 0.0
    %1453 = vadd.xlane.f32.xlu0 %v1452
    %v1454 = vpop.xlane.xlu0 %1453
    %v1455 = vsel %vm1151, %v1441, 0.0
    %1456 = vadd.xlane.f32.xlu0 %v1455
    %v1457 = vpop.xlane.xlu0 %1456
    %v1458 = vsel %vm1151, %v1442, 0.0
    %1459 = vadd.xlane.f32.xlu0 %v1458
    %v1460 = vpop.xlane.xlu0 %1459
    %v1461 = vrcp.pop 64.0
    %v1462 = vmul.f32 64.0, %v1461
    %v1463 = vsub.f32 1.0, %v1462
    %v1464 = vmul.f32 %v1461, %v1463
    %v1465 = vadd.f32 %v1461, %v1464
    %vm1466 = vweird.f32 %v1461
    %v1467 = vsel %vm1466, %v1461, %v1465
    %v1468 = vmul.f32 %v1445, %v1467
    %v1469 = vmul.f32 %v1448, %v1467
    %v1470 = vmul.f32 %v1451, %v1467
    %v1471 = vmul.f32 %v1454, %v1467
    %v1472 = vmul.f32 %v1457, %v1467
    %v1473 = vmul.f32 %v1460, %v1467
    %v1474 = vadd.f32 %v1468, 1e-06
    %v1475 = vadd.f32 %v1469, 1e-06
    %v1476 = vadd.f32 %v1470, 1e-06
    %v1477 = vadd.f32 %v1471, 1e-06
    %v1478 = vadd.f32 %v1472, 1e-06
    %v1479 = vadd.f32 %v1473, 1e-06
    %v1480 = vrsqrt.pop %v1474
    %v1481 = vmul.f32 %v1480, %v1474
    %v1482 = vmul.f32 %v1481, %v1480
    %v1483 = vmul.f32 0.5, %v1482
    %v1484 = vsub.f32 1.5, %v1483
    %v1485 = vmul.f32 %v1480, %v1484
    %vm1486 = vweird.f32 %v1474
    %vm1487 = vweird.f32 %v1480
    %vm1488 = vmor %vm1486, %vm1487
    %v1489 = vsel %vm1488, %v1480, %v1485
    %v1490 = vrsqrt.pop %v1475
    %v1491 = vmul.f32 %v1490, %v1475
    %v1492 = vmul.f32 %v1491, %v1490
    %v1493 = vmul.f32 0.5, %v1492
    %v1494 = vsub.f32 1.5, %v1493
    %v1495 = vmul.f32 %v1490, %v1494
    %vm1496 = vweird.f32 %v1475
    %vm1497 = vweird.f32 %v1490
    %vm1498 = vmor %vm1496, %vm1497
    %v1499 = vsel %vm1498, %v1490, %v1495
    %v1500 = vrsqrt.pop %v1476
    %v1501 = vmul.f32 %v1500, %v1476
    %v1502 = vmul.f32 %v1501, %v1500
    %v1503 = vmul.f32 0.5, %v1502
    %v1504 = vsub.f32 1.5, %v1503
    %v1505 = vmul.f32 %v1500, %v1504
    %vm1506 = vweird.f32 %v1476
    %vm1507 = vweird.f32 %v1500
    %vm1508 = vmor %vm1506, %vm1507
    %v1509 = vsel %vm1508, %v1500, %v1505
    %v1510 = vrsqrt.pop %v1477
    %v1511 = vmul.f32 %v1510, %v1477
    %v1512 = vmul.f32 %v1511, %v1510
    %v1513 = vmul.f32 0.5, %v1512
    %v1514 = vsub.f32 1.5, %v1513
    %v1515 = vmul.f32 %v1510, %v1514
    %vm1516 = vweird.f32 %v1477
    %vm1517 = vweird.f32 %v1510
    %vm1518 = vmor %vm1516, %vm1517
    %v1519 = vsel %vm1518, %v1510, %v1515
    %v1520 = vrsqrt.pop %v1478
    %v1521 = vmul.f32 %v1520, %v1478
    %v1522 = vmul.f32 %v1521, %v1520
    %v1523 = vmul.f32 0.5, %v1522
    %v1524 = vsub.f32 1.5, %v1523
    %v1525 = vmul.f32 %v1520, %v1524
    %vm1526 = vweird.f32 %v1478
    %vm1527 = vweird.f32 %v1520
    %vm1528 = vmor %vm1526, %vm1527
    %v1529 = vsel %vm1528, %v1520, %v1525
    %v1530 = vrsqrt.pop %v1479
    %v1531 = vmul.f32 %v1530, %v1479
    %v1532 = vmul.f32 %v1531, %v1530
    %v1533 = vmul.f32 0.5, %v1532
    %v1534 = vsub.f32 1.5, %v1533
    %v1535 = vmul.f32 %v1530, %v1534
    %vm1536 = vweird.f32 %v1479
    %vm1537 = vweird.f32 %v1530
    %vm1538 = vmor %vm1536, %vm1537
    %v1539 = vsel %vm1538, %v1530, %v1535
    %v1540 = vmul.f32 %v1430, %v1489
    %v1541 = vmul.f32 %v1431, %v1499
    %v1542 = vmul.f32 %v1432, %v1509
    %v1543 = vmul.f32 %v1433, %v1519
    %v1544 = vmul.f32 %v1434, %v1529
    %v1545 = vmul.f32 %v1435, %v1539
    %v1546 = vperm.slane %v1436, 0
    %v1547 = vmul.f32 %v1540, %v1546
    %v1548 = vmul.f32 %v1541, %v1546
    %v1549 = vmul.f32 %v1542, %v1546
    %v1550 = vmul.f32 %v1543, %v1546
    %v1551 = vmul.f32 %v1544, %v1546
    %v1552 = vmul.f32 %v1545, %v1546
    %v1553 = vlaneseq
    %v1554 = vshrl.u32 %v1553, 7
    %v1555 = vadd.s32 %v1554, 8
    %v1556 = vadd.s32 %v1554, 16
    %vm1557 = vcmp.le.s32.totalorder %v1332, %v1554
    %vm1558 = vcmp.le.s32.totalorder %v1332, %v1555
    %vm1559 = vcmp.le.s32.totalorder %v1332, %v1556
    %v1560 = vld [vmem:[%s3 + $0xf8] sm:$0xf]
    %v1561 = vld [vmem:[%s3 + $0xfc] sm:$0xf]
    %v1562 = vld [vmem:[%s3 + $0x100] sm:$0xf]
    %v1563 = vld [vmem:[%s3 + $0x104] sm:$0xf]
    %v1564 = vld [vmem:[%s3 + $0x108] sm:$0xf]
    %v1565 = vld [vmem:[%s3 + $0x10c] sm:$0xf]
    %v1566 = vld [vmem:[%s3 + $0x110] sm:$0xf]
    %v1567 = vld [vmem:[%s3 + $0x114] sm:$0xf]
    %v1568 = vpack.c.bf16 %v1548, %v1547
    %v1569 = vpack.c.bf16 %v1550, %v1549
    %v1570 = vpack.c.bf16 %v1552, %v1551
    %v1579 = vunpack.c.l.b16 %v1560
    %v1580 = vunpack.c.l.b16 %v1561
    %v1581 = vunpack.c.l.b16 %v1562
    %v1582 = vunpack.c.l.b16 %v1563
    %v1583 = vunpack.c.l.b16 %v1564
    %v1584 = vunpack.c.l.b16 %v1565
    %v1585 = vunpack.c.l.b16 %v1566
    %v1586 = vunpack.c.l.b16 %v1567
    %v1587 = vpack.c.b16 %v1580, %v1579
    %v1588 = vpack.c.b16 %v1582, %v1581
    %v1589 = vpack.c.b16 %v1584, %v1583
    %v1590 = vpack.c.b16 %v1586, %v1585
    %v1596 = vsel %vm1151, %v1568, 0
    %v1599 = vsel %vm1151, %v1569, 0
    %v1602 = vsel %vm1151, %v1570, 0
    %1604 = vmatpush.bf16.msra.mxu0 0
    %1605 = vmatpush.bf16.msra.mxu0 0
    %1606 = vmatpush.bf16.msra.mxu0 0
    %1607 = vmatpush.bf16.msra.mxu0 0
    %1608 = vmatpush.bf16.msra.mxu0 %v1590
    %1609 = vmatpush.bf16.msra.mxu0 %v1589
    %1610 = vmatpush.bf16.msra.mxu0 %v1588
    %1611 = vmatpush.bf16.msra.mxu0 %v1587
    %1612 = vmatmul.bf16.gmra.mxu0 %v1596
    %v1613 = vpop.f32.mrf.mxu0
    %v1614 = vadd.f32 0.0, %v1613
    %v1615 = vpop.f32.mrf.mxu0
    %v1616 = vadd.f32 0.0, %v1615
    %1617 = vmatmul.bf16.gmra.mxu0 %v1599
    %v1618 = vpop.f32.mrf.mxu0
    %v1619 = vadd.f32 0.0, %v1618
    %v1620 = vpop.f32.mrf.mxu0
    %v1621 = vadd.f32 0.0, %v1620
    %1622 = vmatmul.bf16.gmra.mxu0 %v1602
    %v1623 = vpop.f32.mrf.mxu0
    %v1624 = vadd.f32 0.0, %v1623
    %v1625 = vpop.f32.mrf.mxu0
    %v1626 = vadd.f32 0.0, %v1625
    %1627 = vdwg.mxu0
    %v1628 = vpack.c.bf16 %v1614, %v1614
    %v1629 = vpack.c.bf16 %v1616, %v1616
    %v1630 = vpack.c.bf16 %v1619, %v1619
    %v1631 = vpack.c.bf16 %v1621, %v1621
    %v1632 = vpack.c.bf16 %v1624, %v1624
    %v1633 = vpack.c.bf16 %v1626, %v1626
    %v1634 = vld [vmem:[%s3 + $0x118] sm:$0xf]
    %v1635 = vld [vmem:[%s3 + $0x11c] sm:$0xf]
    %v1636 = vld [vmem:[%s3 + $0x120] sm:$0xf]
    %v1637 = vld [vmem:[%s3 + $0x124] sm:$0xf]
    %v1638 = vld [vmem:[%s3 + $0x128] sm:$0xf]
    %v1639 = vld [vmem:[%s3 + $0x12c] sm:$0xf]
    %v1640 = vld [vmem:[%s3 + $0x130] sm:$0xf]
    %v1641 = vld [vmem:[%s3 + $0x134] sm:$0xf]
    %v1650 = vunpack.c.l.b16 %v1634
    %v1651 = vunpack.c.l.b16 %v1635
    %v1652 = vunpack.c.l.b16 %v1636
    %v1653 = vunpack.c.l.b16 %v1637
    %v1654 = vunpack.c.l.b16 %v1638
    %v1655 = vunpack.c.l.b16 %v1639
    %v1656 = vunpack.c.l.b16 %v1640
    %v1657 = vunpack.c.l.b16 %v1641
    %v1658 = vpack.c.b16 %v1651, %v1650
    %v1659 = vpack.c.b16 %v1653, %v1652
    %v1660 = vpack.c.b16 %v1655, %v1654
    %v1661 = vpack.c.b16 %v1657, %v1656
    %1666 = vmatpush.bf16.msra.mxu0 0
    %1667 = vmatpush.bf16.msra.mxu0 0
    %1668 = vmatpush.bf16.msra.mxu0 0
    %1669 = vmatpush.bf16.msra.mxu0 0
    %1670 = vmatpush.bf16.msra.mxu0 %v1661
    %1671 = vmatpush.bf16.msra.mxu0 %v1660
    %1672 = vmatpush.bf16.msra.mxu0 %v1659
    %1673 = vmatpush.bf16.msra.mxu0 %v1658
    %1674 = vmatmul.bf16.gmra.mxu0 %v1596
    %v1675 = vpop.f32.mrf.mxu0
    %v1676 = vadd.f32 0.0, %v1675
    %v1677 = vpop.f32.mrf.mxu0
    %v1678 = vadd.f32 0.0, %v1677
    %1679 = vmatmul.bf16.gmra.mxu0 %v1599
    %v1680 = vpop.f32.mrf.mxu0
    %v1681 = vadd.f32 0.0, %v1680
    %v1682 = vpop.f32.mrf.mxu0
    %v1683 = vadd.f32 0.0, %v1682
    %1684 = vmatmul.bf16.gmra.mxu0 %v1602
    %v1685 = vpop.f32.mrf.mxu0
    %v1686 = vadd.f32 0.0, %v1685
    %v1687 = vpop.f32.mrf.mxu0
    %v1688 = vadd.f32 0.0, %v1687
    %1689 = vdwg.mxu0
    %v1690 = vpack.c.bf16 %v1676, %v1676
    %v1691 = vpack.c.bf16 %v1678, %v1678
    %v1692 = vpack.c.bf16 %v1681, %v1681
    %v1693 = vpack.c.bf16 %v1683, %v1683
    %v1694 = vpack.c.bf16 %v1686, %v1686
    %v1695 = vpack.c.bf16 %v1688, %v1688
    %v1696 = vld [vmem:[%s3 + $0x138] sm:$0xf]
    %v1697 = vld [vmem:[%s3 + $0x13c] sm:$0xf]
    %v1698 = vld [vmem:[%s3 + $0x140] sm:$0xf]
    %v1699 = vld [vmem:[%s3 + $0x144] sm:$0xf]
    %v1700 = vld [vmem:[%s3 + $0x148] sm:$0xf]
    %v1701 = vld [vmem:[%s3 + $0x14c] sm:$0xf]
    %v1702 = vld [vmem:[%s3 + $0x150] sm:$0xf]
    %v1703 = vld [vmem:[%s3 + $0x154] sm:$0xf]
    %v1712 = vunpack.c.l.b16 %v1696
    %v1713 = vunpack.c.l.b16 %v1697
    %v1714 = vunpack.c.l.b16 %v1698
    %v1715 = vunpack.c.l.b16 %v1699
    %v1716 = vunpack.c.l.b16 %v1700
    %v1717 = vunpack.c.l.b16 %v1701
    %v1718 = vunpack.c.l.b16 %v1702
    %v1719 = vunpack.c.l.b16 %v1703
    %v1720 = vpack.c.b16 %v1713, %v1712
    %v1721 = vpack.c.b16 %v1715, %v1714
    %v1722 = vpack.c.b16 %v1717, %v1716
    %v1723 = vpack.c.b16 %v1719, %v1718
    %1728 = vmatpush.bf16.msra.mxu0 0
    %1729 = vmatpush.bf16.msra.mxu0 0
    %1730 = vmatpush.bf16.msra.mxu0 0
    %1731 = vmatpush.bf16.msra.mxu0 0
    %1732 = vmatpush.bf16.msra.mxu0 %v1723
    %1733 = vmatpush.bf16.msra.mxu0 %v1722
    %1734 = vmatpush.bf16.msra.mxu0 %v1721
    %1735 = vmatpush.bf16.msra.mxu0 %v1720
    %1736 = vmatmul.bf16.gmra.mxu0 %v1596
    %v1737 = vpop.f32.mrf.mxu0
    %v1738 = vadd.f32 0.0, %v1737
    %v1739 = vpop.f32.mrf.mxu0
    %v1740 = vadd.f32 0.0, %v1739
    %1741 = vmatmul.bf16.gmra.mxu0 %v1599
    %v1742 = vpop.f32.mrf.mxu0
    %v1743 = vadd.f32 0.0, %v1742
    %v1744 = vpop.f32.mrf.mxu0
    %v1745 = vadd.f32 0.0, %v1744
    %1746 = vmatmul.bf16.gmra.mxu0 %v1602
    %v1747 = vpop.f32.mrf.mxu0
    %v1748 = vadd.f32 0.0, %v1747
    %v1749 = vpop.f32.mrf.mxu0
    %v1750 = vadd.f32 0.0, %v1749
    %1751 = vdwg.mxu0
    %v1752 = vpack.c.bf16 %v1738, %v1738
    %v1753 = vpack.c.bf16 %v1740, %v1740
    %v1754 = vpack.c.bf16 %v1743, %v1743
    %v1755 = vpack.c.bf16 %v1745, %v1745
    %v1756 = vpack.c.bf16 %v1748, %v1748
    %v1757 = vpack.c.bf16 %v1750, %v1750
    %v1761 = vunpack.c.l.b16 %v1628
    %v1762 = vunpack.c.l.b16 %v1629
    %v1763 = vunpack.c.l.b16 %v1630
    %v1764 = vpack.c.b16 %v1762, %v1761
    %v1765 = vpack.c.b16 %v1763, %v1763
    %v1769 = vunpack.c.l.b16 %v1690
    %v1770 = vunpack.c.l.b16 %v1691
    %v1771 = vunpack.c.l.b16 %v1692
    %v1772 = vpack.c.b16 %v1770, %v1769
    %v1773 = vpack.c.b16 %v1771, %v1771
    %v1775 = vsel %vm334, %v1764, 0
    %v1778 = vsel %vm334, %v1765, 0
    %v1781 = vsel %vm334, %v1772, 0
    %v1784 = vsel %vm334, %v1773, 0
    %1786 = vmatpush.bf16.xpose.msra.mxu0 0
    %1787 = vmatpush.bf16.xpose.msra.mxu0 0
    %1788 = vmatpush.bf16.xpose.msra.mxu0 0
    %1789 = vmatpush.bf16.xpose.msra.mxu0 0
    %1790 = vmatpush.bf16.xpose.msra.mxu0 0
    %1791 = vmatpush.bf16.xpose.msra.mxu0 0
    %1792 = vmatpush.bf16.xpose.msra.mxu0 %v1784
    %1793 = vmatpush.bf16.xpose.msra.mxu0 %v1781
    %1794 = vmatmul.bf16.gmra.mxu0 %v1775
    %v1795 = vpop.f32.mrf.mxu0
    %v1796 = vadd.f32 0.0, %v1795
    %v1797 = vpop.f32.mrf.mxu0
    %v1798 = vadd.f32 0.0, %v1797
    %1799 = vmatmul.bf16.gmra.mxu0 %v1778
    %v1800 = vpop.f32.mrf.mxu0
    %v1801 = vadd.f32 0.0, %v1800
    %v1802 = vpop.f32.mrf.mxu0
    %1803 = vdwg.mxu0
    %v1807 = vunpack.c.l.b16 %v1631
    %v1808 = vunpack.c.l.b16 %v1632
    %v1809 = vunpack.c.l.b16 %v1633
    %v1810 = vpack.c.b16 %v1808, %v1807
    %v1811 = vpack.c.b16 %v1809, %v1809
    %v1815 = vunpack.c.l.b16 %v1693
    %v1816 = vunpack.c.l.b16 %v1694
    %v1817 = vunpack.c.l.b16 %v1695
    %v1818 = vpack.c.b16 %v1816, %v1815
    %v1819 = vpack.c.b16 %v1817, %v1817
    %v1821 = vsel %vm334, %v1810, 0
    %v1824 = vsel %vm334, %v1811, 0
    %v1827 = vsel %vm334, %v1818, 0
    %v1830 = vsel %vm334, %v1819, 0
    %1832 = vmatpush.bf16.xpose.msra.mxu0 0
    %1833 = vmatpush.bf16.xpose.msra.mxu0 0
    %1834 = vmatpush.bf16.xpose.msra.mxu0 0
    %1835 = vmatpush.bf16.xpose.msra.mxu0 0
    %1836 = vmatpush.bf16.xpose.msra.mxu0 0
    %1837 = vmatpush.bf16.xpose.msra.mxu0 0
    %1838 = vmatpush.bf16.xpose.msra.mxu0 %v1830
    %1839 = vmatpush.bf16.xpose.msra.mxu0 %v1827
    %1840 = vmatmul.bf16.gmra.mxu0 %v1821
    %v1841 = vpop.f32.mrf.mxu0
    %v1842 = vadd.f32 0.0, %v1841
    %v1843 = vpop.f32.mrf.mxu0
    %v1844 = vadd.f32 0.0, %v1843
    %1845 = vmatmul.bf16.gmra.mxu0 %v1824
    %v1846 = vpop.f32.mrf.mxu0
    %v1847 = vadd.f32 0.0, %v1846
    %v1848 = vpop.f32.mrf.mxu0
    %1849 = vdwg.mxu0
    %v1850 = vmul.f32 %v1796, 0.25
    %v1851 = vmul.f32 %v1798, 0.25
    %v1852 = vmul.f32 %v1801, 0.25
    %v1853 = vmul.f32 %v1842, 0.25
    %v1854 = vmul.f32 %v1844, 0.25
    %v1855 = vmul.f32 %v1847, 0.25
    %v1856 = vsel %vm1557, %v1850, -1e+30
    %v1857 = vsel %vm1558, %v1851, -1e+30
    %v1858 = vsel %vm1559, %v1852, -1e+30
    %v1859 = vsel %vm1557, %v1853, -1e+30
    %v1860 = vsel %vm1558, %v1854, -1e+30
    %v1861 = vsel %vm1559, %v1855, -1e+30
    %vm1862 = vcmask 195584
    %v1863 = vsel %vm1862, %v1856, -inf
    %1864 = vmax.xlane.f32.xlu0 %v1863
    %v1865 = vpop.xlane.xlu0 %1864
    %v1866 = vsel %vm1862, %v1857, -inf
    %1867 = vmax.xlane.f32.xlu0 %v1866
    %v1868 = vpop.xlane.xlu0 %1867
    %v1869 = vsel %vm1862, %v1858, -inf
    %1870 = vmax.xlane.f32.xlu0 %v1869
    %v1871 = vpop.xlane.xlu0 %1870
    %v1872 = vsel %vm1862, %v1859, -inf
    %1873 = vmax.xlane.f32.xlu0 %v1872
    %v1874 = vpop.xlane.xlu0 %1873
    %v1875 = vsel %vm1862, %v1860, -inf
    %1876 = vmax.xlane.f32.xlu0 %v1875
    %v1877 = vpop.xlane.xlu0 %1876
    %v1878 = vsel %vm1862, %v1861, -inf
    %1879 = vmax.xlane.f32.xlu0 %v1878
    %v1880 = vpop.xlane.xlu0 %1879
    %v1881 = vsub.f32 %v1856, %v1865
    %v1882 = vsub.f32 %v1857, %v1868
    %v1883 = vsub.f32 %v1858, %v1871
    %v1884 = vsub.f32 %v1859, %v1874
    %v1885 = vsub.f32 %v1860, %v1877
    %v1886 = vsub.f32 %v1861, %v1880
    %v1887 = vmul.f32 %v1881, 1.442695
    %v1888 = vpow.pop %v1887
    %v1889 = vmul.f32 %v1882, 1.442695
    %v1890 = vpow.pop %v1889
    %v1891 = vmul.f32 %v1883, 1.442695
    %v1892 = vpow.pop %v1891
    %v1893 = vmul.f32 %v1884, 1.442695
    %v1894 = vpow.pop %v1893
    %v1895 = vmul.f32 %v1885, 1.442695
    %v1896 = vpow.pop %v1895
    %v1897 = vmul.f32 %v1886, 1.442695
    %v1898 = vpow.pop %v1897
    %v1899 = vsel %vm1862, %v1888, 0.0
    %1900 = vadd.xlane.f32.xlu0 %v1899
    %v1901 = vpop.xlane.xlu0 %1900
    %v1902 = vsel %vm1862, %v1890, 0.0
    %1903 = vadd.xlane.f32.xlu0 %v1902
    %v1904 = vpop.xlane.xlu0 %1903
    %v1905 = vsel %vm1862, %v1892, 0.0
    %1906 = vadd.xlane.f32.xlu0 %v1905
    %v1907 = vpop.xlane.xlu0 %1906
    %v1908 = vsel %vm1862, %v1894, 0.0
    %1909 = vadd.xlane.f32.xlu0 %v1908
    %v1910 = vpop.xlane.xlu0 %1909
    %v1911 = vsel %vm1862, %v1896, 0.0
    %1912 = vadd.xlane.f32.xlu0 %v1911
    %v1913 = vpop.xlane.xlu0 %1912
    %v1914 = vsel %vm1862, %v1898, 0.0
    %1915 = vadd.xlane.f32.xlu0 %v1914
    %v1916 = vpop.xlane.xlu0 %1915
    %v1917 = vrcp.pop %v1901
    %v1918 = vrcp.pop %v1904
    %v1919 = vrcp.pop %v1907
    %v1920 = vrcp.pop %v1910
    %v1921 = vrcp.pop %v1913
    %v1922 = vrcp.pop %v1916
    %v1923 = vmul.f32 %v1888, %v1917
    %v1924 = vmul.f32 %v1890, %v1918
    %v1925 = vmul.f32 %v1892, %v1919
    %v1926 = vmul.f32 %v1894, %v1920
    %v1927 = vmul.f32 %v1896, %v1921
    %v1928 = vmul.f32 %v1898, %v1922
    %v1929 = vpack.c.bf16 %v1923, %v1923
    %v1930 = vpack.c.bf16 %v1924, %v1924
    %v1931 = vpack.c.bf16 %v1925, %v1925
    %v1932 = vpack.c.bf16 %v1926, %v1926
    %v1933 = vpack.c.bf16 %v1927, %v1927
    %v1934 = vpack.c.bf16 %v1928, %v1928
    %v1938 = vunpack.c.l.b16 %v1929
    %v1939 = vunpack.c.l.b16 %v1930
    %v1940 = vunpack.c.l.b16 %v1931
    %v1941 = vpack.c.b16 %v1939, %v1938
    %v1942 = vpack.c.b16 %v1940, %v1940
    %v1946 = vunpack.c.l.b16 %v1752
    %v1947 = vunpack.c.l.b16 %v1753
    %v1948 = vunpack.c.l.b16 %v1754
    %v1949 = vpack.c.b16 %v1947, %v1946
    %v1950 = vpack.c.b16 %v1948, %v1948
    %v1953 = vsel %vm1862, %v1941, 0
    %v1956 = vsel %vm1862, %v1942, 0
    %vm1958 = vcmask 1043456
    %v1960 = vsel %vm1958, %v1950, 0
    %1962 = vmatpush.bf16.msra.mxu0 0
    %1963 = vmatpush.bf16.msra.mxu0 0
    %1964 = vmatpush.bf16.msra.mxu0 0
    %1965 = vmatpush.bf16.msra.mxu0 0
    %1966 = vmatpush.bf16.msra.mxu0 0
    %1967 = vmatpush.bf16.msra.mxu0 0
    %1968 = vmatpush.bf16.msra.mxu0 %v1960
    %1969 = vmatpush.bf16.msra.mxu0 %v1949
    %1970 = vmatmul.bf16.gmra.mxu0 %v1953
    %v1971 = vpop.f32.mrf.mxu0
    %v1972 = vadd.f32 0.0, %v1971
    %v1973 = vpop.f32.mrf.mxu0
    %v1974 = vadd.f32 0.0, %v1973
    %1975 = vmatmul.bf16.gmra.mxu0 %v1956
    %v1976 = vpop.f32.mrf.mxu0
    %v1977 = vadd.f32 0.0, %v1976
    %v1978 = vpop.f32.mrf.mxu0
    %1979 = vdwg.mxu0
    %v1983 = vunpack.c.l.b16 %v1932
    %v1984 = vunpack.c.l.b16 %v1933
    %v1985 = vunpack.c.l.b16 %v1934
    %v1986 = vpack.c.b16 %v1984, %v1983
    %v1987 = vpack.c.b16 %v1985, %v1985
    %v1991 = vunpack.c.l.b16 %v1755
    %v1992 = vunpack.c.l.b16 %v1756
    %v1993 = vunpack.c.l.b16 %v1757
    %v1994 = vpack.c.b16 %v1992, %v1991
    %v1995 = vpack.c.b16 %v1993, %v1993
    %v1998 = vsel %vm1862, %v1986, 0
    %v2001 = vsel %vm1862, %v1987, 0
    %v2004 = vsel %vm1958, %v1995, 0
    %2006 = vmatpush.bf16.msra.mxu0 0
    %2007 = vmatpush.bf16.msra.mxu0 0
    %2008 = vmatpush.bf16.msra.mxu0 0
    %2009 = vmatpush.bf16.msra.mxu0 0
    %2010 = vmatpush.bf16.msra.mxu0 0
    %2011 = vmatpush.bf16.msra.mxu0 0
    %2012 = vmatpush.bf16.msra.mxu0 %v2004
    %2013 = vmatpush.bf16.msra.mxu0 %v1994
    %2014 = vmatmul.bf16.gmra.mxu0 %v1998
    %v2015 = vpop.f32.mrf.mxu0
    %v2016 = vadd.f32 0.0, %v2015
    %v2017 = vpop.f32.mrf.mxu0
    %v2018 = vadd.f32 0.0, %v2017
    %2019 = vmatmul.bf16.gmra.mxu0 %v2001
    %v2020 = vpop.f32.mrf.mxu0
    %v2021 = vadd.f32 0.0, %v2020
    %v2022 = vpop.f32.mrf.mxu0
    %2023 = vdwg.mxu0
    %v2024 = vld [vmem:[%s3 + $0x158] sm:$0xf]
    %v2025 = vld [vmem:[%s3 + $0x15c] sm:$0xf]
    %v2026 = vpack.c.bf16 %v1974, %v1972
    %v2027 = vpack.c.bf16 %v2016, %v1977
    %v2028 = vpack.c.bf16 %v2021, %v2018
    %v2029 = vld [vmem:[%s3 + $0xf8] sm:$0xf]
    %v2030 = vld [vmem:[%s3 + $0xfc] sm:$0xf]
    %v2031 = vld [vmem:[%s3 + $0x100] sm:$0xf]
    %v2032 = vld [vmem:[%s3 + $0x104] sm:$0xf]
    %v2033 = vld [vmem:[%s3 + $0x108] sm:$0xf]
    %v2034 = vld [vmem:[%s3 + $0x10c] sm:$0xf]
    %v2035 = vld [vmem:[%s3 + $0x110] sm:$0xf]
    %v2036 = vld [vmem:[%s3 + $0x114] sm:$0xf]
    %v2045 = vunpack.c.l.b16 %v2029
    %v2046 = vunpack.c.l.b16 %v2030
    %v2047 = vunpack.c.l.b16 %v2031
    %v2048 = vunpack.c.l.b16 %v2032
    %v2049 = vunpack.c.l.b16 %v2033
    %v2050 = vunpack.c.l.b16 %v2034
    %v2051 = vunpack.c.l.b16 %v2035
    %v2052 = vunpack.c.l.b16 %v2036
    %v2053 = vpack.c.b16 %v2046, %v2045
    %v2054 = vpack.c.b16 %v2048, %v2047
    %v2055 = vpack.c.b16 %v2050, %v2049
    %v2056 = vpack.c.b16 %v2052, %v2051
    %2057 = vrot.lane.b32.xlu0 %v2053, 112
    %v2058 = vpop.permute.xlu0 %2057
    %2059 = vrot.lane.b32.xlu0 %v2054, 112
    %v2060 = vpop.permute.xlu0 %2059
    %2061 = vrot.lane.b32.xlu0 %v2055, 112
    %v2062 = vpop.permute.xlu0 %2061
    %2063 = vrot.lane.b32.xlu0 %v2056, 112
    %v2064 = vpop.permute.xlu0 %2063
    %2069 = vmatpush.bf16.msra.mxu0 0
    %2070 = vmatpush.bf16.msra.mxu0 0
    %2071 = vmatpush.bf16.msra.mxu0 0
    %2072 = vmatpush.bf16.msra.mxu0 0
    %2073 = vmatpush.bf16.msra.mxu0 %v2064
    %2074 = vmatpush.bf16.msra.mxu0 %v2062
    %2075 = vmatpush.bf16.msra.mxu0 %v2060
    %2076 = vmatpush.bf16.msra.mxu0 %v2058
    %2077 = vmatmul.bf16.gmra.mxu0 %v1596
    %v2078 = vpop.f32.mrf.mxu0
    %v2079 = vadd.f32 0.0, %v2078
    %v2080 = vpop.f32.mrf.mxu0
    %v2081 = vadd.f32 0.0, %v2080
    %2082 = vmatmul.bf16.gmra.mxu0 %v1599
    %v2083 = vpop.f32.mrf.mxu0
    %v2084 = vadd.f32 0.0, %v2083
    %v2085 = vpop.f32.mrf.mxu0
    %v2086 = vadd.f32 0.0, %v2085
    %2087 = vmatmul.bf16.gmra.mxu0 %v1602
    %v2088 = vpop.f32.mrf.mxu0
    %v2089 = vadd.f32 0.0, %v2088
    %v2090 = vpop.f32.mrf.mxu0
    %v2091 = vadd.f32 0.0, %v2090
    %2092 = vdwg.mxu0
    %v2093 = vpack.c.bf16 %v2079, %v2079
    %v2094 = vpack.c.bf16 %v2081, %v2081
    %v2095 = vpack.c.bf16 %v2084, %v2084
    %v2096 = vpack.c.bf16 %v2086, %v2086
    %v2097 = vpack.c.bf16 %v2089, %v2089
    %v2098 = vpack.c.bf16 %v2091, %v2091
    %v2099 = vld [vmem:[%s3 + $0x118] sm:$0xf]
    %v2100 = vld [vmem:[%s3 + $0x11c] sm:$0xf]
    %v2101 = vld [vmem:[%s3 + $0x120] sm:$0xf]
    %v2102 = vld [vmem:[%s3 + $0x124] sm:$0xf]
    %v2103 = vld [vmem:[%s3 + $0x128] sm:$0xf]
    %v2104 = vld [vmem:[%s3 + $0x12c] sm:$0xf]
    %v2105 = vld [vmem:[%s3 + $0x130] sm:$0xf]
    %v2106 = vld [vmem:[%s3 + $0x134] sm:$0xf]
    %v2115 = vunpack.c.l.b16 %v2099
    %v2116 = vunpack.c.l.b16 %v2100
    %v2117 = vunpack.c.l.b16 %v2101
    %v2118 = vunpack.c.l.b16 %v2102
    %v2119 = vunpack.c.l.b16 %v2103
    %v2120 = vunpack.c.l.b16 %v2104
    %v2121 = vunpack.c.l.b16 %v2105
    %v2122 = vunpack.c.l.b16 %v2106
    %v2123 = vpack.c.b16 %v2116, %v2115
    %v2124 = vpack.c.b16 %v2118, %v2117
    %v2125 = vpack.c.b16 %v2120, %v2119
    %v2126 = vpack.c.b16 %v2122, %v2121
    %2127 = vrot.lane.b32.xlu0 %v2123, 112
    %v2128 = vpop.permute.xlu0 %2127
    %2129 = vrot.lane.b32.xlu0 %v2124, 112
    %v2130 = vpop.permute.xlu0 %2129
    %2131 = vrot.lane.b32.xlu0 %v2125, 112
    %v2132 = vpop.permute.xlu0 %2131
    %2133 = vrot.lane.b32.xlu0 %v2126, 112
    %v2134 = vpop.permute.xlu0 %2133
    %2139 = vmatpush.bf16.msra.mxu0 0
    %2140 = vmatpush.bf16.msra.mxu0 0
    %2141 = vmatpush.bf16.msra.mxu0 0
    %2142 = vmatpush.bf16.msra.mxu0 0
    %2143 = vmatpush.bf16.msra.mxu0 %v2134
    %2144 = vmatpush.bf16.msra.mxu0 %v2132
    %2145 = vmatpush.bf16.msra.mxu0 %v2130
    %2146 = vmatpush.bf16.msra.mxu0 %v2128
    %2147 = vmatmul.bf16.gmra.mxu0 %v1596
    %v2148 = vpop.f32.mrf.mxu0
    %v2149 = vadd.f32 0.0, %v2148
    %v2150 = vpop.f32.mrf.mxu0
    %v2151 = vadd.f32 0.0, %v2150
    %2152 = vmatmul.bf16.gmra.mxu0 %v1599
    %v2153 = vpop.f32.mrf.mxu0
    %v2154 = vadd.f32 0.0, %v2153
    %v2155 = vpop.f32.mrf.mxu0
    %v2156 = vadd.f32 0.0, %v2155
    %2157 = vmatmul.bf16.gmra.mxu0 %v1602
    %v2158 = vpop.f32.mrf.mxu0
    %v2159 = vadd.f32 0.0, %v2158
    %v2160 = vpop.f32.mrf.mxu0
    %v2161 = vadd.f32 0.0, %v2160
    %2162 = vdwg.mxu0
    %v2163 = vpack.c.bf16 %v2149, %v2149
    %v2164 = vpack.c.bf16 %v2151, %v2151
    %v2165 = vpack.c.bf16 %v2154, %v2154
    %v2166 = vpack.c.bf16 %v2156, %v2156
    %v2167 = vpack.c.bf16 %v2159, %v2159
    %v2168 = vpack.c.bf16 %v2161, %v2161
    %v2169 = vld [vmem:[%s3 + $0x138] sm:$0xf]
    %v2170 = vld [vmem:[%s3 + $0x13c] sm:$0xf]
    %v2171 = vld [vmem:[%s3 + $0x140] sm:$0xf]
    %v2172 = vld [vmem:[%s3 + $0x144] sm:$0xf]
    %v2173 = vld [vmem:[%s3 + $0x148] sm:$0xf]
    %v2174 = vld [vmem:[%s3 + $0x14c] sm:$0xf]
    %v2175 = vld [vmem:[%s3 + $0x150] sm:$0xf]
    %v2176 = vld [vmem:[%s3 + $0x154] sm:$0xf]
    %v2185 = vunpack.c.l.b16 %v2169
    %v2186 = vunpack.c.l.b16 %v2170
    %v2187 = vunpack.c.l.b16 %v2171
    %v2188 = vunpack.c.l.b16 %v2172
    %v2189 = vunpack.c.l.b16 %v2173
    %v2190 = vunpack.c.l.b16 %v2174
    %v2191 = vunpack.c.l.b16 %v2175
    %v2192 = vunpack.c.l.b16 %v2176
    %v2193 = vpack.c.b16 %v2186, %v2185
    %v2194 = vpack.c.b16 %v2188, %v2187
    %v2195 = vpack.c.b16 %v2190, %v2189
    %v2196 = vpack.c.b16 %v2192, %v2191
    %2197 = vrot.lane.b32.xlu0 %v2193, 112
    %v2198 = vpop.permute.xlu0 %2197
    %2199 = vrot.lane.b32.xlu0 %v2194, 112
    %v2200 = vpop.permute.xlu0 %2199
    %2201 = vrot.lane.b32.xlu0 %v2195, 112
    %v2202 = vpop.permute.xlu0 %2201
    %2203 = vrot.lane.b32.xlu0 %v2196, 112
    %v2204 = vpop.permute.xlu0 %2203
    %2209 = vmatpush.bf16.msra.mxu0 0
    %2210 = vmatpush.bf16.msra.mxu0 0
    %2211 = vmatpush.bf16.msra.mxu0 0
    %2212 = vmatpush.bf16.msra.mxu0 0
    %2213 = vmatpush.bf16.msra.mxu0 %v2204
    %2214 = vmatpush.bf16.msra.mxu0 %v2202
    %2215 = vmatpush.bf16.msra.mxu0 %v2200
    %2216 = vmatpush.bf16.msra.mxu0 %v2198
    %2217 = vmatmul.bf16.gmra.mxu0 %v1596
    %v2218 = vpop.f32.mrf.mxu0
    %v2219 = vadd.f32 0.0, %v2218
    %v2220 = vpop.f32.mrf.mxu0
    %v2221 = vadd.f32 0.0, %v2220
    %2222 = vmatmul.bf16.gmra.mxu0 %v1599
    %v2223 = vpop.f32.mrf.mxu0
    %v2224 = vadd.f32 0.0, %v2223
    %v2225 = vpop.f32.mrf.mxu0
    %v2226 = vadd.f32 0.0, %v2225
    %2227 = vmatmul.bf16.gmra.mxu0 %v1602
    %v2228 = vpop.f32.mrf.mxu0
    %v2229 = vadd.f32 0.0, %v2228
    %v2230 = vpop.f32.mrf.mxu0
    %v2231 = vadd.f32 0.0, %v2230
    %2232 = vdwg.mxu0
    %v2233 = vpack.c.bf16 %v2219, %v2219
    %v2234 = vpack.c.bf16 %v2221, %v2221
    %v2235 = vpack.c.bf16 %v2224, %v2224
    %v2236 = vpack.c.bf16 %v2226, %v2226
    %v2237 = vpack.c.bf16 %v2229, %v2229
    %v2238 = vpack.c.bf16 %v2231, %v2231
    %v2242 = vunpack.c.l.b16 %v2093
    %v2243 = vunpack.c.l.b16 %v2094
    %v2244 = vunpack.c.l.b16 %v2095
    %v2245 = vpack.c.b16 %v2243, %v2242
    %v2246 = vpack.c.b16 %v2244, %v2244
    %v2250 = vunpack.c.l.b16 %v2163
    %v2251 = vunpack.c.l.b16 %v2164
    %v2252 = vunpack.c.l.b16 %v2165
    %v2253 = vpack.c.b16 %v2251, %v2250
    %v2254 = vpack.c.b16 %v2252, %v2252
    %v2256 = vsel %vm334, %v2245, 0
    %v2259 = vsel %vm334, %v2246, 0
    %v2262 = vsel %vm334, %v2253, 0
    %v2265 = vsel %vm334, %v2254, 0
    %2267 = vmatpush.bf16.xpose.msra.mxu0 0
    %2268 = vmatpush.bf16.xpose.msra.mxu0 0
    %2269 = vmatpush.bf16.xpose.msra.mxu0 0
    %2270 = vmatpush.bf16.xpose.msra.mxu0 0
    %2271 = vmatpush.bf16.xpose.msra.mxu0 0
    %2272 = vmatpush.bf16.xpose.msra.mxu0 0
    %2273 = vmatpush.bf16.xpose.msra.mxu0 %v2265
    %2274 = vmatpush.bf16.xpose.msra.mxu0 %v2262
    %2275 = vmatmul.bf16.gmra.mxu0 %v2256
    %v2276 = vpop.f32.mrf.mxu0
    %v2277 = vadd.f32 0.0, %v2276
    %v2278 = vpop.f32.mrf.mxu0
    %v2279 = vadd.f32 0.0, %v2278
    %2280 = vmatmul.bf16.gmra.mxu0 %v2259
    %v2281 = vpop.f32.mrf.mxu0
    %v2282 = vadd.f32 0.0, %v2281
    %v2283 = vpop.f32.mrf.mxu0
    %2284 = vdwg.mxu0
    %v2288 = vunpack.c.l.b16 %v2096
    %v2289 = vunpack.c.l.b16 %v2097
    %v2290 = vunpack.c.l.b16 %v2098
    %v2291 = vpack.c.b16 %v2289, %v2288
    %v2292 = vpack.c.b16 %v2290, %v2290
    %v2296 = vunpack.c.l.b16 %v2166
    %v2297 = vunpack.c.l.b16 %v2167
    %v2298 = vunpack.c.l.b16 %v2168
    %v2299 = vpack.c.b16 %v2297, %v2296
    %v2300 = vpack.c.b16 %v2298, %v2298
    %v2302 = vsel %vm334, %v2291, 0
    %v2305 = vsel %vm334, %v2292, 0
    %v2308 = vsel %vm334, %v2299, 0
    %v2311 = vsel %vm334, %v2300, 0
    %2313 = vmatpush.bf16.xpose.msra.mxu0 0
    %2314 = vmatpush.bf16.xpose.msra.mxu0 0
    %2315 = vmatpush.bf16.xpose.msra.mxu0 0
    %2316 = vmatpush.bf16.xpose.msra.mxu0 0
    %2317 = vmatpush.bf16.xpose.msra.mxu0 0
    %2318 = vmatpush.bf16.xpose.msra.mxu0 0
    %2319 = vmatpush.bf16.xpose.msra.mxu0 %v2311
    %2320 = vmatpush.bf16.xpose.msra.mxu0 %v2308
    %2321 = vmatmul.bf16.gmra.mxu0 %v2302
    %v2322 = vpop.f32.mrf.mxu0
    %v2323 = vadd.f32 0.0, %v2322
    %v2324 = vpop.f32.mrf.mxu0
    %v2325 = vadd.f32 0.0, %v2324
    %2326 = vmatmul.bf16.gmra.mxu0 %v2305
    %v2327 = vpop.f32.mrf.mxu0
    %v2328 = vadd.f32 0.0, %v2327
    %v2329 = vpop.f32.mrf.mxu0
    %2330 = vdwg.mxu0
    %v2331 = vmul.f32 %v2277, 0.25
    %v2332 = vmul.f32 %v2279, 0.25
    %v2333 = vmul.f32 %v2282, 0.25
    %v2334 = vmul.f32 %v2323, 0.25
    %v2335 = vmul.f32 %v2325, 0.25
    %v2336 = vmul.f32 %v2328, 0.25
    %v2337 = vsel %vm1557, %v2331, -1e+30
    %v2338 = vsel %vm1558, %v2332, -1e+30
    %v2339 = vsel %vm1559, %v2333, -1e+30
    %v2340 = vsel %vm1557, %v2334, -1e+30
    %v2341 = vsel %vm1558, %v2335, -1e+30
    %v2342 = vsel %vm1559, %v2336, -1e+30
    %v2343 = vsel %vm1862, %v2337, -inf
    %2344 = vmax.xlane.f32.xlu0 %v2343
    %v2345 = vpop.xlane.xlu0 %2344
    %v2346 = vsel %vm1862, %v2338, -inf
    %2347 = vmax.xlane.f32.xlu0 %v2346
    %v2348 = vpop.xlane.xlu0 %2347
    %v2349 = vsel %vm1862, %v2339, -inf
    %2350 = vmax.xlane.f32.xlu0 %v2349
    %v2351 = vpop.xlane.xlu0 %2350
    %v2352 = vsel %vm1862, %v2340, -inf
    %2353 = vmax.xlane.f32.xlu0 %v2352
    %v2354 = vpop.xlane.xlu0 %2353
    %v2355 = vsel %vm1862, %v2341, -inf
    %2356 = vmax.xlane.f32.xlu0 %v2355
    %v2357 = vpop.xlane.xlu0 %2356
    %v2358 = vsel %vm1862, %v2342, -inf
    %2359 = vmax.xlane.f32.xlu0 %v2358
    %v2360 = vpop.xlane.xlu0 %2359
    %v2361 = vsub.f32 %v2337, %v2345
    %v2362 = vsub.f32 %v2338, %v2348
    %v2363 = vsub.f32 %v2339, %v2351
    %v2364 = vsub.f32 %v2340, %v2354
    %v2365 = vsub.f32 %v2341, %v2357
    %v2366 = vsub.f32 %v2342, %v2360
    %v2367 = vmul.f32 %v2361, 1.442695
    %v2368 = vpow.pop %v2367
    %v2369 = vmul.f32 %v2362, 1.442695
    %v2370 = vpow.pop %v2369
    %v2371 = vmul.f32 %v2363, 1.442695
    %v2372 = vpow.pop %v2371
    %v2373 = vmul.f32 %v2364, 1.442695
    %v2374 = vpow.pop %v2373
    %v2375 = vmul.f32 %v2365, 1.442695
    %v2376 = vpow.pop %v2375
    %v2377 = vmul.f32 %v2366, 1.442695
    %v2378 = vpow.pop %v2377
    %v2379 = vsel %vm1862, %v2368, 0.0
    %2380 = vadd.xlane.f32.xlu0 %v2379
    %v2381 = vpop.xlane.xlu0 %2380
    %v2382 = vsel %vm1862, %v2370, 0.0
    %2383 = vadd.xlane.f32.xlu0 %v2382
    %v2384 = vpop.xlane.xlu0 %2383
    %v2385 = vsel %vm1862, %v2372, 0.0
    %2386 = vadd.xlane.f32.xlu0 %v2385
    %v2387 = vpop.xlane.xlu0 %2386
    %v2388 = vsel %vm1862, %v2374, 0.0
    %2389 = vadd.xlane.f32.xlu0 %v2388
    %v2390 = vpop.xlane.xlu0 %2389
    %v2391 = vsel %vm1862, %v2376, 0.0
    %2392 = vadd.xlane.f32.xlu0 %v2391
    %v2393 = vpop.xlane.xlu0 %2392
    %v2394 = vsel %vm1862, %v2378, 0.0
    %2395 = vadd.xlane.f32.xlu0 %v2394
    %v2396 = vpop.xlane.xlu0 %2395
    %v2397 = vrcp.pop %v2381
    %v2398 = vrcp.pop %v2384
    %v2399 = vrcp.pop %v2387
    %v2400 = vrcp.pop %v2390
    %v2401 = vrcp.pop %v2393
    %v2402 = vrcp.pop %v2396
    %v2403 = vmul.f32 %v2368, %v2397
    %v2404 = vmul.f32 %v2370, %v2398
    %v2405 = vmul.f32 %v2372, %v2399
    %v2406 = vmul.f32 %v2374, %v2400
    %v2407 = vmul.f32 %v2376, %v2401
    %v2408 = vmul.f32 %v2378, %v2402
    %v2409 = vpack.c.bf16 %v2403, %v2403
    %v2410 = vpack.c.bf16 %v2404, %v2404
    %v2411 = vpack.c.bf16 %v2405, %v2405
    %v2412 = vpack.c.bf16 %v2406, %v2406
    %v2413 = vpack.c.bf16 %v2407, %v2407
    %v2414 = vpack.c.bf16 %v2408, %v2408
    %v2418 = vunpack.c.l.b16 %v2409
    %v2419 = vunpack.c.l.b16 %v2410
    %v2420 = vunpack.c.l.b16 %v2411
    %v2421 = vpack.c.b16 %v2419, %v2418
    %v2422 = vpack.c.b16 %v2420, %v2420
    %v2426 = vunpack.c.l.b16 %v2233
    %v2427 = vunpack.c.l.b16 %v2234
    %v2428 = vunpack.c.l.b16 %v2235
    %v2429 = vpack.c.b16 %v2427, %v2426
    %v2430 = vpack.c.b16 %v2428, %v2428
    %v2433 = vsel %vm1862, %v2421, 0
    %v2436 = vsel %vm1862, %v2422, 0
    %v2439 = vsel %vm1958, %v2430, 0
    %2441 = vmatpush.bf16.msra.mxu0 0
    %2442 = vmatpush.bf16.msra.mxu0 0
    %2443 = vmatpush.bf16.msra.mxu0 0
    %2444 = vmatpush.bf16.msra.mxu0 0
    %2445 = vmatpush.bf16.msra.mxu0 0
    %2446 = vmatpush.bf16.msra.mxu0 0
    %2447 = vmatpush.bf16.msra.mxu0 %v2439
    %2448 = vmatpush.bf16.msra.mxu0 %v2429
    %2449 = vmatmul.bf16.gmra.mxu0 %v2433
    %v2450 = vpop.f32.mrf.mxu0
    %v2451 = vadd.f32 0.0, %v2450
    %v2452 = vpop.f32.mrf.mxu0
    %v2453 = vadd.f32 0.0, %v2452
    %2454 = vmatmul.bf16.gmra.mxu0 %v2436
    %v2455 = vpop.f32.mrf.mxu0
    %v2456 = vadd.f32 0.0, %v2455
    %v2457 = vpop.f32.mrf.mxu0
    %2458 = vdwg.mxu0
    %v2462 = vunpack.c.l.b16 %v2412
    %v2463 = vunpack.c.l.b16 %v2413
    %v2464 = vunpack.c.l.b16 %v2414
    %v2465 = vpack.c.b16 %v2463, %v2462
    %v2466 = vpack.c.b16 %v2464, %v2464
    %v2470 = vunpack.c.l.b16 %v2236
    %v2471 = vunpack.c.l.b16 %v2237
    %v2472 = vunpack.c.l.b16 %v2238
    %v2473 = vpack.c.b16 %v2471, %v2470
    %v2474 = vpack.c.b16 %v2472, %v2472
    %v2477 = vsel %vm1862, %v2465, 0
    %v2480 = vsel %vm1862, %v2466, 0
    %v2483 = vsel %vm1958, %v2474, 0
    %2485 = vmatpush.bf16.msra.mxu0 0
    %2486 = vmatpush.bf16.msra.mxu0 0
    %2487 = vmatpush.bf16.msra.mxu0 0
    %2488 = vmatpush.bf16.msra.mxu0 0
    %2489 = vmatpush.bf16.msra.mxu0 0
    %2490 = vmatpush.bf16.msra.mxu0 0
    %2491 = vmatpush.bf16.msra.mxu0 %v2483
    %2492 = vmatpush.bf16.msra.mxu0 %v2473
    %2493 = vmatmul.bf16.gmra.mxu0 %v2477
    %v2494 = vpop.f32.mrf.mxu0
    %v2495 = vadd.f32 0.0, %v2494
    %v2496 = vpop.f32.mrf.mxu0
    %v2497 = vadd.f32 0.0, %v2496
    %2498 = vmatmul.bf16.gmra.mxu0 %v2480
    %v2499 = vpop.f32.mrf.mxu0
    %v2500 = vadd.f32 0.0, %v2499
    %v2501 = vpop.f32.mrf.mxu0
    %2502 = vdwg.mxu0
    %v2503 = vld [vmem:[%s3 + $0x160] sm:$0xf]
    %v2504 = vld [vmem:[%s3 + $0x164] sm:$0xf]
    %v2505 = vpack.c.bf16 %v2453, %v2451
    %v2506 = vpack.c.bf16 %v2495, %v2456
    %v2507 = vpack.c.bf16 %v2500, %v2497
    %v2510 = vunpack.c.l.b16 %v2503
    %v2511 = vunpack.c.l.b16 %v2504
    %v2512 = vpack.c.b16 %v2511, %v2510
    %v2515 = vsel %vm334, %v2505, 0
    %v2518 = vsel %vm334, %v2506, 0
    %v2521 = vsel %vm334, %v2507, 0
    %2523 = vmatpush.bf16.msra.mxu0 0
    %2524 = vmatpush.bf16.msra.mxu0 0
    %2525 = vmatpush.bf16.msra.mxu0 0
    %2526 = vmatpush.bf16.msra.mxu0 0
    %2527 = vmatpush.bf16.msra.mxu0 0
    %2528 = vmatpush.bf16.msra.mxu0 0
    %2529 = vmatpush.bf16.msra.mxu0 0
    %2530 = vmatpush.bf16.msra.mxu0 %v2512
    %2531 = vmatmul.bf16.gmra.mxu0 %v2515
    %v2532 = vpop.f32.mrf.mxu0
    %v2533 = vadd.f32 0.0, %v2532
    %v2534 = vpop.f32.mrf.mxu0
    %v2535 = vadd.f32 0.0, %v2534
    %2536 = vmatmul.bf16.gmra.mxu0 %v2518
    %v2537 = vpop.f32.mrf.mxu0
    %v2538 = vadd.f32 0.0, %v2537
    %v2539 = vpop.f32.mrf.mxu0
    %v2540 = vadd.f32 0.0, %v2539
    %2541 = vmatmul.bf16.gmra.mxu0 %v2521
    %v2542 = vpop.f32.mrf.mxu0
    %v2543 = vadd.f32 0.0, %v2542
    %v2544 = vpop.f32.mrf.mxu0
    %v2545 = vadd.f32 0.0, %v2544
    %2546 = vdwg.mxu0
    %v2549 = vunpack.c.l.b16 %v2024
    %v2550 = vunpack.c.l.b16 %v2025
    %v2551 = vpack.c.b16 %v2550, %v2549
    %v2554 = vsel %vm334, %v2026, 0
    %v2557 = vsel %vm334, %v2027, 0
    %v2560 = vsel %vm334, %v2028, 0
    %2562 = vmatpush.bf16.msra.mxu0 0
    %2563 = vmatpush.bf16.msra.mxu0 0
    %2564 = vmatpush.bf16.msra.mxu0 0
    %2565 = vmatpush.bf16.msra.mxu0 0
    %2566 = vmatpush.bf16.msra.mxu0 0
    %2567 = vmatpush.bf16.msra.mxu0 0
    %2568 = vmatpush.bf16.msra.mxu0 0
    %2569 = vmatpush.bf16.msra.mxu0 %v2551
    %2570 = vmatmul.bf16.gmra.mxu0 %v2554
    %v2571 = vpop.f32.mrf.mxu0
    %v2572 = vadd.f32 %v2533, %v2571
    %v2573 = vpop.f32.mrf.mxu0
    %v2574 = vadd.f32 %v2535, %v2573
    %2575 = vmatmul.bf16.gmra.mxu0 %v2557
    %v2576 = vpop.f32.mrf.mxu0
    %v2577 = vadd.f32 %v2538, %v2576
    %v2578 = vpop.f32.mrf.mxu0
    %v2579 = vadd.f32 %v2540, %v2578
    %2580 = vmatmul.bf16.gmra.mxu0 %v2560
    %v2581 = vpop.f32.mrf.mxu0
    %v2582 = vadd.f32 %v2543, %v2581
    %v2583 = vpop.f32.mrf.mxu0
    %v2584 = vadd.f32 %v2545, %v2583
    %2585 = vdwg.mxu0
    %v2586 = vld [vmem:[%s3 + $0xf8] sm:$0xf]
    %v2587 = vld [vmem:[%s3 + $0xfc] sm:$0xf]
    %v2588 = vld [vmem:[%s3 + $0x100] sm:$0xf]
    %v2589 = vld [vmem:[%s3 + $0x104] sm:$0xf]
    %v2590 = vld [vmem:[%s3 + $0x108] sm:$0xf]
    %v2591 = vld [vmem:[%s3 + $0x10c] sm:$0xf]
    %v2592 = vld [vmem:[%s3 + $0x110] sm:$0xf]
    %v2593 = vld [vmem:[%s3 + $0x114] sm:$0xf]
    %v2602 = vunpack.c.l.b16 %v2586
    %v2603 = vunpack.c.l.b16 %v2587
    %v2604 = vunpack.c.l.b16 %v2588
    %v2605 = vunpack.c.l.b16 %v2589
    %v2606 = vunpack.c.l.b16 %v2590
    %v2607 = vunpack.c.l.b16 %v2591
    %v2608 = vunpack.c.l.b16 %v2592
    %v2609 = vunpack.c.l.b16 %v2593
    %v2610 = vpack.c.b16 %v2603, %v2602
    %v2611 = vpack.c.b16 %v2605, %v2604
    %v2612 = vpack.c.b16 %v2607, %v2606
    %v2613 = vpack.c.b16 %v2609, %v2608
    %2614 = vrot.lane.b32.xlu0 %v2610, 96
    %v2615 = vpop.permute.xlu0 %2614
    %2616 = vrot.lane.b32.xlu0 %v2611, 96
    %v2617 = vpop.permute.xlu0 %2616
    %2618 = vrot.lane.b32.xlu0 %v2612, 96
    %v2619 = vpop.permute.xlu0 %2618
    %2620 = vrot.lane.b32.xlu0 %v2613, 96
    %v2621 = vpop.permute.xlu0 %2620
    %2626 = vmatpush.bf16.msra.mxu0 0
    %2627 = vmatpush.bf16.msra.mxu0 0
    %2628 = vmatpush.bf16.msra.mxu0 0
    %2629 = vmatpush.bf16.msra.mxu0 0
    %2630 = vmatpush.bf16.msra.mxu0 %v2621
    %2631 = vmatpush.bf16.msra.mxu0 %v2619
    %2632 = vmatpush.bf16.msra.mxu0 %v2617
    %2633 = vmatpush.bf16.msra.mxu0 %v2615
    %2634 = vmatmul.bf16.gmra.mxu0 %v1596
    %v2635 = vpop.f32.mrf.mxu0
    %v2636 = vadd.f32 0.0, %v2635
    %v2637 = vpop.f32.mrf.mxu0
    %v2638 = vadd.f32 0.0, %v2637
    %2639 = vmatmul.bf16.gmra.mxu0 %v1599
    %v2640 = vpop.f32.mrf.mxu0
    %v2641 = vadd.f32 0.0, %v2640
    %v2642 = vpop.f32.mrf.mxu0
    %v2643 = vadd.f32 0.0, %v2642
    %2644 = vmatmul.bf16.gmra.mxu0 %v1602
    %v2645 = vpop.f32.mrf.mxu0
    %v2646 = vadd.f32 0.0, %v2645
    %v2647 = vpop.f32.mrf.mxu0
    %v2648 = vadd.f32 0.0, %v2647
    %2649 = vdwg.mxu0
    %v2650 = vpack.c.bf16 %v2636, %v2636
    %v2651 = vpack.c.bf16 %v2638, %v2638
    %v2652 = vpack.c.bf16 %v2641, %v2641
    %v2653 = vpack.c.bf16 %v2643, %v2643
    %v2654 = vpack.c.bf16 %v2646, %v2646
    %v2655 = vpack.c.bf16 %v2648, %v2648
    %v2656 = vld [vmem:[%s3 + $0x118] sm:$0xf]
    %v2657 = vld [vmem:[%s3 + $0x11c] sm:$0xf]
    %v2658 = vld [vmem:[%s3 + $0x120] sm:$0xf]
    %v2659 = vld [vmem:[%s3 + $0x124] sm:$0xf]
    %v2660 = vld [vmem:[%s3 + $0x128] sm:$0xf]
    %v2661 = vld [vmem:[%s3 + $0x12c] sm:$0xf]
    %v2662 = vld [vmem:[%s3 + $0x130] sm:$0xf]
    %v2663 = vld [vmem:[%s3 + $0x134] sm:$0xf]
    %v2672 = vunpack.c.l.b16 %v2656
    %v2673 = vunpack.c.l.b16 %v2657
    %v2674 = vunpack.c.l.b16 %v2658
    %v2675 = vunpack.c.l.b16 %v2659
    %v2676 = vunpack.c.l.b16 %v2660
    %v2677 = vunpack.c.l.b16 %v2661
    %v2678 = vunpack.c.l.b16 %v2662
    %v2679 = vunpack.c.l.b16 %v2663
    %v2680 = vpack.c.b16 %v2673, %v2672
    %v2681 = vpack.c.b16 %v2675, %v2674
    %v2682 = vpack.c.b16 %v2677, %v2676
    %v2683 = vpack.c.b16 %v2679, %v2678
    %2684 = vrot.lane.b32.xlu0 %v2680, 96
    %v2685 = vpop.permute.xlu0 %2684
    %2686 = vrot.lane.b32.xlu0 %v2681, 96
    %v2687 = vpop.permute.xlu0 %2686
    %2688 = vrot.lane.b32.xlu0 %v2682, 96
    %v2689 = vpop.permute.xlu0 %2688
    %2690 = vrot.lane.b32.xlu0 %v2683, 96
    %v2691 = vpop.permute.xlu0 %2690
    %2696 = vmatpush.bf16.msra.mxu0 0
    %2697 = vmatpush.bf16.msra.mxu0 0
    %2698 = vmatpush.bf16.msra.mxu0 0
    %2699 = vmatpush.bf16.msra.mxu0 0
    %2700 = vmatpush.bf16.msra.mxu0 %v2691
    %2701 = vmatpush.bf16.msra.mxu0 %v2689
    %2702 = vmatpush.bf16.msra.mxu0 %v2687
    %2703 = vmatpush.bf16.msra.mxu0 %v2685
    %2704 = vmatmul.bf16.gmra.mxu0 %v1596
    %v2705 = vpop.f32.mrf.mxu0
    %v2706 = vadd.f32 0.0, %v2705
    %v2707 = vpop.f32.mrf.mxu0
    %v2708 = vadd.f32 0.0, %v2707
    %2709 = vmatmul.bf16.gmra.mxu0 %v1599
    %v2710 = vpop.f32.mrf.mxu0
    %v2711 = vadd.f32 0.0, %v2710
    %v2712 = vpop.f32.mrf.mxu0
    %v2713 = vadd.f32 0.0, %v2712
    %2714 = vmatmul.bf16.gmra.mxu0 %v1602
    %v2715 = vpop.f32.mrf.mxu0
    %v2716 = vadd.f32 0.0, %v2715
    %v2717 = vpop.f32.mrf.mxu0
    %v2718 = vadd.f32 0.0, %v2717
    %2719 = vdwg.mxu0
    %v2720 = vpack.c.bf16 %v2706, %v2706
    %v2721 = vpack.c.bf16 %v2708, %v2708
    %v2722 = vpack.c.bf16 %v2711, %v2711
    %v2723 = vpack.c.bf16 %v2713, %v2713
    %v2724 = vpack.c.bf16 %v2716, %v2716
    %v2725 = vpack.c.bf16 %v2718, %v2718
    %v2726 = vld [vmem:[%s3 + $0x138] sm:$0xf]
    %v2727 = vld [vmem:[%s3 + $0x13c] sm:$0xf]
    %v2728 = vld [vmem:[%s3 + $0x140] sm:$0xf]
    %v2729 = vld [vmem:[%s3 + $0x144] sm:$0xf]
    %v2730 = vld [vmem:[%s3 + $0x148] sm:$0xf]
    %v2731 = vld [vmem:[%s3 + $0x14c] sm:$0xf]
    %v2732 = vld [vmem:[%s3 + $0x150] sm:$0xf]
    %v2733 = vld [vmem:[%s3 + $0x154] sm:$0xf]
    %v2742 = vunpack.c.l.b16 %v2726
    %v2743 = vunpack.c.l.b16 %v2727
    %v2744 = vunpack.c.l.b16 %v2728
    %v2745 = vunpack.c.l.b16 %v2729
    %v2746 = vunpack.c.l.b16 %v2730
    %v2747 = vunpack.c.l.b16 %v2731
    %v2748 = vunpack.c.l.b16 %v2732
    %v2749 = vunpack.c.l.b16 %v2733
    %v2750 = vpack.c.b16 %v2743, %v2742
    %v2751 = vpack.c.b16 %v2745, %v2744
    %v2752 = vpack.c.b16 %v2747, %v2746
    %v2753 = vpack.c.b16 %v2749, %v2748
    %2754 = vrot.lane.b32.xlu0 %v2750, 96
    %v2755 = vpop.permute.xlu0 %2754
    %2756 = vrot.lane.b32.xlu0 %v2751, 96
    %v2757 = vpop.permute.xlu0 %2756
    %2758 = vrot.lane.b32.xlu0 %v2752, 96
    %v2759 = vpop.permute.xlu0 %2758
    %2760 = vrot.lane.b32.xlu0 %v2753, 96
    %v2761 = vpop.permute.xlu0 %2760
    %2766 = vmatpush.bf16.msra.mxu0 0
    %2767 = vmatpush.bf16.msra.mxu0 0
    %2768 = vmatpush.bf16.msra.mxu0 0
    %2769 = vmatpush.bf16.msra.mxu0 0
    %2770 = vmatpush.bf16.msra.mxu0 %v2761
    %2771 = vmatpush.bf16.msra.mxu0 %v2759
    %2772 = vmatpush.bf16.msra.mxu0 %v2757
    %2773 = vmatpush.bf16.msra.mxu0 %v2755
    %2774 = vmatmul.bf16.gmra.mxu0 %v1596
    %v2775 = vpop.f32.mrf.mxu0
    %v2776 = vadd.f32 0.0, %v2775
    %v2777 = vpop.f32.mrf.mxu0
    %v2778 = vadd.f32 0.0, %v2777
    %2779 = vmatmul.bf16.gmra.mxu0 %v1599
    %v2780 = vpop.f32.mrf.mxu0
    %v2781 = vadd.f32 0.0, %v2780
    %v2782 = vpop.f32.mrf.mxu0
    %v2783 = vadd.f32 0.0, %v2782
    %2784 = vmatmul.bf16.gmra.mxu0 %v1602
    %v2785 = vpop.f32.mrf.mxu0
    %v2786 = vadd.f32 0.0, %v2785
    %v2787 = vpop.f32.mrf.mxu0
    %v2788 = vadd.f32 0.0, %v2787
    %2789 = vdwg.mxu0
    %v2790 = vpack.c.bf16 %v2776, %v2776
    %v2791 = vpack.c.bf16 %v2778, %v2778
    %v2792 = vpack.c.bf16 %v2781, %v2781
    %v2793 = vpack.c.bf16 %v2783, %v2783
    %v2794 = vpack.c.bf16 %v2786, %v2786
    %v2795 = vpack.c.bf16 %v2788, %v2788
    %v2799 = vunpack.c.l.b16 %v2650
    %v2800 = vunpack.c.l.b16 %v2651
    %v2801 = vunpack.c.l.b16 %v2652
    %v2802 = vpack.c.b16 %v2800, %v2799
    %v2803 = vpack.c.b16 %v2801, %v2801
    %v2807 = vunpack.c.l.b16 %v2720
    %v2808 = vunpack.c.l.b16 %v2721
    %v2809 = vunpack.c.l.b16 %v2722
    %v2810 = vpack.c.b16 %v2808, %v2807
    %v2811 = vpack.c.b16 %v2809, %v2809
    %v2813 = vsel %vm334, %v2802, 0
    %v2816 = vsel %vm334, %v2803, 0
    %v2819 = vsel %vm334, %v2810, 0
    %v2822 = vsel %vm334, %v2811, 0
    %2824 = vmatpush.bf16.xpose.msra.mxu0 0
    %2825 = vmatpush.bf16.xpose.msra.mxu0 0
    %2826 = vmatpush.bf16.xpose.msra.mxu0 0
    %2827 = vmatpush.bf16.xpose.msra.mxu0 0
    %2828 = vmatpush.bf16.xpose.msra.mxu0 0
    %2829 = vmatpush.bf16.xpose.msra.mxu0 0
    %2830 = vmatpush.bf16.xpose.msra.mxu0 %v2822
    %2831 = vmatpush.bf16.xpose.msra.mxu0 %v2819
    %2832 = vmatmul.bf16.gmra.mxu0 %v2813
    %v2833 = vpop.f32.mrf.mxu0
    %v2834 = vadd.f32 0.0, %v2833
    %v2835 = vpop.f32.mrf.mxu0
    %v2836 = vadd.f32 0.0, %v2835
    %2837 = vmatmul.bf16.gmra.mxu0 %v2816
    %v2838 = vpop.f32.mrf.mxu0
    %v2839 = vadd.f32 0.0, %v2838
    %v2840 = vpop.f32.mrf.mxu0
    %2841 = vdwg.mxu0
    %v2845 = vunpack.c.l.b16 %v2653
    %v2846 = vunpack.c.l.b16 %v2654
    %v2847 = vunpack.c.l.b16 %v2655
    %v2848 = vpack.c.b16 %v2846, %v2845
    %v2849 = vpack.c.b16 %v2847, %v2847
    %v2853 = vunpack.c.l.b16 %v2723
    %v2854 = vunpack.c.l.b16 %v2724
    %v2855 = vunpack.c.l.b16 %v2725
    %v2856 = vpack.c.b16 %v2854, %v2853
    %v2857 = vpack.c.b16 %v2855, %v2855
    %v2859 = vsel %vm334, %v2848, 0
    %v2862 = vsel %vm334, %v2849, 0
    %v2865 = vsel %vm334, %v2856, 0
    %v2868 = vsel %vm334, %v2857, 0
    %2870 = vmatpush.bf16.xpose.msra.mxu0 0
    %2871 = vmatpush.bf16.xpose.msra.mxu0 0
    %2872 = vmatpush.bf16.xpose.msra.mxu0 0
    %2873 = vmatpush.bf16.xpose.msra.mxu0 0
    %2874 = vmatpush.bf16.xpose.msra.mxu0 0
    %2875 = vmatpush.bf16.xpose.msra.mxu0 0
    %2876 = vmatpush.bf16.xpose.msra.mxu0 %v2868
    %2877 = vmatpush.bf16.xpose.msra.mxu0 %v2865
    %2878 = vmatmul.bf16.gmra.mxu0 %v2859
    %v2879 = vpop.f32.mrf.mxu0
    %v2880 = vadd.f32 0.0, %v2879
    %v2881 = vpop.f32.mrf.mxu0
    %v2882 = vadd.f32 0.0, %v2881
    %2883 = vmatmul.bf16.gmra.mxu0 %v2862
    %v2884 = vpop.f32.mrf.mxu0
    %v2885 = vadd.f32 0.0, %v2884
    %v2886 = vpop.f32.mrf.mxu0
    %2887 = vdwg.mxu0
    %v2888 = vmul.f32 %v2834, 0.25
    %v2889 = vmul.f32 %v2836, 0.25
    %v2890 = vmul.f32 %v2839, 0.25
    %v2891 = vmul.f32 %v2880, 0.25
    %v2892 = vmul.f32 %v2882, 0.25
    %v2893 = vmul.f32 %v2885, 0.25
    %v2894 = vsel %vm1557, %v2888, -1e+30
    %v2895 = vsel %vm1558, %v2889, -1e+30
    %v2896 = vsel %vm1559, %v2890, -1e+30
    %v2897 = vsel %vm1557, %v2891, -1e+30
    %v2898 = vsel %vm1558, %v2892, -1e+30
    %v2899 = vsel %vm1559, %v2893, -1e+30
    %v2900 = vsel %vm1862, %v2894, -inf
    %2901 = vmax.xlane.f32.xlu0 %v2900
    %v2902 = vpop.xlane.xlu0 %2901
    %v2903 = vsel %vm1862, %v2895, -inf
    %2904 = vmax.xlane.f32.xlu0 %v2903
    %v2905 = vpop.xlane.xlu0 %2904
    %v2906 = vsel %vm1862, %v2896, -inf
    %2907 = vmax.xlane.f32.xlu0 %v2906
    %v2908 = vpop.xlane.xlu0 %2907
    %v2909 = vsel %vm1862, %v2897, -inf
    %2910 = vmax.xlane.f32.xlu0 %v2909
    %v2911 = vpop.xlane.xlu0 %2910
    %v2912 = vsel %vm1862, %v2898, -inf
    %2913 = vmax.xlane.f32.xlu0 %v2912
    %v2914 = vpop.xlane.xlu0 %2913
    %v2915 = vsel %vm1862, %v2899, -inf
    %2916 = vmax.xlane.f32.xlu0 %v2915
    %v2917 = vpop.xlane.xlu0 %2916
    %v2918 = vsub.f32 %v2894, %v2902
    %v2919 = vsub.f32 %v2895, %v2905
    %v2920 = vsub.f32 %v2896, %v2908
    %v2921 = vsub.f32 %v2897, %v2911
    %v2922 = vsub.f32 %v2898, %v2914
    %v2923 = vsub.f32 %v2899, %v2917
    %v2924 = vmul.f32 %v2918, 1.442695
    %v2925 = vpow.pop %v2924
    %v2926 = vmul.f32 %v2919, 1.442695
    %v2927 = vpow.pop %v2926
    %v2928 = vmul.f32 %v2920, 1.442695
    %v2929 = vpow.pop %v2928
    %v2930 = vmul.f32 %v2921, 1.442695
    %v2931 = vpow.pop %v2930
    %v2932 = vmul.f32 %v2922, 1.442695
    %v2933 = vpow.pop %v2932
    %v2934 = vmul.f32 %v2923, 1.442695
    %v2935 = vpow.pop %v2934
    %v2936 = vsel %vm1862, %v2925, 0.0
    %2937 = vadd.xlane.f32.xlu0 %v2936
    %v2938 = vpop.xlane.xlu0 %2937
    %v2939 = vsel %vm1862, %v2927, 0.0
    %2940 = vadd.xlane.f32.xlu0 %v2939
    %v2941 = vpop.xlane.xlu0 %2940
    %v2942 = vsel %vm1862, %v2929, 0.0
    %2943 = vadd.xlane.f32.xlu0 %v2942
    %v2944 = vpop.xlane.xlu0 %2943
    %v2945 = vsel %vm1862, %v2931, 0.0
    %2946 = vadd.xlane.f32.xlu0 %v2945
    %v2947 = vpop.xlane.xlu0 %2946
    %v2948 = vsel %vm1862, %v2933, 0.0
    %2949 = vadd.xlane.f32.xlu0 %v2948
    %v2950 = vpop.xlane.xlu0 %2949
    %v2951 = vsel %vm1862, %v2935, 0.0
    %2952 = vadd.xlane.f32.xlu0 %v2951
    %v2953 = vpop.xlane.xlu0 %2952
    %v2954 = vrcp.pop %v2938
    %v2955 = vrcp.pop %v2941
    %v2956 = vrcp.pop %v2944
    %v2957 = vrcp.pop %v2947
    %v2958 = vrcp.pop %v2950
    %v2959 = vrcp.pop %v2953
    %v2960 = vmul.f32 %v2925, %v2954
    %v2961 = vmul.f32 %v2927, %v2955
    %v2962 = vmul.f32 %v2929, %v2956
    %v2963 = vmul.f32 %v2931, %v2957
    %v2964 = vmul.f32 %v2933, %v2958
    %v2965 = vmul.f32 %v2935, %v2959
    %v2966 = vpack.c.bf16 %v2960, %v2960
    %v2967 = vpack.c.bf16 %v2961, %v2961
    %v2968 = vpack.c.bf16 %v2962, %v2962
    %v2969 = vpack.c.bf16 %v2963, %v2963
    %v2970 = vpack.c.bf16 %v2964, %v2964
    %v2971 = vpack.c.bf16 %v2965, %v2965
    %v2975 = vunpack.c.l.b16 %v2966
    %v2976 = vunpack.c.l.b16 %v2967
    %v2977 = vunpack.c.l.b16 %v2968
    %v2978 = vpack.c.b16 %v2976, %v2975
    %v2979 = vpack.c.b16 %v2977, %v2977
    %v2983 = vunpack.c.l.b16 %v2790
    %v2984 = vunpack.c.l.b16 %v2791
    %v2985 = vunpack.c.l.b16 %v2792
    %v2986 = vpack.c.b16 %v2984, %v2983
    %v2987 = vpack.c.b16 %v2985, %v2985
    %v2990 = vsel %vm1862, %v2978, 0
    %v2993 = vsel %vm1862, %v2979, 0
    %v2996 = vsel %vm1958, %v2987, 0
    %2998 = vmatpush.bf16.msra.mxu0 0
    %2999 = vmatpush.bf16.msra.mxu0 0
    %3000 = vmatpush.bf16.msra.mxu0 0
    %3001 = vmatpush.bf16.msra.mxu0 0
    %3002 = vmatpush.bf16.msra.mxu0 0
    %3003 = vmatpush.bf16.msra.mxu0 0
    %3004 = vmatpush.bf16.msra.mxu0 %v2996
    %3005 = vmatpush.bf16.msra.mxu0 %v2986
    %3006 = vmatmul.bf16.gmra.mxu0 %v2990
    %v3007 = vpop.f32.mrf.mxu0
    %v3008 = vadd.f32 0.0, %v3007
    %v3009 = vpop.f32.mrf.mxu0
    %v3010 = vadd.f32 0.0, %v3009
    %3011 = vmatmul.bf16.gmra.mxu0 %v2993
    %v3012 = vpop.f32.mrf.mxu0
    %v3013 = vadd.f32 0.0, %v3012
    %v3014 = vpop.f32.mrf.mxu0
    %3015 = vdwg.mxu0
    %v3019 = vunpack.c.l.b16 %v2969
    %v3020 = vunpack.c.l.b16 %v2970
    %v3021 = vunpack.c.l.b16 %v2971
    %v3022 = vpack.c.b16 %v3020, %v3019
    %v3023 = vpack.c.b16 %v3021, %v3021
    %v3027 = vunpack.c.l.b16 %v2793
    %v3028 = vunpack.c.l.b16 %v2794
    %v3029 = vunpack.c.l.b16 %v2795
    %v3030 = vpack.c.b16 %v3028, %v3027
    %v3031 = vpack.c.b16 %v3029, %v3029
    %v3034 = vsel %vm1862, %v3022, 0
    %v3037 = vsel %vm1862, %v3023, 0
    %v3040 = vsel %vm1958, %v3031, 0
    %3042 = vmatpush.bf16.msra.mxu0 0
    %3043 = vmatpush.bf16.msra.mxu0 0
    %3044 = vmatpush.bf16.msra.mxu0 0
    %3045 = vmatpush.bf16.msra.mxu0 0
    %3046 = vmatpush.bf16.msra.mxu0 0
    %3047 = vmatpush.bf16.msra.mxu0 0
    %3048 = vmatpush.bf16.msra.mxu0 %v3040
    %3049 = vmatpush.bf16.msra.mxu0 %v3030
    %3050 = vmatmul.bf16.gmra.mxu0 %v3034
    %v3051 = vpop.f32.mrf.mxu0
    %v3052 = vadd.f32 0.0, %v3051
    %v3053 = vpop.f32.mrf.mxu0
    %v3054 = vadd.f32 0.0, %v3053
    %3055 = vmatmul.bf16.gmra.mxu0 %v3037
    %v3056 = vpop.f32.mrf.mxu0
    %v3057 = vadd.f32 0.0, %v3056
    %v3058 = vpop.f32.mrf.mxu0
    %3059 = vdwg.mxu0
    %v3060 = vld [vmem:[%s3 + $0x168] sm:$0xf]
    %v3061 = vld [vmem:[%s3 + $0x16c] sm:$0xf]
    %v3062 = vpack.c.bf16 %v3010, %v3008
    %v3063 = vpack.c.bf16 %v3052, %v3013
    %v3064 = vpack.c.bf16 %v3057, %v3054
    %v3067 = vunpack.c.l.b16 %v3060
    %v3068 = vunpack.c.l.b16 %v3061
    %v3069 = vpack.c.b16 %v3068, %v3067
    %v3072 = vsel %vm334, %v3062, 0
    %v3075 = vsel %vm334, %v3063, 0
    %v3078 = vsel %vm334, %v3064, 0
    %3080 = vmatpush.bf16.msra.mxu0 0
    %3081 = vmatpush.bf16.msra.mxu0 0
    %3082 = vmatpush.bf16.msra.mxu0 0
    %3083 = vmatpush.bf16.msra.mxu0 0
    %3084 = vmatpush.bf16.msra.mxu0 0
    %3085 = vmatpush.bf16.msra.mxu0 0
    %3086 = vmatpush.bf16.msra.mxu0 0
    %3087 = vmatpush.bf16.msra.mxu0 %v3069
    %3088 = vmatmul.bf16.gmra.mxu0 %v3072
    %v3089 = vpop.f32.mrf.mxu0
    %v3090 = vadd.f32 0.0, %v3089
    %v3091 = vpop.f32.mrf.mxu0
    %v3092 = vadd.f32 0.0, %v3091
    %3093 = vmatmul.bf16.gmra.mxu0 %v3075
    %v3094 = vpop.f32.mrf.mxu0
    %v3095 = vadd.f32 0.0, %v3094
    %v3096 = vpop.f32.mrf.mxu0
    %v3097 = vadd.f32 0.0, %v3096
    %3098 = vmatmul.bf16.gmra.mxu0 %v3078
    %v3099 = vpop.f32.mrf.mxu0
    %v3100 = vadd.f32 0.0, %v3099
    %v3101 = vpop.f32.mrf.mxu0
    %v3102 = vadd.f32 0.0, %v3101
    %3103 = vdwg.mxu0
    %v3104 = vadd.f32 %v2572, %v3090
    %v3105 = vadd.f32 %v2574, %v3092
    %v3106 = vadd.f32 %v2577, %v3095
    %v3107 = vadd.f32 %v2579, %v3097
    %v3108 = vadd.f32 %v2582, %v3100
    %v3109 = vadd.f32 %v2584, %v3102
    %v3110 = vld [vmem:[%s3 + $0xf8] sm:$0xf]
    %v3111 = vld [vmem:[%s3 + $0xfc] sm:$0xf]
    %v3112 = vld [vmem:[%s3 + $0x100] sm:$0xf]
    %v3113 = vld [vmem:[%s3 + $0x104] sm:$0xf]
    %v3114 = vld [vmem:[%s3 + $0x108] sm:$0xf]
    %v3115 = vld [vmem:[%s3 + $0x10c] sm:$0xf]
    %v3116 = vld [vmem:[%s3 + $0x110] sm:$0xf]
    %v3117 = vld [vmem:[%s3 + $0x114] sm:$0xf]
    %v3126 = vunpack.c.l.b16 %v3110
    %v3127 = vunpack.c.l.b16 %v3111
    %v3128 = vunpack.c.l.b16 %v3112
    %v3129 = vunpack.c.l.b16 %v3113
    %v3130 = vunpack.c.l.b16 %v3114
    %v3131 = vunpack.c.l.b16 %v3115
    %v3132 = vunpack.c.l.b16 %v3116
    %v3133 = vunpack.c.l.b16 %v3117
    %v3134 = vpack.c.b16 %v3127, %v3126
    %v3135 = vpack.c.b16 %v3129, %v3128
    %v3136 = vpack.c.b16 %v3131, %v3130
    %v3137 = vpack.c.b16 %v3133, %v3132
    %3138 = vrot.lane.b32.xlu0 %v3134, 80
    %v3139 = vpop.permute.xlu0 %3138
    %3140 = vrot.lane.b32.xlu0 %v3135, 80
    %v3141 = vpop.permute.xlu0 %3140
    %3142 = vrot.lane.b32.xlu0 %v3136, 80
    %v3143 = vpop.permute.xlu0 %3142
    %3144 = vrot.lane.b32.xlu0 %v3137, 80
    %v3145 = vpop.permute.xlu0 %3144
    %3150 = vmatpush.bf16.msra.mxu0 0
    %3151 = vmatpush.bf16.msra.mxu0 0
    %3152 = vmatpush.bf16.msra.mxu0 0
    %3153 = vmatpush.bf16.msra.mxu0 0
    %3154 = vmatpush.bf16.msra.mxu0 %v3145
    %3155 = vmatpush.bf16.msra.mxu0 %v3143
    %3156 = vmatpush.bf16.msra.mxu0 %v3141
    %3157 = vmatpush.bf16.msra.mxu0 %v3139
    %3158 = vmatmul.bf16.gmra.mxu0 %v1596
    %v3159 = vpop.f32.mrf.mxu0
    %v3160 = vadd.f32 0.0, %v3159
    %v3161 = vpop.f32.mrf.mxu0
    %v3162 = vadd.f32 0.0, %v3161
    %3163 = vmatmul.bf16.gmra.mxu0 %v1599
    %v3164 = vpop.f32.mrf.mxu0
    %v3165 = vadd.f32 0.0, %v3164
    %v3166 = vpop.f32.mrf.mxu0
    %v3167 = vadd.f32 0.0, %v3166
    %3168 = vmatmul.bf16.gmra.mxu0 %v1602
    %v3169 = vpop.f32.mrf.mxu0
    %v3170 = vadd.f32 0.0, %v3169
    %v3171 = vpop.f32.mrf.mxu0
    %v3172 = vadd.f32 0.0, %v3171
    %3173 = vdwg.mxu0
    %v3174 = vpack.c.bf16 %v3160, %v3160
    %v3175 = vpack.c.bf16 %v3162, %v3162
    %v3176 = vpack.c.bf16 %v3165, %v3165
    %v3177 = vpack.c.bf16 %v3167, %v3167
    %v3178 = vpack.c.bf16 %v3170, %v3170
    %v3179 = vpack.c.bf16 %v3172, %v3172
    %v3180 = vld [vmem:[%s3 + $0x118] sm:$0xf]
    %v3181 = vld [vmem:[%s3 + $0x11c] sm:$0xf]
    %v3182 = vld [vmem:[%s3 + $0x120] sm:$0xf]
    %v3183 = vld [vmem:[%s3 + $0x124] sm:$0xf]
    %v3184 = vld [vmem:[%s3 + $0x128] sm:$0xf]
    %v3185 = vld [vmem:[%s3 + $0x12c] sm:$0xf]
    %v3186 = vld [vmem:[%s3 + $0x130] sm:$0xf]
    %v3187 = vld [vmem:[%s3 + $0x134] sm:$0xf]
    %v3196 = vunpack.c.l.b16 %v3180
    %v3197 = vunpack.c.l.b16 %v3181
    %v3198 = vunpack.c.l.b16 %v3182
    %v3199 = vunpack.c.l.b16 %v3183
    %v3200 = vunpack.c.l.b16 %v3184
    %v3201 = vunpack.c.l.b16 %v3185
    %v3202 = vunpack.c.l.b16 %v3186
    %v3203 = vunpack.c.l.b16 %v3187
    %v3204 = vpack.c.b16 %v3197, %v3196
    %v3205 = vpack.c.b16 %v3199, %v3198
    %v3206 = vpack.c.b16 %v3201, %v3200
    %v3207 = vpack.c.b16 %v3203, %v3202
    %3208 = vrot.lane.b32.xlu0 %v3204, 80
    %v3209 = vpop.permute.xlu0 %3208
    %3210 = vrot.lane.b32.xlu0 %v3205, 80
    %v3211 = vpop.permute.xlu0 %3210
    %3212 = vrot.lane.b32.xlu0 %v3206, 80
    %v3213 = vpop.permute.xlu0 %3212
    %3214 = vrot.lane.b32.xlu0 %v3207, 80
    %v3215 = vpop.permute.xlu0 %3214
    %3220 = vmatpush.bf16.msra.mxu0 0
    %3221 = vmatpush.bf16.msra.mxu0 0
    %3222 = vmatpush.bf16.msra.mxu0 0
    %3223 = vmatpush.bf16.msra.mxu0 0
    %3224 = vmatpush.bf16.msra.mxu0 %v3215
    %3225 = vmatpush.bf16.msra.mxu0 %v3213
    %3226 = vmatpush.bf16.msra.mxu0 %v3211
    %3227 = vmatpush.bf16.msra.mxu0 %v3209
    %3228 = vmatmul.bf16.gmra.mxu0 %v1596
    %v3229 = vpop.f32.mrf.mxu0
    %v3230 = vadd.f32 0.0, %v3229
    %v3231 = vpop.f32.mrf.mxu0
    %v3232 = vadd.f32 0.0, %v3231
    %3233 = vmatmul.bf16.gmra.mxu0 %v1599
    %v3234 = vpop.f32.mrf.mxu0
    %v3235 = vadd.f32 0.0, %v3234
    %v3236 = vpop.f32.mrf.mxu0
    %v3237 = vadd.f32 0.0, %v3236
    %3238 = vmatmul.bf16.gmra.mxu0 %v1602
    %v3239 = vpop.f32.mrf.mxu0
    %v3240 = vadd.f32 0.0, %v3239
    %v3241 = vpop.f32.mrf.mxu0
    %v3242 = vadd.f32 0.0, %v3241
    %3243 = vdwg.mxu0
    %v3244 = vpack.c.bf16 %v3230, %v3230
    %v3245 = vpack.c.bf16 %v3232, %v3232
    %v3246 = vpack.c.bf16 %v3235, %v3235
    %v3247 = vpack.c.bf16 %v3237, %v3237
    %v3248 = vpack.c.bf16 %v3240, %v3240
    %v3249 = vpack.c.bf16 %v3242, %v3242
    %v3250 = vld [vmem:[%s3 + $0x138] sm:$0xf]
    %v3251 = vld [vmem:[%s3 + $0x13c] sm:$0xf]
    %v3252 = vld [vmem:[%s3 + $0x140] sm:$0xf]
    %v3253 = vld [vmem:[%s3 + $0x144] sm:$0xf]
    %v3254 = vld [vmem:[%s3 + $0x148] sm:$0xf]
    %v3255 = vld [vmem:[%s3 + $0x14c] sm:$0xf]
    %v3256 = vld [vmem:[%s3 + $0x150] sm:$0xf]
    %v3257 = vld [vmem:[%s3 + $0x154] sm:$0xf]
    %v3266 = vunpack.c.l.b16 %v3250
    %v3267 = vunpack.c.l.b16 %v3251
    %v3268 = vunpack.c.l.b16 %v3252
    %v3269 = vunpack.c.l.b16 %v3253
    %v3270 = vunpack.c.l.b16 %v3254
    %v3271 = vunpack.c.l.b16 %v3255
    %v3272 = vunpack.c.l.b16 %v3256
    %v3273 = vunpack.c.l.b16 %v3257
    %v3274 = vpack.c.b16 %v3267, %v3266
    %v3275 = vpack.c.b16 %v3269, %v3268
    %v3276 = vpack.c.b16 %v3271, %v3270
    %v3277 = vpack.c.b16 %v3273, %v3272
    %3278 = vrot.lane.b32.xlu0 %v3274, 80
    %v3279 = vpop.permute.xlu0 %3278
    %3280 = vrot.lane.b32.xlu0 %v3275, 80
    %v3281 = vpop.permute.xlu0 %3280
    %3282 = vrot.lane.b32.xlu0 %v3276, 80
    %v3283 = vpop.permute.xlu0 %3282
    %3284 = vrot.lane.b32.xlu0 %v3277, 80
    %v3285 = vpop.permute.xlu0 %3284
    %3290 = vmatpush.bf16.msra.mxu0 0
    %3291 = vmatpush.bf16.msra.mxu0 0
    %3292 = vmatpush.bf16.msra.mxu0 0
    %3293 = vmatpush.bf16.msra.mxu0 0
    %3294 = vmatpush.bf16.msra.mxu0 %v3285
    %3295 = vmatpush.bf16.msra.mxu0 %v3283
    %3296 = vmatpush.bf16.msra.mxu0 %v3281
    %3297 = vmatpush.bf16.msra.mxu0 %v3279
    %3298 = vmatmul.bf16.gmra.mxu0 %v1596
    %v3299 = vpop.f32.mrf.mxu0
    %v3300 = vadd.f32 0.0, %v3299
    %v3301 = vpop.f32.mrf.mxu0
    %v3302 = vadd.f32 0.0, %v3301
    %3303 = vmatmul.bf16.gmra.mxu0 %v1599
    %v3304 = vpop.f32.mrf.mxu0
    %v3305 = vadd.f32 0.0, %v3304
    %v3306 = vpop.f32.mrf.mxu0
    %v3307 = vadd.f32 0.0, %v3306
    %3308 = vmatmul.bf16.gmra.mxu0 %v1602
    %v3309 = vpop.f32.mrf.mxu0
    %v3310 = vadd.f32 0.0, %v3309
    %v3311 = vpop.f32.mrf.mxu0
    %v3312 = vadd.f32 0.0, %v3311
    %3313 = vdwg.mxu0
    %v3314 = vpack.c.bf16 %v3300, %v3300
    %v3315 = vpack.c.bf16 %v3302, %v3302
    %v3316 = vpack.c.bf16 %v3305, %v3305
    %v3317 = vpack.c.bf16 %v3307, %v3307
    %v3318 = vpack.c.bf16 %v3310, %v3310
    %v3319 = vpack.c.bf16 %v3312, %v3312
    %v3323 = vunpack.c.l.b16 %v3174
    %v3324 = vunpack.c.l.b16 %v3175
    %v3325 = vunpack.c.l.b16 %v3176
    %v3326 = vpack.c.b16 %v3324, %v3323
    %v3327 = vpack.c.b16 %v3325, %v3325
    %v3331 = vunpack.c.l.b16 %v3244
    %v3332 = vunpack.c.l.b16 %v3245
    %v3333 = vunpack.c.l.b16 %v3246
    %v3334 = vpack.c.b16 %v3332, %v3331
    %v3335 = vpack.c.b16 %v3333, %v3333
    %v3337 = vsel %vm334, %v3326, 0
    %v3340 = vsel %vm334, %v3327, 0
    %v3343 = vsel %vm334, %v3334, 0
    %v3346 = vsel %vm334, %v3335, 0
    %3348 = vmatpush.bf16.xpose.msra.mxu0 0
    %3349 = vmatpush.bf16.xpose.msra.mxu0 0
    %3350 = vmatpush.bf16.xpose.msra.mxu0 0
    %3351 = vmatpush.bf16.xpose.msra.mxu0 0
    %3352 = vmatpush.bf16.xpose.msra.mxu0 0
    %3353 = vmatpush.bf16.xpose.msra.mxu0 0
    %3354 = vmatpush.bf16.xpose.msra.mxu0 %v3346
    %3355 = vmatpush.bf16.xpose.msra.mxu0 %v3343
    %3356 = vmatmul.bf16.gmra.mxu0 %v3337
    %v3357 = vpop.f32.mrf.mxu0
    %v3358 = vadd.f32 0.0, %v3357
    %v3359 = vpop.f32.mrf.mxu0
    %v3360 = vadd.f32 0.0, %v3359
    %3361 = vmatmul.bf16.gmra.mxu0 %v3340
    %v3362 = vpop.f32.mrf.mxu0
    %v3363 = vadd.f32 0.0, %v3362
    %v3364 = vpop.f32.mrf.mxu0
    %3365 = vdwg.mxu0
    %v3369 = vunpack.c.l.b16 %v3177
    %v3370 = vunpack.c.l.b16 %v3178
    %v3371 = vunpack.c.l.b16 %v3179
    %v3372 = vpack.c.b16 %v3370, %v3369
    %v3373 = vpack.c.b16 %v3371, %v3371
    %v3377 = vunpack.c.l.b16 %v3247
    %v3378 = vunpack.c.l.b16 %v3248
    %v3379 = vunpack.c.l.b16 %v3249
    %v3380 = vpack.c.b16 %v3378, %v3377
    %v3381 = vpack.c.b16 %v3379, %v3379
    %v3383 = vsel %vm334, %v3372, 0
    %v3386 = vsel %vm334, %v3373, 0
    %v3389 = vsel %vm334, %v3380, 0
    %v3392 = vsel %vm334, %v3381, 0
    %3394 = vmatpush.bf16.xpose.msra.mxu0 0
    %3395 = vmatpush.bf16.xpose.msra.mxu0 0
    %3396 = vmatpush.bf16.xpose.msra.mxu0 0
    %3397 = vmatpush.bf16.xpose.msra.mxu0 0
    %3398 = vmatpush.bf16.xpose.msra.mxu0 0
    %3399 = vmatpush.bf16.xpose.msra.mxu0 0
    %3400 = vmatpush.bf16.xpose.msra.mxu0 %v3392
    %3401 = vmatpush.bf16.xpose.msra.mxu0 %v3389
    %3402 = vmatmul.bf16.gmra.mxu0 %v3383
    %v3403 = vpop.f32.mrf.mxu0
    %v3404 = vadd.f32 0.0, %v3403
    %v3405 = vpop.f32.mrf.mxu0
    %v3406 = vadd.f32 0.0, %v3405
    %3407 = vmatmul.bf16.gmra.mxu0 %v3386
    %v3408 = vpop.f32.mrf.mxu0
    %v3409 = vadd.f32 0.0, %v3408
    %v3410 = vpop.f32.mrf.mxu0
    %3411 = vdwg.mxu0
    %v3412 = vmul.f32 %v3358, 0.25
    %v3413 = vmul.f32 %v3360, 0.25
    %v3414 = vmul.f32 %v3363, 0.25
    %v3415 = vmul.f32 %v3404, 0.25
    %v3416 = vmul.f32 %v3406, 0.25
    %v3417 = vmul.f32 %v3409, 0.25
    %v3418 = vsel %vm1557, %v3412, -1e+30
    %v3419 = vsel %vm1558, %v3413, -1e+30
    %v3420 = vsel %vm1559, %v3414, -1e+30
    %v3421 = vsel %vm1557, %v3415, -1e+30
    %v3422 = vsel %vm1558, %v3416, -1e+30
    %v3423 = vsel %vm1559, %v3417, -1e+30
    %v3424 = vsel %vm1862, %v3418, -inf
    %3425 = vmax.xlane.f32.xlu0 %v3424
    %v3426 = vpop.xlane.xlu0 %3425
    %v3427 = vsel %vm1862, %v3419, -inf
    %3428 = vmax.xlane.f32.xlu0 %v3427
    %v3429 = vpop.xlane.xlu0 %3428
    %v3430 = vsel %vm1862, %v3420, -inf
    %3431 = vmax.xlane.f32.xlu0 %v3430
    %v3432 = vpop.xlane.xlu0 %3431
    %v3433 = vsel %vm1862, %v3421, -inf
    %3434 = vmax.xlane.f32.xlu0 %v3433
    %v3435 = vpop.xlane.xlu0 %3434
    %v3436 = vsel %vm1862, %v3422, -inf
    %3437 = vmax.xlane.f32.xlu0 %v3436
    %v3438 = vpop.xlane.xlu0 %3437
    %v3439 = vsel %vm1862, %v3423, -inf
    %3440 = vmax.xlane.f32.xlu0 %v3439
    %v3441 = vpop.xlane.xlu0 %3440
    %v3442 = vsub.f32 %v3418, %v3426
    %v3443 = vsub.f32 %v3419, %v3429
    %v3444 = vsub.f32 %v3420, %v3432
    %v3445 = vsub.f32 %v3421, %v3435
    %v3446 = vsub.f32 %v3422, %v3438
    %v3447 = vsub.f32 %v3423, %v3441
    %v3448 = vmul.f32 %v3442, 1.442695
    %v3449 = vpow.pop %v3448
    %v3450 = vmul.f32 %v3443, 1.442695
    %v3451 = vpow.pop %v3450
    %v3452 = vmul.f32 %v3444, 1.442695
    %v3453 = vpow.pop %v3452
    %v3454 = vmul.f32 %v3445, 1.442695
    %v3455 = vpow.pop %v3454
    %v3456 = vmul.f32 %v3446, 1.442695
    %v3457 = vpow.pop %v3456
    %v3458 = vmul.f32 %v3447, 1.442695
    %v3459 = vpow.pop %v3458
    %v3460 = vsel %vm1862, %v3449, 0.0
    %3461 = vadd.xlane.f32.xlu0 %v3460
    %v3462 = vpop.xlane.xlu0 %3461
    %v3463 = vsel %vm1862, %v3451, 0.0
    %3464 = vadd.xlane.f32.xlu0 %v3463
    %v3465 = vpop.xlane.xlu0 %3464
    %v3466 = vsel %vm1862, %v3453, 0.0
    %3467 = vadd.xlane.f32.xlu0 %v3466
    %v3468 = vpop.xlane.xlu0 %3467
    %v3469 = vsel %vm1862, %v3455, 0.0
    %3470 = vadd.xlane.f32.xlu0 %v3469
    %v3471 = vpop.xlane.xlu0 %3470
    %v3472 = vsel %vm1862, %v3457, 0.0
    %3473 = vadd.xlane.f32.xlu0 %v3472
    %v3474 = vpop.xlane.xlu0 %3473
    %v3475 = vsel %vm1862, %v3459, 0.0
    %3476 = vadd.xlane.f32.xlu0 %v3475
    %v3477 = vpop.xlane.xlu0 %3476
    %v3478 = vrcp.pop %v3462
    %v3479 = vrcp.pop %v3465
    %v3480 = vrcp.pop %v3468
    %v3481 = vrcp.pop %v3471
    %v3482 = vrcp.pop %v3474
    %v3483 = vrcp.pop %v3477
    %v3484 = vmul.f32 %v3449, %v3478
    %v3485 = vmul.f32 %v3451, %v3479
    %v3486 = vmul.f32 %v3453, %v3480
    %v3487 = vmul.f32 %v3455, %v3481
    %v3488 = vmul.f32 %v3457, %v3482
    %v3489 = vmul.f32 %v3459, %v3483
    %v3490 = vpack.c.bf16 %v3484, %v3484
    %v3491 = vpack.c.bf16 %v3485, %v3485
    %v3492 = vpack.c.bf16 %v3486, %v3486
    %v3493 = vpack.c.bf16 %v3487, %v3487
    %v3494 = vpack.c.bf16 %v3488, %v3488
    %v3495 = vpack.c.bf16 %v3489, %v3489
    %v3499 = vunpack.c.l.b16 %v3490
    %v3500 = vunpack.c.l.b16 %v3491
    %v3501 = vunpack.c.l.b16 %v3492
    %v3502 = vpack.c.b16 %v3500, %v3499
    %v3503 = vpack.c.b16 %v3501, %v3501
    %v3507 = vunpack.c.l.b16 %v3314
    %v3508 = vunpack.c.l.b16 %v3315
    %v3509 = vunpack.c.l.b16 %v3316
    %v3510 = vpack.c.b16 %v3508, %v3507
    %v3511 = vpack.c.b16 %v3509, %v3509
    %v3514 = vsel %vm1862, %v3502, 0
    %v3517 = vsel %vm1862, %v3503, 0
    %v3520 = vsel %vm1958, %v3511, 0
    %3522 = vmatpush.bf16.msra.mxu0 0
    %3523 = vmatpush.bf16.msra.mxu0 0
    %3524 = vmatpush.bf16.msra.mxu0 0
    %3525 = vmatpush.bf16.msra.mxu0 0
    %3526 = vmatpush.bf16.msra.mxu0 0
    %3527 = vmatpush.bf16.msra.mxu0 0
    %3528 = vmatpush.bf16.msra.mxu0 %v3520
    %3529 = vmatpush.bf16.msra.mxu0 %v3510
    %3530 = vmatmul.bf16.gmra.mxu0 %v3514
    %v3531 = vpop.f32.mrf.mxu0
    %v3532 = vadd.f32 0.0, %v3531
    %v3533 = vpop.f32.mrf.mxu0
    %v3534 = vadd.f32 0.0, %v3533
    %3535 = vmatmul.bf16.gmra.mxu0 %v3517
    %v3536 = vpop.f32.mrf.mxu0
    %v3537 = vadd.f32 0.0, %v3536
    %v3538 = vpop.f32.mrf.mxu0
    %3539 = vdwg.mxu0
    %v3543 = vunpack.c.l.b16 %v3493
    %v3544 = vunpack.c.l.b16 %v3494
    %v3545 = vunpack.c.l.b16 %v3495
    %v3546 = vpack.c.b16 %v3544, %v3543
    %v3547 = vpack.c.b16 %v3545, %v3545
    %v3551 = vunpack.c.l.b16 %v3317
    %v3552 = vunpack.c.l.b16 %v3318
    %v3553 = vunpack.c.l.b16 %v3319
    %v3554 = vpack.c.b16 %v3552, %v3551
    %v3555 = vpack.c.b16 %v3553, %v3553
    %v3558 = vsel %vm1862, %v3546, 0
    %v3561 = vsel %vm1862, %v3547, 0
    %v3564 = vsel %vm1958, %v3555, 0
    %3566 = vmatpush.bf16.msra.mxu0 0
    %3567 = vmatpush.bf16.msra.mxu0 0
    %3568 = vmatpush.bf16.msra.mxu0 0
    %3569 = vmatpush.bf16.msra.mxu0 0
    %3570 = vmatpush.bf16.msra.mxu0 0
    %3571 = vmatpush.bf16.msra.mxu0 0
    %3572 = vmatpush.bf16.msra.mxu0 %v3564
    %3573 = vmatpush.bf16.msra.mxu0 %v3554
    %3574 = vmatmul.bf16.gmra.mxu0 %v3558
    %v3575 = vpop.f32.mrf.mxu0
    %v3576 = vadd.f32 0.0, %v3575
    %v3577 = vpop.f32.mrf.mxu0
    %v3578 = vadd.f32 0.0, %v3577
    %3579 = vmatmul.bf16.gmra.mxu0 %v3561
    %v3580 = vpop.f32.mrf.mxu0
    %v3581 = vadd.f32 0.0, %v3580
    %v3582 = vpop.f32.mrf.mxu0
    %3583 = vdwg.mxu0
    %v3584 = vld [vmem:[%s3 + $0x170] sm:$0xf]
    %v3585 = vld [vmem:[%s3 + $0x174] sm:$0xf]
    %v3586 = vpack.c.bf16 %v3534, %v3532
    %v3587 = vpack.c.bf16 %v3576, %v3537
    %v3588 = vpack.c.bf16 %v3581, %v3578
    %v3591 = vunpack.c.l.b16 %v3584
    %v3592 = vunpack.c.l.b16 %v3585
    %v3593 = vpack.c.b16 %v3592, %v3591
    %v3596 = vsel %vm334, %v3586, 0
    %v3599 = vsel %vm334, %v3587, 0
    %v3602 = vsel %vm334, %v3588, 0
    %3604 = vmatpush.bf16.msra.mxu0 0
    %3605 = vmatpush.bf16.msra.mxu0 0
    %3606 = vmatpush.bf16.msra.mxu0 0
    %3607 = vmatpush.bf16.msra.mxu0 0
    %3608 = vmatpush.bf16.msra.mxu0 0
    %3609 = vmatpush.bf16.msra.mxu0 0
    %3610 = vmatpush.bf16.msra.mxu0 0
    %3611 = vmatpush.bf16.msra.mxu0 %v3593
    %3612 = vmatmul.bf16.gmra.mxu0 %v3596
    %v3613 = vpop.f32.mrf.mxu0
    %v3614 = vadd.f32 0.0, %v3613
    %v3615 = vpop.f32.mrf.mxu0
    %v3616 = vadd.f32 0.0, %v3615
    %3617 = vmatmul.bf16.gmra.mxu0 %v3599
    %v3618 = vpop.f32.mrf.mxu0
    %v3619 = vadd.f32 0.0, %v3618
    %v3620 = vpop.f32.mrf.mxu0
    %v3621 = vadd.f32 0.0, %v3620
    %3622 = vmatmul.bf16.gmra.mxu0 %v3602
    %v3623 = vpop.f32.mrf.mxu0
    %v3624 = vadd.f32 0.0, %v3623
    %v3625 = vpop.f32.mrf.mxu0
    %v3626 = vadd.f32 0.0, %v3625
    %3627 = vdwg.mxu0
    %v3628 = vadd.f32 %v3104, %v3614
    %v3629 = vadd.f32 %v3105, %v3616
    %v3630 = vadd.f32 %v3106, %v3619
    %v3631 = vadd.f32 %v3107, %v3621
    %v3632 = vadd.f32 %v3108, %v3624
    %v3633 = vadd.f32 %v3109, %v3626
    %v3634 = vadd.f32 %v1430, %v3628
    %v3635 = vadd.f32 %v1431, %v3629
    %v3636 = vadd.f32 %v1432, %v3630
    %v3637 = vadd.f32 %v1433, %v3631
    %v3638 = vadd.f32 %v1434, %v3632
    %v3639 = vadd.f32 %v1435, %v3633
    %v3640 = vld [vmem:[%s2 + $0xe] sm:$0x1]
    %v3641 = vmul.f32 %v3634, %v3634
    %v3642 = vmul.f32 %v3635, %v3635
    %v3643 = vmul.f32 %v3636, %v3636
    %v3644 = vmul.f32 %v3637, %v3637
    %v3645 = vmul.f32 %v3638, %v3638
    %v3646 = vmul.f32 %v3639, %v3639
    %v3647 = vsel %vm1151, %v3641, 0.0
    %3648 = vadd.xlane.f32.xlu0 %v3647
    %v3649 = vpop.xlane.xlu0 %3648
    %v3650 = vsel %vm1151, %v3642, 0.0
    %3651 = vadd.xlane.f32.xlu0 %v3650
    %v3652 = vpop.xlane.xlu0 %3651
    %v3653 = vsel %vm1151, %v3643, 0.0
    %3654 = vadd.xlane.f32.xlu0 %v3653
    %v3655 = vpop.xlane.xlu0 %3654
    %v3656 = vsel %vm1151, %v3644, 0.0
    %3657 = vadd.xlane.f32.xlu0 %v3656
    %v3658 = vpop.xlane.xlu0 %3657
    %v3659 = vsel %vm1151, %v3645, 0.0
    %3660 = vadd.xlane.f32.xlu0 %v3659
    %v3661 = vpop.xlane.xlu0 %3660
    %v3662 = vsel %vm1151, %v3646, 0.0
    %3663 = vadd.xlane.f32.xlu0 %v3662
    %v3664 = vpop.xlane.xlu0 %3663
    %v3665 = vmul.f32 %v3649, %v1467
    %v3666 = vmul.f32 %v3652, %v1467
    %v3667 = vmul.f32 %v3655, %v1467
    %v3668 = vmul.f32 %v3658, %v1467
    %v3669 = vmul.f32 %v3661, %v1467
    %v3670 = vmul.f32 %v3664, %v1467
    %v3671 = vadd.f32 %v3665, 1e-06
    %v3672 = vadd.f32 %v3666, 1e-06
    %v3673 = vadd.f32 %v3667, 1e-06
    %v3674 = vadd.f32 %v3668, 1e-06
    %v3675 = vadd.f32 %v3669, 1e-06
    %v3676 = vadd.f32 %v3670, 1e-06
    %v3677 = vrsqrt.pop %v3671
    %v3678 = vmul.f32 %v3677, %v3671
    %v3679 = vmul.f32 %v3678, %v3677
    %v3680 = vmul.f32 0.5, %v3679
    %v3681 = vsub.f32 1.5, %v3680
    %v3682 = vmul.f32 %v3677, %v3681
    %vm3683 = vweird.f32 %v3671
    %vm3684 = vweird.f32 %v3677
    %vm3685 = vmor %vm3683, %vm3684
    %v3686 = vsel %vm3685, %v3677, %v3682
    %v3687 = vrsqrt.pop %v3672
    %v3688 = vmul.f32 %v3687, %v3672
    %v3689 = vmul.f32 %v3688, %v3687
    %v3690 = vmul.f32 0.5, %v3689
    %v3691 = vsub.f32 1.5, %v3690
    %v3692 = vmul.f32 %v3687, %v3691
    %vm3693 = vweird.f32 %v3672
    %vm3694 = vweird.f32 %v3687
    %vm3695 = vmor %vm3693, %vm3694
    %v3696 = vsel %vm3695, %v3687, %v3692
    %v3697 = vrsqrt.pop %v3673
    %v3698 = vmul.f32 %v3697, %v3673
    %v3699 = vmul.f32 %v3698, %v3697
    %v3700 = vmul.f32 0.5, %v3699
    %v3701 = vsub.f32 1.5, %v3700
    %v3702 = vmul.f32 %v3697, %v3701
    %vm3703 = vweird.f32 %v3673
    %vm3704 = vweird.f32 %v3697
    %vm3705 = vmor %vm3703, %vm3704
    %v3706 = vsel %vm3705, %v3697, %v3702
    %v3707 = vrsqrt.pop %v3674
    %v3708 = vmul.f32 %v3707, %v3674
    %v3709 = vmul.f32 %v3708, %v3707
    %v3710 = vmul.f32 0.5, %v3709
    %v3711 = vsub.f32 1.5, %v3710
    %v3712 = vmul.f32 %v3707, %v3711
    %vm3713 = vweird.f32 %v3674
    %vm3714 = vweird.f32 %v3707
    %vm3715 = vmor %vm3713, %vm3714
    %v3716 = vsel %vm3715, %v3707, %v3712
    %v3717 = vrsqrt.pop %v3675
    %v3718 = vmul.f32 %v3717, %v3675
    %v3719 = vmul.f32 %v3718, %v3717
    %v3720 = vmul.f32 0.5, %v3719
    %v3721 = vsub.f32 1.5, %v3720
    %v3722 = vmul.f32 %v3717, %v3721
    %vm3723 = vweird.f32 %v3675
    %vm3724 = vweird.f32 %v3717
    %vm3725 = vmor %vm3723, %vm3724
    %v3726 = vsel %vm3725, %v3717, %v3722
    %v3727 = vrsqrt.pop %v3676
    %v3728 = vmul.f32 %v3727, %v3676
    %v3729 = vmul.f32 %v3728, %v3727
    %v3730 = vmul.f32 0.5, %v3729
    %v3731 = vsub.f32 1.5, %v3730
    %v3732 = vmul.f32 %v3727, %v3731
    %vm3733 = vweird.f32 %v3676
    %vm3734 = vweird.f32 %v3727
    %vm3735 = vmor %vm3733, %vm3734
    %v3736 = vsel %vm3735, %v3727, %v3732
    %v3737 = vmul.f32 %v3634, %v3686
    %v3738 = vmul.f32 %v3635, %v3696
    %v3739 = vmul.f32 %v3636, %v3706
    %v3740 = vmul.f32 %v3637, %v3716
    %v3741 = vmul.f32 %v3638, %v3726
    %v3742 = vmul.f32 %v3639, %v3736
    %v3743 = vperm.slane %v3640, 0
    %v3744 = vmul.f32 %v3737, %v3743
    %v3745 = vmul.f32 %v3738, %v3743
    %v3746 = vmul.f32 %v3739, %v3743
    %v3747 = vmul.f32 %v3740, %v3743
    %v3748 = vmul.f32 %v3741, %v3743
    %v3749 = vmul.f32 %v3742, %v3743
    %v3750 = vld [vmem:[%s3 + $0x178] sm:$0xf]
    %v3751 = vld [vmem:[%s3 + $0x17c] sm:$0xf]
    %v3752 = vld [vmem:[%s3 + $0x180] sm:$0xf]
    %v3753 = vld [vmem:[%s3 + $0x184] sm:$0xf]
    %v3754 = vld [vmem:[%s3 + $0x188] sm:$0xf]
    %v3755 = vld [vmem:[%s3 + $0x18c] sm:$0xf]
    %v3756 = vld [vmem:[%s3 + $0x190] sm:$0xf]
    %v3757 = vld [vmem:[%s3 + $0x194] sm:$0xf]
    %v3758 = vpack.c.bf16 %v3745, %v3744
    %v3759 = vpack.c.bf16 %v3747, %v3746
    %v3760 = vpack.c.bf16 %v3749, %v3748
    %v3769 = vunpack.c.l.b16 %v3750
    %v3770 = vunpack.c.l.b16 %v3751
    %v3771 = vunpack.c.l.b16 %v3752
    %v3772 = vunpack.c.l.b16 %v3753
    %v3773 = vunpack.c.l.b16 %v3754
    %v3774 = vunpack.c.l.b16 %v3755
    %v3775 = vunpack.c.l.b16 %v3756
    %v3776 = vunpack.c.l.b16 %v3757
    %v3777 = vpack.c.b16 %v3770, %v3769
    %v3778 = vpack.c.b16 %v3772, %v3771
    %v3779 = vpack.c.b16 %v3774, %v3773
    %v3780 = vpack.c.b16 %v3776, %v3775
    %v3786 = vsel %vm1151, %v3758, 0
    %v3789 = vsel %vm1151, %v3759, 0
    %v3792 = vsel %vm1151, %v3760, 0
    %3794 = vmatpush.bf16.msra.mxu0 0
    %3795 = vmatpush.bf16.msra.mxu0 0
    %3796 = vmatpush.bf16.msra.mxu0 0
    %3797 = vmatpush.bf16.msra.mxu0 0
    %3798 = vmatpush.bf16.msra.mxu0 %v3780
    %3799 = vmatpush.bf16.msra.mxu0 %v3779
    %3800 = vmatpush.bf16.msra.mxu0 %v3778
    %3801 = vmatpush.bf16.msra.mxu0 %v3777
    %3802 = vmatmul.bf16.gmra.mxu0 %v3786
    %v3803 = vpop.f32.mrf.mxu0
    %v3804 = vadd.f32 0.0, %v3803
    %v3805 = vpop.f32.mrf.mxu0
    %v3806 = vadd.f32 0.0, %v3805
    %3807 = vmatmul.bf16.gmra.mxu0 %v3789
    %v3808 = vpop.f32.mrf.mxu0
    %v3809 = vadd.f32 0.0, %v3808
    %v3810 = vpop.f32.mrf.mxu0
    %v3811 = vadd.f32 0.0, %v3810
    %3812 = vmatmul.bf16.gmra.mxu0 %v3792
    %v3813 = vpop.f32.mrf.mxu0
    %v3814 = vadd.f32 0.0, %v3813
    %v3815 = vpop.f32.mrf.mxu0
    %v3816 = vadd.f32 0.0, %v3815
    %3817 = vdwg.mxu0
    %v3818 = vld [vmem:[%s3 + $0x198] sm:$0xf]
    %v3819 = vld [vmem:[%s3 + $0x19c] sm:$0xf]
    %v3820 = vld [vmem:[%s3 + $0x1a0] sm:$0xf]
    %v3821 = vld [vmem:[%s3 + $0x1a4] sm:$0xf]
    %v3822 = vld [vmem:[%s3 + $0x1a8] sm:$0xf]
    %v3823 = vld [vmem:[%s3 + $0x1ac] sm:$0xf]
    %v3824 = vld [vmem:[%s3 + $0x1b0] sm:$0xf]
    %v3825 = vld [vmem:[%s3 + $0x1b4] sm:$0xf]
    %v3834 = vunpack.c.l.b16 %v3818
    %v3835 = vunpack.c.l.b16 %v3819
    %v3836 = vunpack.c.l.b16 %v3820
    %v3837 = vunpack.c.l.b16 %v3821
    %v3838 = vunpack.c.l.b16 %v3822
    %v3839 = vunpack.c.l.b16 %v3823
    %v3840 = vunpack.c.l.b16 %v3824
    %v3841 = vunpack.c.l.b16 %v3825
    %v3842 = vpack.c.b16 %v3835, %v3834
    %v3843 = vpack.c.b16 %v3837, %v3836
    %v3844 = vpack.c.b16 %v3839, %v3838
    %v3845 = vpack.c.b16 %v3841, %v3840
    %3850 = vmatpush.bf16.msra.mxu0 0
    %3851 = vmatpush.bf16.msra.mxu0 0
    %3852 = vmatpush.bf16.msra.mxu0 0
    %3853 = vmatpush.bf16.msra.mxu0 0
    %3854 = vmatpush.bf16.msra.mxu0 %v3845
    %3855 = vmatpush.bf16.msra.mxu0 %v3844
    %3856 = vmatpush.bf16.msra.mxu0 %v3843
    %3857 = vmatpush.bf16.msra.mxu0 %v3842
    %3858 = vmatmul.bf16.gmra.mxu0 %v3786
    %v3859 = vpop.f32.mrf.mxu0
    %v3860 = vadd.f32 0.0, %v3859
    %v3861 = vpop.f32.mrf.mxu0
    %v3862 = vadd.f32 0.0, %v3861
    %3863 = vmatmul.bf16.gmra.mxu0 %v3789
    %v3864 = vpop.f32.mrf.mxu0
    %v3865 = vadd.f32 0.0, %v3864
    %v3866 = vpop.f32.mrf.mxu0
    %v3867 = vadd.f32 0.0, %v3866
    %3868 = vmatmul.bf16.gmra.mxu0 %v3792
    %v3869 = vpop.f32.mrf.mxu0
    %v3870 = vadd.f32 0.0, %v3869
    %v3871 = vpop.f32.mrf.mxu0
    %v3872 = vadd.f32 0.0, %v3871
    %3873 = vdwg.mxu0
    %v3874 = vxor.u32 %v3804, 2147483648
    %v3875 = vxor.u32 %v3806, 2147483648
    %v3876 = vxor.u32 %v3809, 2147483648
    %v3877 = vxor.u32 %v3811, 2147483648
    %v3878 = vxor.u32 %v3814, 2147483648
    %v3879 = vxor.u32 %v3816, 2147483648
    %v3880 = vmul.f32 %v3874, 1.442695
    %v3881 = vpow.pop %v3880
    %v3882 = vmul.f32 %v3875, 1.442695
    %v3883 = vpow.pop %v3882
    %v3884 = vmul.f32 %v3876, 1.442695
    %v3885 = vpow.pop %v3884
    %v3886 = vmul.f32 %v3877, 1.442695
    %v3887 = vpow.pop %v3886
    %v3888 = vmul.f32 %v3878, 1.442695
    %v3889 = vpow.pop %v3888
    %v3890 = vmul.f32 %v3879, 1.442695
    %v3891 = vpow.pop %v3890
    %v3892 = vadd.f32 %v3881, 1.0
    %v3893 = vadd.f32 %v3883, 1.0
    %v3894 = vadd.f32 %v3885, 1.0
    %v3895 = vadd.f32 %v3887, 1.0
    %v3896 = vadd.f32 %v3889, 1.0
    %v3897 = vadd.f32 %v3891, 1.0
    %v3898 = vrcp.pop %v3892
    %v3899 = vmul.f32 %v3892, %v3898
    %v3900 = vsub.f32 1.0, %v3899
    %v3901 = vmul.f32 %v3898, %v3900
    %v3902 = vadd.f32 %v3898, %v3901
    %vm3903 = vweird.f32 %v3892
    %vm3904 = vweird.f32 %v3898
    %vm3905 = vmor %vm3903, %vm3904
    %v3906 = vsel %vm3905, %v3898, %v3902
    %v3907 = vand.u32 2147483647, %v3892
    %vm3908 = vcmp.eq.f32.partialorder %v3907, 8.507059e+37
    %v3909 = vand.u32 %v3892, 2147483648
    %v3910 = vor.u32 1.1754944e-38, %v3909
    %v3911 = vsel %vm3908, %v3910, %v3906
    %v3912 = vmul.f32 1.0, %v3911
    %v3913 = vrcp.pop %v3893
    %v3914 = vmul.f32 %v3893, %v3913
    %v3915 = vsub.f32 1.0, %v3914
    %v3916 = vmul.f32 %v3913, %v3915
    %v3917 = vadd.f32 %v3913, %v3916
    %vm3918 = vweird.f32 %v3893
    %vm3919 = vweird.f32 %v3913
    %vm3920 = vmor %vm3918, %vm3919
    %v3921 = vsel %vm3920, %v3913, %v3917
    %v3922 = vand.u32 2147483647, %v3893
    %vm3923 = vcmp.eq.f32.partialorder %v3922, 8.507059e+37
    %v3924 = vand.u32 %v3893, 2147483648
    %v3925 = vor.u32 1.1754944e-38, %v3924
    %v3926 = vsel %vm3923, %v3925, %v3921
    %v3927 = vmul.f32 1.0, %v3926
    %v3928 = vrcp.pop %v3894
    %v3929 = vmul.f32 %v3894, %v3928
    %v3930 = vsub.f32 1.0, %v3929
    %v3931 = vmul.f32 %v3928, %v3930
    %v3932 = vadd.f32 %v3928, %v3931
    %vm3933 = vweird.f32 %v3894
    %vm3934 = vweird.f32 %v3928
    %vm3935 = vmor %vm3933, %vm3934
    %v3936 = vsel %vm3935, %v3928, %v3932
    %v3937 = vand.u32 2147483647, %v3894
    %vm3938 = vcmp.eq.f32.partialorder %v3937, 8.507059e+37
    %v3939 = vand.u32 %v3894, 2147483648
    %v3940 = vor.u32 1.1754944e-38, %v3939
    %v3941 = vsel %vm3938, %v3940, %v3936
    %v3942 = vmul.f32 1.0, %v3941
    %v3943 = vrcp.pop %v3895
    %v3944 = vmul.f32 %v3895, %v3943
    %v3945 = vsub.f32 1.0, %v3944
    %v3946 = vmul.f32 %v3943, %v3945
    %v3947 = vadd.f32 %v3943, %v3946
    %vm3948 = vweird.f32 %v3895
    %vm3949 = vweird.f32 %v3943
    %vm3950 = vmor %vm3948, %vm3949
    %v3951 = vsel %vm3950, %v3943, %v3947
    %v3952 = vand.u32 2147483647, %v3895
    %vm3953 = vcmp.eq.f32.partialorder %v3952, 8.507059e+37
    %v3954 = vand.u32 %v3895, 2147483648
    %v3955 = vor.u32 1.1754944e-38, %v3954
    %v3956 = vsel %vm3953, %v3955, %v3951
    %v3957 = vmul.f32 1.0, %v3956
    %v3958 = vrcp.pop %v3896
    %v3959 = vmul.f32 %v3896, %v3958
    %v3960 = vsub.f32 1.0, %v3959
    %v3961 = vmul.f32 %v3958, %v3960
    %v3962 = vadd.f32 %v3958, %v3961
    %vm3963 = vweird.f32 %v3896
    %vm3964 = vweird.f32 %v3958
    %vm3965 = vmor %vm3963, %vm3964
    %v3966 = vsel %vm3965, %v3958, %v3962
    %v3967 = vand.u32 2147483647, %v3896
    %vm3968 = vcmp.eq.f32.partialorder %v3967, 8.507059e+37
    %v3969 = vand.u32 %v3896, 2147483648
    %v3970 = vor.u32 1.1754944e-38, %v3969
    %v3971 = vsel %vm3968, %v3970, %v3966
    %v3972 = vmul.f32 1.0, %v3971
    %v3973 = vrcp.pop %v3897
    %v3974 = vmul.f32 %v3897, %v3973
    %v3975 = vsub.f32 1.0, %v3974
    %v3976 = vmul.f32 %v3973, %v3975
    %v3977 = vadd.f32 %v3973, %v3976
    %vm3978 = vweird.f32 %v3897
    %vm3979 = vweird.f32 %v3973
    %vm3980 = vmor %vm3978, %vm3979
    %v3981 = vsel %vm3980, %v3973, %v3977
    %v3982 = vand.u32 2147483647, %v3897
    %vm3983 = vcmp.eq.f32.partialorder %v3982, 8.507059e+37
    %v3984 = vand.u32 %v3897, 2147483648
    %v3985 = vor.u32 1.1754944e-38, %v3984
    %v3986 = vsel %vm3983, %v3985, %v3981
    %v3987 = vmul.f32 1.0, %v3986
    %v3988 = vmul.f32 %v3804, %v3912
    %v3989 = vmul.f32 %v3806, %v3927
    %v3990 = vmul.f32 %v3809, %v3942
    %v3991 = vmul.f32 %v3811, %v3957
    %v3992 = vmul.f32 %v3814, %v3972
    %v3993 = vmul.f32 %v3816, %v3987
    %v3994 = vmul.f32 %v3988, %v3860
    %v3995 = vmul.f32 %v3989, %v3862
    %v3996 = vmul.f32 %v3990, %v3865
    %v3997 = vmul.f32 %v3991, %v3867
    %v3998 = vmul.f32 %v3992, %v3870
    %v3999 = vmul.f32 %v3993, %v3872
    %v4000 = vld [vmem:[%s3 + $0x1b8] sm:$0xf]
    %v4001 = vld [vmem:[%s3 + $0x1bc] sm:$0xf]
    %v4002 = vld [vmem:[%s3 + $0x1c0] sm:$0xf]
    %v4003 = vld [vmem:[%s3 + $0x1c4] sm:$0xf]
    %v4004 = vld [vmem:[%s3 + $0x1c8] sm:$0xf]
    %v4005 = vld [vmem:[%s3 + $0x1cc] sm:$0xf]
    %v4006 = vld [vmem:[%s3 + $0x1d0] sm:$0xf]
    %v4007 = vld [vmem:[%s3 + $0x1d4] sm:$0xf]
    %v4008 = vld [vmem:[%s3 + $0x1d8] sm:$0xf]
    %v4009 = vld [vmem:[%s3 + $0x1dc] sm:$0xf]
    %v4010 = vld [vmem:[%s3 + $0x1e0] sm:$0xf]
    %v4011 = vld [vmem:[%s3 + $0x1e4] sm:$0xf]
    %v4012 = vld [vmem:[%s3 + $0x1e8] sm:$0xf]
    %v4013 = vld [vmem:[%s3 + $0x1ec] sm:$0xf]
    %v4014 = vld [vmem:[%s3 + $0x1f0] sm:$0xf]
    %v4015 = vld [vmem:[%s3 + $0x1f4] sm:$0xf]
    %v4016 = vpack.c.bf16 %v3995, %v3994
    %v4017 = vpack.c.bf16 %v3997, %v3996
    %v4018 = vpack.c.bf16 %v3999, %v3998
    %v4035 = vunpack.c.l.b16 %v4000
    %v4036 = vunpack.c.l.b16 %v4001
    %v4037 = vunpack.c.l.b16 %v4002
    %v4038 = vunpack.c.l.b16 %v4003
    %v4039 = vunpack.c.l.b16 %v4004
    %v4040 = vunpack.c.l.b16 %v4005
    %v4041 = vunpack.c.l.b16 %v4006
    %v4042 = vunpack.c.l.b16 %v4007
    %v4043 = vunpack.c.l.b16 %v4008
    %v4044 = vunpack.c.l.b16 %v4009
    %v4045 = vunpack.c.l.b16 %v4010
    %v4046 = vunpack.c.l.b16 %v4011
    %v4047 = vunpack.c.l.b16 %v4012
    %v4048 = vunpack.c.l.b16 %v4013
    %v4049 = vunpack.c.l.b16 %v4014
    %v4050 = vunpack.c.l.b16 %v4015
    %v4051 = vpack.c.b16 %v4036, %v4035
    %v4052 = vpack.c.b16 %v4038, %v4037
    %v4053 = vpack.c.b16 %v4040, %v4039
    %v4054 = vpack.c.b16 %v4042, %v4041
    %v4055 = vpack.c.b16 %v4044, %v4043
    %v4056 = vpack.c.b16 %v4046, %v4045
    %v4057 = vpack.c.b16 %v4048, %v4047
    %v4058 = vpack.c.b16 %v4050, %v4049
    %4067 = vmatpush.bf16.msra.mxu0 %v4058
    %4068 = vmatpush.bf16.msra.mxu0 %v4057
    %4069 = vmatpush.bf16.msra.mxu0 %v4056
    %4070 = vmatpush.bf16.msra.mxu0 %v4055
    %4071 = vmatpush.bf16.msra.mxu0 %v4054
    %4072 = vmatpush.bf16.msra.mxu0 %v4053
    %4073 = vmatpush.bf16.msra.mxu0 %v4052
    %4074 = vmatpush.bf16.msra.mxu0 %v4051
    %4075 = vmatmul.bf16.gmra.mxu0 %v4016
    %v4076 = vpop.f32.mrf.mxu0
    %v4077 = vpop.f32.mrf.mxu0
    %4078 = vmatmul.bf16.gmra.mxu0 %v4017
    %v4079 = vpop.f32.mrf.mxu0
    %v4080 = vadd.f32 0.0, %v4079
    %v4081 = vpop.f32.mrf.mxu0
    %4082 = vmatmul.bf16.gmra.mxu0 %v4018
    %v4083 = vpop.f32.mrf.mxu0
    %v4084 = vpop.f32.mrf.mxu0
    %v4085 = vadd.f32 0.0, %v4084
    %4086 = vdwg.mxu0
    %v4087 = vadd.f32 %v3636, %v4080
    %v4088 = vadd.f32 %v3639, %v4085
    %v4089 = vld [vmem:[%s2 + $0xf] sm:$0x1]
    %v4090 = vmul.f32 %v4087, %v4087
    %v4091 = vmul.f32 %v4088, %v4088
    %v4094 = vrot.slane %v4091, 7
    %vm4097 = vcmask 523271
    %v4098 = vsel %vm4097, %v4090, 0.0
    %4099 = vadd.xlane.f32.xlu0 %v4098
    %v4100 = vpop.xlane.xlu0 %4099
    %vm4101 = vcmask 516096
    %v4102 = vsel %vm4101, %v4094, 0.0
    %4103 = vadd.xlane.f32.xlu0 %v4102
    %v4104 = vpop.xlane.xlu0 %4103
    %v4105 = vmul.f32 %v4100, %v1467
    %v4106 = vmul.f32 %v4104, %v1467
    %v4107 = vadd.f32 %v4105, 1e-06
    %v4108 = vadd.f32 %v4106, 1e-06
    %v4109 = vrsqrt.pop %v4107
    %v4110 = vmul.f32 %v4109, %v4107
    %v4111 = vmul.f32 %v4110, %v4109
    %v4112 = vmul.f32 0.5, %v4111
    %v4113 = vsub.f32 1.5, %v4112
    %v4114 = vmul.f32 %v4109, %v4113
    %vm4115 = vweird.f32 %v4107
    %vm4116 = vweird.f32 %v4109
    %vm4117 = vmor %vm4115, %vm4116
    %v4118 = vsel %vm4117, %v4109, %v4114
    %v4119 = vrsqrt.pop %v4108
    %v4120 = vmul.f32 %v4119, %v4108
    %v4121 = vmul.f32 %v4120, %v4119
    %v4122 = vmul.f32 0.5, %v4121
    %v4123 = vsub.f32 1.5, %v4122
    %v4124 = vmul.f32 %v4119, %v4123
    %vm4125 = vweird.f32 %v4108
    %vm4126 = vweird.f32 %v4119
    %vm4127 = vmor %vm4125, %vm4126
    %v4128 = vsel %vm4127, %v4119, %v4124
    %v4131 = vrot.slane %v4128, 1
    %v4134 = vmul.f32 %v4087, %v4118
    %v4135 = vmul.f32 %v4088, %v4131
    %v4136 = vperm.slane %v4089, 0
    %v4137 = vmul.f32 %v4134, %v4136
    %v4138 = vmul.f32 %v4135, %v4136
    %v4139 = vld [vmem:[%s3 + $0x1f8] sm:$0xf]
    %v4140 = vld [vmem:[%s3 + $0x1fc] sm:$0xf]
    %v4141 = vld [vmem:[%s3 + $0x200] sm:$0xf]
    %v4142 = vld [vmem:[%s3 + $0x204] sm:$0xf]
    %v4143 = vld [vmem:[%s3 + $0x208] sm:$0xf]
    %v4144 = vld [vmem:[%s3 + $0x20c] sm:$0xf]
    %v4145 = vld [vmem:[%s3 + $0x210] sm:$0xf]
    %v4146 = vld [vmem:[%s3 + $0x214] sm:$0xf]
    %v4147 = vpack.c.bf16 %v4137, %v4137
    %v4148 = vpack.c.bf16 %v4138, %v4138
    %v4151 = vunpack.c.l.b16 %v4147
    %v4152 = vunpack.c.l.b16 %v4148
    %v4153 = vrot.slane %v4151, 7
    %v4154 = vrot.slane %v4152, 6
    %vm4155 = vcmask 1041409
    %v4156 = vsel %vm4155, %v4154, %v4153
    %v4157 = vpack.c.b16 %v4156, %v4156
    %v4166 = vunpack.c.l.b16 %v4139
    %v4167 = vunpack.c.l.b16 %v4140
    %v4168 = vunpack.c.l.b16 %v4141
    %v4169 = vunpack.c.l.b16 %v4142
    %v4170 = vunpack.c.l.b16 %v4143
    %v4171 = vunpack.c.l.b16 %v4144
    %v4172 = vunpack.c.l.b16 %v4145
    %v4173 = vunpack.c.l.b16 %v4146
    %v4174 = vpack.c.b16 %v4167, %v4166
    %v4175 = vpack.c.b16 %v4169, %v4168
    %v4176 = vpack.c.b16 %v4171, %v4170
    %v4177 = vpack.c.b16 %v4173, %v4172
    %v4183 = vsel %vm1151, %v4157, 0
    %4185 = vmatpush.bf16.msra.mxu0 0
    %4186 = vmatpush.bf16.msra.mxu0 0
    %4187 = vmatpush.bf16.msra.mxu0 0
    %4188 = vmatpush.bf16.msra.mxu0 0
    %4189 = vmatpush.bf16.msra.mxu0 %v4177
    %4190 = vmatpush.bf16.msra.mxu0 %v4176
    %4191 = vmatpush.bf16.msra.mxu0 %v4175
    %4192 = vmatpush.bf16.msra.mxu0 %v4174
    %4193 = vmatmul.bf16.gmra.mxu0 %v4183
    %v4194 = vpop.f32.mrf.mxu0
    %v4195 = vadd.f32 0.0, %v4194
    %v4196 = vpop.f32.mrf.mxu0
    %4197 = vdwg.mxu0
    %4198 = vst [vmem:[#allocation3] sm:$0x3] %v4195
    %vm4199 = vcmask 1041408
    %v4200 = vsel %vm4199, %v4195, -inf
    %4201 = vmax.xlane.f32.xlu0 %v4200
    %v4202 = vpop.xlane.xlu0 %4201
    %vm4203 = vcmp.eq.f32.partialorder %v4195, %v4202
    %v4204 = vsel %vm4203, %v1332, 128
    %v4205 = vsel %vm4199, %v4204, 2147483647
    %v4206 = vand.u32 %v4205, 65535
    %v4207 = vshra.s32 %v4205, 16
    %v4208 = vcvt.s32.f32 %v4206
    %v4209 = vcvt.s32.f32 %v4207
    %4210 = vmin.xlane.f32.xlu0 %v4209
    %v4211 = vpop.xlane.xlu0 %4210
    %vm4212 = vcmp.eq.f32.partialorder %v4209, %v4211
    %v4213 = vsel %vm4212, %v4208, inf
    %4214 = vmin.xlane.f32.xlu0 %v4213
    %v4215 = vpop.xlane.xlu0 %4214
    %v4216 = vcvt.f32.s32 %v4215
    %v4217 = vcvt.f32.s32 %v4211
    %v4218 = vshll.u32 %v4217, 16
    %v4219 = vadd.s32 %v4218, %v4216
    %vm4220 = vcmask 1024
    %4221 = vst.msk [vmem:[%s5] sm:$0x3] %vm4220, %v4219
    // Predicated region
    $region18: #{llava_generate_step.1} parent=1 // pred_check
      _
    $region19: #{llava_generate_step.1} parent=1 // pred_check_branch
      %4223 = sbr.rel (0) target = $region21
    $region20: #{llava_generate_step.1} parent=1 // pred_region
      %4225 = vsyncadd [#allocation4], 0
      %s4227 = sshll.u32 [#allocation3], 4
      %s4228 = int_to_ptr.vmem [resolvable:$true] %s4227
      %s4229 = sshll.u32 %s4, 4
      %s4230 = int_to_ptr.hbm [resolvable:$true] %s4229
      %4232 = dma.vmem_to_hbm [thread:$0]  %s4228, 32, %s4230, [#allocation4]
    $region21: #{llava_generate_step.1} parent=1 // pred_fallthru
      _
    // Predicated region
    $region22: #{llava_generate_step.1} parent=1 // pred_check
      _
    $region23: #{llava_generate_step.1} parent=1 // pred_check_branch
      %4234 = sbr.rel (0) target = $region25
    $region24: #{llava_generate_step.1} parent=1 // pred_region
      _
    $region25: #{llava_generate_step.1} parent=1 // pred_fallthru
      _
    // Predicated region
    $region26: #{llava_generate_step.1} parent=1 // pred_check
      _
    $region27: #{llava_generate_step.1} parent=1 // pred_check_branch
      %4236 = sbr.rel (0) target = $region29
    $region28: #{llava_generate_step.1} parent=1 // pred_region
      %4238 = dma.done [#allocation4], 32
    $region29: #{llava_generate_step.1} parent=1 // pred_fallthru
      _
    // Predicated region
    $region30: #{llava_generate_step.1} parent=1 // pred_check
      _
    $region31: #{llava_generate_step.1} parent=1 // pred_check_branch
      %4240 = sbr.rel (0) target = $region33
    $region32: #{llava_generate_step.1} parent=1 // pred_region
      _
    $region33: #{llava_generate_step.1} parent=1 // pred_fallthru
      _
    %4241 = vsyncpa [#allocation4], 1

</llo_original>
